<compile_context>
chip_gen: v7x
topology: tpu7x:2x2x1
jax: 0.10.0
libtpu: 0.0.40
codegen_flags: <defaults>
</compile_context>

<pallas_src>
import numpy as np
import jax
import jax.numpy as jnp
from jax import lax
from jax.experimental import pallas as pl
from jax.experimental.pallas import tpu as pltpu

# ----------------------------- problem sizes ------------------------------
N, H, W = 2, 16, 16
C1 = 8                  # input channels
C2 = 8                  # output channels (must equal C1 for the s=1 residual)
C_MID = C2 // 2         # output width of first GhostConv  (c_ in PyTorch)
C_A = C_MID // 2        # primary-branch width inside first GhostConv
C_B = C2 // 2           # primary-branch width inside second GhostConv
BN_EPS = 1e-5
KDW = 5                 # GhostConv cheap-branch depthwise kernel size (pad=2)

L1 = W * C1             # 128 input lanes per row
LM = W * C_MID          # 64 lanes for stage-1 activations
L2 = W * C2             # 128 output lanes per row


# ------------------------------ kernel helpers ------------------------------
def _shift_lanes(v, k):
    """Shift values to higher lane indices by k, zero-filled (no wraparound)."""
    z = jnp.zeros((v.shape[0], k), v.dtype)
    return jnp.concatenate([z, v[:, :v.shape[1] - k]], axis=1)


def _dw5x5(img, taps, c):
    """5x5 'same' depthwise conv on a lane-dense (H, W*c) slab.

    taps: (25, W*c) per-output-lane weights (tap (dy, dx) stored at row dy*5+dx,
    BN scale already folded in).  The zero-padded tile stays in registers.
    """
    h, l = img.shape
    zc = jnp.zeros((h, 2 * c), jnp.float32)
    pad = jnp.concatenate([zc, img, zc], axis=1)              # (H, (W+4)*c)
    zr = jnp.zeros((2, l + 4 * c), jnp.float32)
    pad = jnp.concatenate([zr, pad, zr], axis=0)              # (H+4, (W+4)*c)
    acc = jnp.zeros((h, l), jnp.float32)
    for dx in range(KDW):
        cols = pad[:, dx * c: dx * c + l]                     # (H+4, W*c)
        for dy in range(KDW):
            acc = acc + cols[dy: dy + h, :] * taps[dy * KDW + dx]
    return acc


# ------------------------------ Pallas kernel ------------------------------
def ghost_bottleneck_kernel(x_ref, w1_ref, w2_ref, taps1_ref, taps2_ref,
                            sh1_ref, sh2_ref, o_ref):
    # x_ref: (N, H, W*C1); o_ref: (N, H, W*C2). Whole batch in one grid step.
    x_all = x_ref[...]                                        # (N, H, 128)
    taps1 = taps1_ref[...]                                    # (25, 64)
    taps2 = taps2_ref[...]                                    # (25, 128)
    sh1 = sh1_ref[...]                                        # (2, 64)
    sh2 = sh2_ref[...]                                        # (2, 128)
    w2 = w2_ref[...]                                          # (64, 128)

    # GhostConv1.cv1: 1x1 conv as block-diagonal lane matmul (BN scale folded)
    # + shift + ReLU, once for the whole batch.  y1a lives at lanes w*4+{0,1};
    # lanes w*4+{2,3} are exactly zero ("ghost" slots for the cheap branch).
    x_flat = x_all.reshape(N * H, L1)                         # (32, 128)
    y1a_all = jnp.dot(x_flat, w1_ref[...],
                      preferred_element_type=jnp.float32)     # (32, 64)
    y1a_all = jnp.maximum(y1a_all + sh1[0], 0.0)

    for n in range(N):                                        # unrolled (N=2)
        y1a = y1a_all[n * H:(n + 1) * H, :]                   # (16, 64)

        # GhostConv1.cv2: 5x5 depthwise + shift + ReLU (ghost lanes stay zero).
        y1b = jnp.maximum(_dw5x5(y1a, taps1, C_MID) + sh1[1], 0.0)

        # concat([y1a, y1b], C): per-pixel lanes become [y1a0, y1a1, y1b0, y1b1].
        z = y1a + _shift_lanes(y1b, C_A)                      # (16, 64)

        # GhostConv2.cv1: 1x1 conv + shift (no act); result at lanes w*8+{0..3}.
        y2a = jnp.dot(z, w2, preferred_element_type=jnp.float32) + sh2[0]  # (16,128)

        # GhostConv2.cv2: 5x5 depthwise + shift (no act).
        y2b = _dw5x5(y2a, taps2, C2) + sh2[1]                 # (16, 128)

        # concat([y2a, y2b], C) + identity shortcut; single full-width store.
        o_ref[n] = y2a + _shift_lanes(y2b, C_B) + x_all[n]


# ------------------------------ wrapper ------------------------------------
def _full_spec(arr):
    nd = arr.ndim
    return pl.BlockSpec(arr.shape, lambda i, _nd=nd: (0,) * _nd)


def ghost_bottleneck(x_nhwc, kparams):
    n, h, w, c1 = x_nhwc.shape
    assert (h, w, c1) == (H, W, C1)
    assert C1 == C2, "s=1 identity shortcut requires c1 == c2"
    x_flat = x_nhwc.reshape(n, h, w * c1)                     # lane-dense input

    out_flat = pl.pallas_call(
        ghost_bottleneck_kernel,
        out_shape=jax.ShapeDtypeStruct((n, H, L2), jnp.float32),
        grid_spec=pltpu.PrefetchScalarGridSpec(
            num_scalar_prefetch=0,
            grid=(1,),                                        # whole batch, one step
            in_specs=[pl.BlockSpec((n, H, L1), lambda i: (0, 0, 0))]
                     + [_full_spec(p) for p in kparams],
            out_specs=pl.BlockSpec((n, H, L2), lambda i: (0, 0, 0)),
        ),
        compiler_params=pltpu.CompilerParams(
            dimension_semantics=("arbitrary",)),
    )(x_flat, *kparams)
    return out_flat.reshape(n, H, W, C2)


# -------------------------- parameters (deterministic) ----------------------
def make_params(key):
    ks = jax.random.split(key, 12)

    def bn(k, c):
        k1, k2, k3, k4 = jax.random.split(k, 4)
        gamma = jax.random.uniform(k1, (c,), jnp.float32, 0.5, 1.5)
        beta = 0.1 * jax.random.normal(k2, (c,), jnp.float32)
        mean = 0.1 * jax.random.normal(k3, (c,), jnp.float32)
        var = jax.random.uniform(k4, (c,), jnp.float32, 0.5, 1.5)
        return gamma, beta, mean, var

    return {
        "w1a": 0.2 * jax.random.normal(ks[0], (C1, C_A), jnp.float32),
        "bn1a": bn(ks[1], C_A),
        "w1b": 0.2 * jax.random.normal(ks[2], (KDW, KDW, C_A), jnp.float32),
        "bn1b": bn(ks[3], C_A),
        "w2a": 0.2 * jax.random.normal(ks[4], (C_MID, C_B), jnp.float32),
        "bn2a": bn(ks[5], C_B),
        "w2b": 0.2 * jax.random.normal(ks[6], (KDW, KDW, C_B), jnp.float32),
        "bn2b": bn(ks[7], C_B),
    }


def fold_bn(gamma, beta, mean, var):
    scale = gamma / jnp.sqrt(var + BN_EPS)
    shift = beta - mean * scale
    return scale, shift


def kernel_params(p):
    """Host-side packing: fold BN scales into weights, build lane-dense tables."""
    s1a, b1a = fold_bn(*p["bn1a"])
    s1b, b1b = fold_bn(*p["bn1b"])
    s2a, b2a = fold_bn(*p["bn2a"])
    s2b, b2b = fold_bn(*p["bn2b"])

    # 1x1 convs as block-diagonal lane-dense matmuls (BN scale folded in).
    m1 = jnp.zeros((C1, C_MID), jnp.float32).at[:, :C_A].set(p["w1a"] * s1a[None, :])
    w1_big = jnp.kron(jnp.eye(W, dtype=jnp.float32), m1)          # (W*C1, W*C_MID)
    m2 = jnp.zeros((C_MID, C2), jnp.float32).at[:, :C_B].set(p["w2a"] * s2a[None, :])
    w2_big = jnp.kron(jnp.eye(W, dtype=jnp.float32), m2)          # (W*C_MID, W*C2)

    # Depthwise taps as per-output-lane weight rows (zeros in the ghost lanes).
    t1 = jnp.zeros((KDW * KDW, C_MID), jnp.float32).at[:, :C_A].set(
        (p["w1b"] * s1b[None, None, :]).reshape(KDW * KDW, C_A))
    taps1 = jnp.tile(t1, (1, W))                                   # (25, W*C_MID)
    t2 = jnp.zeros((KDW * KDW, C2), jnp.float32).at[:, :C_B].set(
        (p["w2b"] * s2b[None, None, :]).reshape(KDW * KDW, C_B))
    taps2 = jnp.tile(t2, (1, W))                                   # (25, W*C2)

    # Per-channel BN shifts as lane vectors, packed pairwise (fewer operands).
    sh1a = jnp.tile(jnp.zeros((C_MID,), jnp.float32).at[:C_A].set(b1a), W)
    sh1b = jnp.tile(jnp.zeros((C_MID,), jnp.float32).at[:C_A].set(b1b), W)
    sh2a = jnp.tile(jnp.zeros((C2,), jnp.float32).at[:C_B].set(b2a), W)
    sh2b = jnp.tile(jnp.zeros((C2,), jnp.float32).at[:C_B].set(b2b), W)
    shifts1 = jnp.stack([sh1a, sh1b])                              # (2, W*C_MID)
    shifts2 = jnp.stack([sh2a, sh2b])                              # (2, W*C2)

    return (w1_big, w2_big, taps1, taps2, shifts1, shifts2)


# ----------------------------- pure-JAX reference ---------------------------
def ref_forward(x_nhwc, p):
    dn = ("NHWC", "HWIO", "NHWC")

    s, sh = fold_bn(*p["bn1a"])
    y = lax.conv_general_dilated(x_nhwc, p["w1a"].reshape(1, 1, C1, C_A),
                                 (1, 1), [(0, 0), (0, 0)], dimension_numbers=dn)
    y1a = jnp.maximum(y * s + sh, 0.0)

    s, sh = fold_bn(*p["bn1b"])
    y = lax.conv_general_dilated(y1a, p["w1b"].reshape(KDW, KDW, 1, C_A),
                                 (1, 1), [(2, 2), (2, 2)], dimension_numbers=dn,
                                 feature_group_count=C_A)
    y1b = jnp.maximum(y * s + sh, 0.0)

    z = jnp.concatenate([y1a, y1b], axis=-1)                        # (N,H,W,C_MID)

    s, sh = fold_bn(*p["bn2a"])
    y = lax.conv_general_dilated(z, p["w2a"].reshape(1, 1, C_MID, C_B),
                                 (1, 1), [(0, 0), (0, 0)], dimension_numbers=dn)
    y2a = y * s + sh

    s, sh = fold_bn(*p["bn2b"])
    y = lax.conv_general_dilated(y2a, p["w2b"].reshape(KDW, KDW, 1, C_B),
                                 (1, 1), [(2, 2), (2, 2)], dimension_numbers=dn,
                                 feature_group_count=C_B)
    y2b = y * s + sh

    return jnp.concatenate([y2a, y2b], axis=-1) + x_nhwc


# --------------------------------- main --------------------------------------
if __name__ == "__main__":
    key = jax.random.PRNGKey(0)
    kx, kp = jax.random.split(key)

    # PyTorch-equivalent input would be NCHW (2, 8, 16, 16); kernel is NHWC-native.
    x = jax.random.normal(kx, (N, H, W, C1), jnp.float32)
    params = make_params(kp)

    out = jax.block_until_ready(ghost_bottleneck(x, kernel_params(params)))
    ref = jax.block_until_ready(ref_forward(x, params))
    np.testing.assert_allclose(np.asarray(out), np.asarray(ref), rtol=1e-4, atol=1e-4)

    print("KERNEL_OK")
</pallas_src>

<mosaic_0001>
module attributes {stable_mosaic.version = 11 : i64} {
  func.func @ghost_bottleneck_kernel(%arg0: i32, %arg1: memref<2x16x128xf32, #tpu.memory_space<vmem>>, %arg2: memref<128x64xf32, #tpu.memory_space<vmem>>, %arg3: memref<64x128xf32, #tpu.memory_space<vmem>>, %arg4: memref<25x64xf32, #tpu.memory_space<vmem>>, %arg5: memref<25x128xf32, #tpu.memory_space<vmem>>, %arg6: memref<2x64xf32, #tpu.memory_space<vmem>>, %arg7: memref<2x128xf32, #tpu.memory_space<vmem>>, %arg8: memref<2x16x128xf32, #tpu.memory_space<vmem>>) attributes {dimension_semantics = [#tpu.dimension_semantics<arbitrary>], iteration_bounds = array<i64: 1>, scalar_prefetch = 0 : i64, scratch_operands = 0 : i64, tpu.core_type = #tpu.core_type<tc>, window_params = [{pipeline_mode = #tpu.pipeline_mode<synchronous>, transform_indices = @transform_0, window_bounds = array<i64: 2, 16, 128>}, {pipeline_mode = #tpu.pipeline_mode<synchronous>, transform_indices = @transform_1, window_bounds = array<i64: 128, 64>}, {pipeline_mode = #tpu.pipeline_mode<synchronous>, transform_indices = @transform_2, window_bounds = array<i64: 64, 128>}, {pipeline_mode = #tpu.pipeline_mode<synchronous>, transform_indices = @transform_3, window_bounds = array<i64: 25, 64>}, {pipeline_mode = #tpu.pipeline_mode<synchronous>, transform_indices = @transform_4, window_bounds = array<i64: 25, 128>}, {pipeline_mode = #tpu.pipeline_mode<synchronous>, transform_indices = @transform_5, window_bounds = array<i64: 2, 64>}, {pipeline_mode = #tpu.pipeline_mode<synchronous>, transform_indices = @transform_6, window_bounds = array<i64: 2, 128>}, {pipeline_mode = #tpu.pipeline_mode<synchronous>, transform_indices = @transform_7, window_bounds = array<i64: 2, 16, 128>}]} {
    %c0 = arith.constant 0 : index
    %c0_0 = arith.constant 0 : index
    %c0_1 = arith.constant 0 : index
    %0 = vector.load %arg1[%c0, %c0_0, %c0_1] : memref<2x16x128xf32, #tpu.memory_space<vmem>>, vector<2x16x128xf32>
    %c0_2 = arith.constant 0 : index
    %c0_3 = arith.constant 0 : index
    %1 = vector.load %arg4[%c0_2, %c0_3] : memref<25x64xf32, #tpu.memory_space<vmem>>, vector<25x64xf32>
    %c0_4 = arith.constant 0 : index
    %c0_5 = arith.constant 0 : index
    %2 = vector.load %arg5[%c0_4, %c0_5] : memref<25x128xf32, #tpu.memory_space<vmem>>, vector<25x128xf32>
    %c0_6 = arith.constant 0 : index
    %c0_7 = arith.constant 0 : index
    %3 = vector.load %arg6[%c0_6, %c0_7] : memref<2x64xf32, #tpu.memory_space<vmem>>, vector<2x64xf32>
    %c0_8 = arith.constant 0 : index
    %c0_9 = arith.constant 0 : index
    %4 = vector.load %arg7[%c0_8, %c0_9] : memref<2x128xf32, #tpu.memory_space<vmem>>, vector<2x128xf32>
    %c0_10 = arith.constant 0 : index
    %c0_11 = arith.constant 0 : index
    %5 = vector.load %arg3[%c0_10, %c0_11] : memref<64x128xf32, #tpu.memory_space<vmem>>, vector<64x128xf32>
    %6 = vector.shape_cast %0 : vector<2x16x128xf32> to vector<32x128xf32>
    %c0_12 = arith.constant 0 : index
    %c0_13 = arith.constant 0 : index
    %7 = vector.load %arg2[%c0_12, %c0_13] : memref<128x64xf32, #tpu.memory_space<vmem>>, vector<128x64xf32>
    %cst = arith.constant dense<0.000000e+00> : vector<32x64xf32>
    %8 = tpu.matmul %6, %7, %cst {dimension_numbers = #tpu.dot_dimension_numbers<[1], [0], [0], [1], [0, 0, 1, 1], [], []>} : vector<32x128xf32>, vector<128x64xf32>, vector<32x64xf32> -> vector<32x64xf32>
    %9 = vector.extract_strided_slice %3 {offsets = [0, 0], sizes = [1, 64], strides = [1, 1]} : vector<2x64xf32> to vector<1x64xf32>
    %10 = vector.shape_cast %9 : vector<1x64xf32> to vector<64xf32>
    %11 = vector.shape_cast %10 : vector<64xf32> to vector<1x64xf32>
    %12 = vector.broadcast %11 : vector<1x64xf32> to vector<32x64xf32>
    %13 = arith.addf %8, %12 : vector<32x64xf32>
    %cst_14 = arith.constant 0.000000e+00 : f32
    %14 = vector.broadcast %cst_14 : f32 to vector<32x64xf32>
    %15 = arith.maximumf %13, %14 : vector<32x64xf32>
    %16 = vector.extract_strided_slice %15 {offsets = [0, 0], sizes = [16, 64], strides = [1, 1]} : vector<32x64xf32> to vector<16x64xf32>
    %cst_15 = arith.constant 0.000000e+00 : f32
    %17 = vector.broadcast %cst_15 : f32 to vector<16x8xf32>
    %18 = tpu.concatenate %17, %16, %17 in 1 : vector<16x8xf32>, vector<16x64xf32>, vector<16x8xf32> -> vector<16x80xf32>
    %cst_16 = arith.constant 0.000000e+00 : f32
    %19 = vector.broadcast %cst_16 : f32 to vector<2x80xf32>
    %20 = tpu.concatenate %19, %18, %19 in 0 : vector<2x80xf32>, vector<16x80xf32>, vector<2x80xf32> -> vector<20x80xf32>
    %cst_17 = arith.constant 0.000000e+00 : f32
    %21 = vector.broadcast %cst_17 : f32 to vector<16x64xf32>
    %22 = vector.extract_strided_slice %20 {offsets = [0, 0], sizes = [20, 64], strides = [1, 1]} : vector<20x80xf32> to vector<20x64xf32>
    %23 = vector.extract_strided_slice %22 {offsets = [0, 0], sizes = [16, 64], strides = [1, 1]} : vector<20x64xf32> to vector<16x64xf32>
    %24 = vector.extract_strided_slice %1 {offsets = [0, 0], sizes = [1, 64], strides = [1, 1]} : vector<25x64xf32> to vector<1x64xf32>
    %25 = vector.shape_cast %24 : vector<1x64xf32> to vector<64xf32>
    %26 = vector.shape_cast %25 : vector<64xf32> to vector<1x64xf32>
    %27 = vector.broadcast %26 : vector<1x64xf32> to vector<16x64xf32>
    %28 = arith.mulf %23, %27 : vector<16x64xf32>
    %29 = arith.addf %21, %28 : vector<16x64xf32>
    %30 = vector.extract_strided_slice %22 {offsets = [1, 0], sizes = [16, 64], strides = [1, 1]} : vector<20x64xf32> to vector<16x64xf32>
    %31 = vector.extract_strided_slice %1 {offsets = [5, 0], sizes = [1, 64], strides = [1, 1]} : vector<25x64xf32> to vector<1x64xf32>
    %32 = vector.shape_cast %31 : vector<1x64xf32> to vector<64xf32>
    %33 = vector.shape_cast %32 : vector<64xf32> to vector<1x64xf32>
    %34 = vector.broadcast %33 : vector<1x64xf32> to vector<16x64xf32>
    %35 = arith.mulf %30, %34 : vector<16x64xf32>
    %36 = arith.addf %29, %35 : vector<16x64xf32>
    %37 = vector.extract_strided_slice %22 {offsets = [2, 0], sizes = [16, 64], strides = [1, 1]} : vector<20x64xf32> to vector<16x64xf32>
    %38 = vector.extract_strided_slice %1 {offsets = [10, 0], sizes = [1, 64], strides = [1, 1]} : vector<25x64xf32> to vector<1x64xf32>
    %39 = vector.shape_cast %38 : vector<1x64xf32> to vector<64xf32>
    %40 = vector.shape_cast %39 : vector<64xf32> to vector<1x64xf32>
    %41 = vector.broadcast %40 : vector<1x64xf32> to vector<16x64xf32>
    %42 = arith.mulf %37, %41 : vector<16x64xf32>
    %43 = arith.addf %36, %42 : vector<16x64xf32>
    %44 = vector.extract_strided_slice %22 {offsets = [3, 0], sizes = [16, 64], strides = [1, 1]} : vector<20x64xf32> to vector<16x64xf32>
    %45 = vector.extract_strided_slice %1 {offsets = [15, 0], sizes = [1, 64], strides = [1, 1]} : vector<25x64xf32> to vector<1x64xf32>
    %46 = vector.shape_cast %45 : vector<1x64xf32> to vector<64xf32>
    %47 = vector.shape_cast %46 : vector<64xf32> to vector<1x64xf32>
    %48 = vector.broadcast %47 : vector<1x64xf32> to vector<16x64xf32>
    %49 = arith.mulf %44, %48 : vector<16x64xf32>
    %50 = arith.addf %43, %49 : vector<16x64xf32>
    %51 = vector.extract_strided_slice %22 {offsets = [4, 0], sizes = [16, 64], strides = [1, 1]} : vector<20x64xf32> to vector<16x64xf32>
    %52 = vector.extract_strided_slice %1 {offsets = [20, 0], sizes = [1, 64], strides = [1, 1]} : vector<25x64xf32> to vector<1x64xf32>
    %53 = vector.shape_cast %52 : vector<1x64xf32> to vector<64xf32>
    %54 = vector.shape_cast %53 : vector<64xf32> to vector<1x64xf32>
    %55 = vector.broadcast %54 : vector<1x64xf32> to vector<16x64xf32>
    %56 = arith.mulf %51, %55 : vector<16x64xf32>
    %57 = arith.addf %50, %56 : vector<16x64xf32>
    %58 = vector.extract_strided_slice %20 {offsets = [0, 4], sizes = [20, 64], strides = [1, 1]} : vector<20x80xf32> to vector<20x64xf32>
    %59 = vector.extract_strided_slice %58 {offsets = [0, 0], sizes = [16, 64], strides = [1, 1]} : vector<20x64xf32> to vector<16x64xf32>
    %60 = vector.extract_strided_slice %1 {offsets = [1, 0], sizes = [1, 64], strides = [1, 1]} : vector<25x64xf32> to vector<1x64xf32>
    %61 = vector.shape_cast %60 : vector<1x64xf32> to vector<64xf32>
    %62 = vector.shape_cast %61 : vector<64xf32> to vector<1x64xf32>
    %63 = vector.broadcast %62 : vector<1x64xf32> to vector<16x64xf32>
    %64 = arith.mulf %59, %63 : vector<16x64xf32>
    %65 = arith.addf %57, %64 : vector<16x64xf32>
    %66 = vector.extract_strided_slice %58 {offsets = [1, 0], sizes = [16, 64], strides = [1, 1]} : vector<20x64xf32> to vector<16x64xf32>
    %67 = vector.extract_strided_slice %1 {offsets = [6, 0], sizes = [1, 64], strides = [1, 1]} : vector<25x64xf32> to vector<1x64xf32>
    %68 = vector.shape_cast %67 : vector<1x64xf32> to vector<64xf32>
    %69 = vector.shape_cast %68 : vector<64xf32> to vector<1x64xf32>
    %70 = vector.broadcast %69 : vector<1x64xf32> to vector<16x64xf32>
    %71 = arith.mulf %66, %70 : vector<16x64xf32>
    %72 = arith.addf %65, %71 : vector<16x64xf32>
    %73 = vector.extract_strided_slice %58 {offsets = [2, 0], sizes = [16, 64], strides = [1, 1]} : vector<20x64xf32> to vector<16x64xf32>
    %74 = vector.extract_strided_slice %1 {offsets = [11, 0], sizes = [1, 64], strides = [1, 1]} : vector<25x64xf32> to vector<1x64xf32>
    %75 = vector.shape_cast %74 : vector<1x64xf32> to vector<64xf32>
    %76 = vector.shape_cast %75 : vector<64xf32> to vector<1x64xf32>
    %77 = vector.broadcast %76 : vector<1x64xf32> to vector<16x64xf32>
    %78 = arith.mulf %73, %77 : vector<16x64xf32>
    %79 = arith.addf %72, %78 : vector<16x64xf32>
    %80 = vector.extract_strided_slice %58 {offsets = [3, 0], sizes = [16, 64], strides = [1, 1]} : vector<20x64xf32> to vector<16x64xf32>
    %81 = vector.extract_strided_slice %1 {offsets = [16, 0], sizes = [1, 64], strides = [1, 1]} : vector<25x64xf32> to vector<1x64xf32>
    %82 = vector.shape_cast %81 : vector<1x64xf32> to vector<64xf32>
    %83 = vector.shape_cast %82 : vector<64xf32> to vector<1x64xf32>
    %84 = vector.broadcast %83 : vector<1x64xf32> to vector<16x64xf32>
    %85 = arith.mulf %80, %84 : vector<16x64xf32>
    %86 = arith.addf %79, %85 : vector<16x64xf32>
    %87 = vector.extract_strided_slice %58 {offsets = [4, 0], sizes = [16, 64], strides = [1, 1]} : vector<20x64xf32> to vector<16x64xf32>
    %88 = vector.extract_strided_slice %1 {offsets = [21, 0], sizes = [1, 64], strides = [1, 1]} : vector<25x64xf32> to vector<1x64xf32>
    %89 = vector.shape_cast %88 : vector<1x64xf32> to vector<64xf32>
    %90 = vector.shape_cast %89 : vector<64xf32> to vector<1x64xf32>
    %91 = vector.broadcast %90 : vector<1x64xf32> to vector<16x64xf32>
    %92 = arith.mulf %87, %91 : vector<16x64xf32>
    %93 = arith.addf %86, %92 : vector<16x64xf32>
    %94 = vector.extract_strided_slice %20 {offsets = [0, 8], sizes = [20, 64], strides = [1, 1]} : vector<20x80xf32> to vector<20x64xf32>
    %95 = vector.extract_strided_slice %94 {offsets = [0, 0], sizes = [16, 64], strides = [1, 1]} : vector<20x64xf32> to vector<16x64xf32>
    %96 = vector.extract_strided_slice %1 {offsets = [2, 0], sizes = [1, 64], strides = [1, 1]} : vector<25x64xf32> to vector<1x64xf32>
    %97 = vector.shape_cast %96 : vector<1x64xf32> to vector<64xf32>
    %98 = vector.shape_cast %97 : vector<64xf32> to vector<1x64xf32>
    %99 = vector.broadcast %98 : vector<1x64xf32> to vector<16x64xf32>
    %100 = arith.mulf %95, %99 : vector<16x64xf32>
    %101 = arith.addf %93, %100 : vector<16x64xf32>
    %102 = vector.extract_strided_slice %94 {offsets = [1, 0], sizes = [16, 64], strides = [1, 1]} : vector<20x64xf32> to vector<16x64xf32>
    %103 = vector.extract_strided_slice %1 {offsets = [7, 0], sizes = [1, 64], strides = [1, 1]} : vector<25x64xf32> to vector<1x64xf32>
    %104 = vector.shape_cast %103 : vector<1x64xf32> to vector<64xf32>
    %105 = vector.shape_cast %104 : vector<64xf32> to vector<1x64xf32>
    %106 = vector.broadcast %105 : vector<1x64xf32> to vector<16x64xf32>
    %107 = arith.mulf %102, %106 : vector<16x64xf32>
    %108 = arith.addf %101, %107 : vector<16x64xf32>
    %109 = vector.extract_strided_slice %94 {offsets = [2, 0], sizes = [16, 64], strides = [1, 1]} : vector<20x64xf32> to vector<16x64xf32>
    %110 = vector.extract_strided_slice %1 {offsets = [12, 0], sizes = [1, 64], strides = [1, 1]} : vector<25x64xf32> to vector<1x64xf32>
    %111 = vector.shape_cast %110 : vector<1x64xf32> to vector<64xf32>
    %112 = vector.shape_cast %111 : vector<64xf32> to vector<1x64xf32>
    %113 = vector.broadcast %112 : vector<1x64xf32> to vector<16x64xf32>
    %114 = arith.mulf %109, %113 : vector<16x64xf32>
    %115 = arith.addf %108, %114 : vector<16x64xf32>
    %116 = vector.extract_strided_slice %94 {offsets = [3, 0], sizes = [16, 64], strides = [1, 1]} : vector<20x64xf32> to vector<16x64xf32>
    %117 = vector.extract_strided_slice %1 {offsets = [17, 0], sizes = [1, 64], strides = [1, 1]} : vector<25x64xf32> to vector<1x64xf32>
    %118 = vector.shape_cast %117 : vector<1x64xf32> to vector<64xf32>
    %119 = vector.shape_cast %118 : vector<64xf32> to vector<1x64xf32>
    %120 = vector.broadcast %119 : vector<1x64xf32> to vector<16x64xf32>
    %121 = arith.mulf %116, %120 : vector<16x64xf32>
    %122 = arith.addf %115, %121 : vector<16x64xf32>
    %123 = vector.extract_strided_slice %94 {offsets = [4, 0], sizes = [16, 64], strides = [1, 1]} : vector<20x64xf32> to vector<16x64xf32>
    %124 = vector.extract_strided_slice %1 {offsets = [22, 0], sizes = [1, 64], strides = [1, 1]} : vector<25x64xf32> to vector<1x64xf32>
    %125 = vector.shape_cast %124 : vector<1x64xf32> to vector<64xf32>
    %126 = vector.shape_cast %125 : vector<64xf32> to vector<1x64xf32>
    %127 = vector.broadcast %126 : vector<1x64xf32> to vector<16x64xf32>
    %128 = arith.mulf %123, %127 : vector<16x64xf32>
    %129 = arith.addf %122, %128 : vector<16x64xf32>
    %130 = vector.extract_strided_slice %20 {offsets = [0, 12], sizes = [20, 64], strides = [1, 1]} : vector<20x80xf32> to vector<20x64xf32>
    %131 = vector.extract_strided_slice %130 {offsets = [0, 0], sizes = [16, 64], strides = [1, 1]} : vector<20x64xf32> to vector<16x64xf32>
    %132 = vector.extract_strided_slice %1 {offsets = [3, 0], sizes = [1, 64], strides = [1, 1]} : vector<25x64xf32> to vector<1x64xf32>
    %133 = vector.shape_cast %132 : vector<1x64xf32> to vector<64xf32>
    %134 = vector.shape_cast %133 : vector<64xf32> to vector<1x64xf32>
    %135 = vector.broadcast %134 : vector<1x64xf32> to vector<16x64xf32>
    %136 = arith.mulf %131, %135 : vector<16x64xf32>
    %137 = arith.addf %129, %136 : vector<16x64xf32>
    %138 = vector.extract_strided_slice %130 {offsets = [1, 0], sizes = [16, 64], strides = [1, 1]} : vector<20x64xf32> to vector<16x64xf32>
    %139 = vector.extract_strided_slice %1 {offsets = [8, 0], sizes = [1, 64], strides = [1, 1]} : vector<25x64xf32> to vector<1x64xf32>
    %140 = vector.shape_cast %139 : vector<1x64xf32> to vector<64xf32>
    %141 = vector.shape_cast %140 : vector<64xf32> to vector<1x64xf32>
    %142 = vector.broadcast %141 : vector<1x64xf32> to vector<16x64xf32>
    %143 = arith.mulf %138, %142 : vector<16x64xf32>
    %144 = arith.addf %137, %143 : vector<16x64xf32>
    %145 = vector.extract_strided_slice %130 {offsets = [2, 0], sizes = [16, 64], strides = [1, 1]} : vector<20x64xf32> to vector<16x64xf32>
    %146 = vector.extract_strided_slice %1 {offsets = [13, 0], sizes = [1, 64], strides = [1, 1]} : vector<25x64xf32> to vector<1x64xf32>
    %147 = vector.shape_cast %146 : vector<1x64xf32> to vector<64xf32>
    %148 = vector.shape_cast %147 : vector<64xf32> to vector<1x64xf32>
    %149 = vector.broadcast %148 : vector<1x64xf32> to vector<16x64xf32>
    %150 = arith.mulf %145, %149 : vector<16x64xf32>
    %151 = arith.addf %144, %150 : vector<16x64xf32>
    %152 = vector.extract_strided_slice %130 {offsets = [3, 0], sizes = [16, 64], strides = [1, 1]} : vector<20x64xf32> to vector<16x64xf32>
    %153 = vector.extract_strided_slice %1 {offsets = [18, 0], sizes = [1, 64], strides = [1, 1]} : vector<25x64xf32> to vector<1x64xf32>
    %154 = vector.shape_cast %153 : vector<1x64xf32> to vector<64xf32>
    %155 = vector.shape_cast %154 : vector<64xf32> to vector<1x64xf32>
    %156 = vector.broadcast %155 : vector<1x64xf32> to vector<16x64xf32>
    %157 = arith.mulf %152, %156 : vector<16x64xf32>
    %158 = arith.addf %151, %157 : vector<16x64xf32>
    %159 = vector.extract_strided_slice %130 {offsets = [4, 0], sizes = [16, 64], strides = [1, 1]} : vector<20x64xf32> to vector<16x64xf32>
    %160 = vector.extract_strided_slice %1 {offsets = [23, 0], sizes = [1, 64], strides = [1, 1]} : vector<25x64xf32> to vector<1x64xf32>
    %161 = vector.shape_cast %160 : vector<1x64xf32> to vector<64xf32>
    %162 = vector.shape_cast %161 : vector<64xf32> to vector<1x64xf32>
    %163 = vector.broadcast %162 : vector<1x64xf32> to vector<16x64xf32>
    %164 = arith.mulf %159, %163 : vector<16x64xf32>
    %165 = arith.addf %158, %164 : vector<16x64xf32>
    %166 = vector.extract_strided_slice %20 {offsets = [0, 16], sizes = [20, 64], strides = [1, 1]} : vector<20x80xf32> to vector<20x64xf32>
    %167 = vector.extract_strided_slice %166 {offsets = [0, 0], sizes = [16, 64], strides = [1, 1]} : vector<20x64xf32> to vector<16x64xf32>
    %168 = vector.extract_strided_slice %1 {offsets = [4, 0], sizes = [1, 64], strides = [1, 1]} : vector<25x64xf32> to vector<1x64xf32>
    %169 = vector.shape_cast %168 : vector<1x64xf32> to vector<64xf32>
    %170 = vector.shape_cast %169 : vector<64xf32> to vector<1x64xf32>
    %171 = vector.broadcast %170 : vector<1x64xf32> to vector<16x64xf32>
    %172 = arith.mulf %167, %171 : vector<16x64xf32>
    %173 = arith.addf %165, %172 : vector<16x64xf32>
    %174 = vector.extract_strided_slice %166 {offsets = [1, 0], sizes = [16, 64], strides = [1, 1]} : vector<20x64xf32> to vector<16x64xf32>
    %175 = vector.extract_strided_slice %1 {offsets = [9, 0], sizes = [1, 64], strides = [1, 1]} : vector<25x64xf32> to vector<1x64xf32>
    %176 = vector.shape_cast %175 : vector<1x64xf32> to vector<64xf32>
    %177 = vector.shape_cast %176 : vector<64xf32> to vector<1x64xf32>
    %178 = vector.broadcast %177 : vector<1x64xf32> to vector<16x64xf32>
    %179 = arith.mulf %174, %178 : vector<16x64xf32>
    %180 = arith.addf %173, %179 : vector<16x64xf32>
    %181 = vector.extract_strided_slice %166 {offsets = [2, 0], sizes = [16, 64], strides = [1, 1]} : vector<20x64xf32> to vector<16x64xf32>
    %182 = vector.extract_strided_slice %1 {offsets = [14, 0], sizes = [1, 64], strides = [1, 1]} : vector<25x64xf32> to vector<1x64xf32>
    %183 = vector.shape_cast %182 : vector<1x64xf32> to vector<64xf32>
    %184 = vector.shape_cast %183 : vector<64xf32> to vector<1x64xf32>
    %185 = vector.broadcast %184 : vector<1x64xf32> to vector<16x64xf32>
    %186 = arith.mulf %181, %185 : vector<16x64xf32>
    %187 = arith.addf %180, %186 : vector<16x64xf32>
    %188 = vector.extract_strided_slice %166 {offsets = [3, 0], sizes = [16, 64], strides = [1, 1]} : vector<20x64xf32> to vector<16x64xf32>
    %189 = vector.extract_strided_slice %1 {offsets = [19, 0], sizes = [1, 64], strides = [1, 1]} : vector<25x64xf32> to vector<1x64xf32>
    %190 = vector.shape_cast %189 : vector<1x64xf32> to vector<64xf32>
    %191 = vector.shape_cast %190 : vector<64xf32> to vector<1x64xf32>
    %192 = vector.broadcast %191 : vector<1x64xf32> to vector<16x64xf32>
    %193 = arith.mulf %188, %192 : vector<16x64xf32>
    %194 = arith.addf %187, %193 : vector<16x64xf32>
    %195 = vector.extract_strided_slice %166 {offsets = [4, 0], sizes = [16, 64], strides = [1, 1]} : vector<20x64xf32> to vector<16x64xf32>
    %196 = vector.extract_strided_slice %1 {offsets = [24, 0], sizes = [1, 64], strides = [1, 1]} : vector<25x64xf32> to vector<1x64xf32>
    %197 = vector.shape_cast %196 : vector<1x64xf32> to vector<64xf32>
    %198 = vector.shape_cast %197 : vector<64xf32> to vector<1x64xf32>
    %199 = vector.broadcast %198 : vector<1x64xf32> to vector<16x64xf32>
    %200 = arith.mulf %195, %199 : vector<16x64xf32>
    %201 = arith.addf %194, %200 : vector<16x64xf32>
    %202 = vector.extract_strided_slice %3 {offsets = [1, 0], sizes = [1, 64], strides = [1, 1]} : vector<2x64xf32> to vector<1x64xf32>
    %203 = vector.shape_cast %202 : vector<1x64xf32> to vector<64xf32>
    %204 = vector.shape_cast %203 : vector<64xf32> to vector<1x64xf32>
    %205 = vector.broadcast %204 : vector<1x64xf32> to vector<16x64xf32>
    %206 = arith.addf %201, %205 : vector<16x64xf32>
    %cst_18 = arith.constant 0.000000e+00 : f32
    %207 = vector.broadcast %cst_18 : f32 to vector<16x64xf32>
    %208 = arith.maximumf %206, %207 : vector<16x64xf32>
    %cst_19 = arith.constant 0.000000e+00 : f32
    %209 = vector.broadcast %cst_19 : f32 to vector<16x2xf32>
    %210 = vector.extract_strided_slice %208 {offsets = [0, 0], sizes = [16, 62], strides = [1, 1]} : vector<16x64xf32> to vector<16x62xf32>
    %211 = tpu.concatenate %209, %210 in 1 : vector<16x2xf32>, vector<16x62xf32> -> vector<16x64xf32>
    %212 = arith.addf %16, %211 : vector<16x64xf32>
    %cst_20 = arith.constant dense<0.000000e+00> : vector<16x128xf32>
    %213 = tpu.matmul %212, %5, %cst_20 {dimension_numbers = #tpu.dot_dimension_numbers<[1], [0], [0], [1], [0, 0, 1, 1], [], []>} : vector<16x64xf32>, vector<64x128xf32>, vector<16x128xf32> -> vector<16x128xf32>
    %214 = vector.extract_strided_slice %4 {offsets = [0, 0], sizes = [1, 128], strides = [1, 1]} : vector<2x128xf32> to vector<1x128xf32>
    %215 = vector.shape_cast %214 : vector<1x128xf32> to vector<128xf32>
    %216 = vector.shape_cast %215 : vector<128xf32> to vector<1x128xf32>
    %217 = vector.broadcast %216 : vector<1x128xf32> to vector<16x128xf32>
    %218 = arith.addf %213, %217 : vector<16x128xf32>
    %cst_21 = arith.constant 0.000000e+00 : f32
    %219 = vector.broadcast %cst_21 : f32 to vector<16x16xf32>
    %220 = tpu.concatenate %219, %218, %219 in 1 : vector<16x16xf32>, vector<16x128xf32>, vector<16x16xf32> -> vector<16x160xf32>
    %cst_22 = arith.constant 0.000000e+00 : f32
    %221 = vector.broadcast %cst_22 : f32 to vector<2x160xf32>
    %222 = tpu.concatenate %221, %220, %221 in 0 : vector<2x160xf32>, vector<16x160xf32>, vector<2x160xf32> -> vector<20x160xf32>
    %cst_23 = arith.constant 0.000000e+00 : f32
    %223 = vector.broadcast %cst_23 : f32 to vector<16x128xf32>
    %224 = vector.extract_strided_slice %222 {offsets = [0, 0], sizes = [20, 128], strides = [1, 1]} : vector<20x160xf32> to vector<20x128xf32>
    %225 = vector.extract_strided_slice %224 {offsets = [0, 0], sizes = [16, 128], strides = [1, 1]} : vector<20x128xf32> to vector<16x128xf32>
    %226 = vector.extract_strided_slice %2 {offsets = [0, 0], sizes = [1, 128], strides = [1, 1]} : vector<25x128xf32> to vector<1x128xf32>
    %227 = vector.shape_cast %226 : vector<1x128xf32> to vector<128xf32>
    %228 = vector.shape_cast %227 : vector<128xf32> to vector<1x128xf32>
    %229 = vector.broadcast %228 : vector<1x128xf32> to vector<16x128xf32>
    %230 = arith.mulf %225, %229 : vector<16x128xf32>
    %231 = arith.addf %223, %230 : vector<16x128xf32>
    %232 = vector.extract_strided_slice %224 {offsets = [1, 0], sizes = [16, 128], strides = [1, 1]} : vector<20x128xf32> to vector<16x128xf32>
    %233 = vector.extract_strided_slice %2 {offsets = [5, 0], sizes = [1, 128], strides = [1, 1]} : vector<25x128xf32> to vector<1x128xf32>
    %234 = vector.shape_cast %233 : vector<1x128xf32> to vector<128xf32>
    %235 = vector.shape_cast %234 : vector<128xf32> to vector<1x128xf32>
    %236 = vector.broadcast %235 : vector<1x128xf32> to vector<16x128xf32>
    %237 = arith.mulf %232, %236 : vector<16x128xf32>
    %238 = arith.addf %231, %237 : vector<16x128xf32>
    %239 = vector.extract_strided_slice %224 {offsets = [2, 0], sizes = [16, 128], strides = [1, 1]} : vector<20x128xf32> to vector<16x128xf32>
    %240 = vector.extract_strided_slice %2 {offsets = [10, 0], sizes = [1, 128], strides = [1, 1]} : vector<25x128xf32> to vector<1x128xf32>
    %241 = vector.shape_cast %240 : vector<1x128xf32> to vector<128xf32>
    %242 = vector.shape_cast %241 : vector<128xf32> to vector<1x128xf32>
    %243 = vector.broadcast %242 : vector<1x128xf32> to vector<16x128xf32>
    %244 = arith.mulf %239, %243 : vector<16x128xf32>
    %245 = arith.addf %238, %244 : vector<16x128xf32>
    %246 = vector.extract_strided_slice %224 {offsets = [3, 0], sizes = [16, 128], strides = [1, 1]} : vector<20x128xf32> to vector<16x128xf32>
    %247 = vector.extract_strided_slice %2 {offsets = [15, 0], sizes = [1, 128], strides = [1, 1]} : vector<25x128xf32> to vector<1x128xf32>
    %248 = vector.shape_cast %247 : vector<1x128xf32> to vector<128xf32>
    %249 = vector.shape_cast %248 : vector<128xf32> to vector<1x128xf32>
    %250 = vector.broadcast %249 : vector<1x128xf32> to vector<16x128xf32>
    %251 = arith.mulf %246, %250 : vector<16x128xf32>
    %252 = arith.addf %245, %251 : vector<16x128xf32>
    %253 = vector.extract_strided_slice %224 {offsets = [4, 0], sizes = [16, 128], strides = [1, 1]} : vector<20x128xf32> to vector<16x128xf32>
    %254 = vector.extract_strided_slice %2 {offsets = [20, 0], sizes = [1, 128], strides = [1, 1]} : vector<25x128xf32> to vector<1x128xf32>
    %255 = vector.shape_cast %254 : vector<1x128xf32> to vector<128xf32>
    %256 = vector.shape_cast %255 : vector<128xf32> to vector<1x128xf32>
    %257 = vector.broadcast %256 : vector<1x128xf32> to vector<16x128xf32>
    %258 = arith.mulf %253, %257 : vector<16x128xf32>
    %259 = arith.addf %252, %258 : vector<16x128xf32>
    %260 = vector.extract_strided_slice %222 {offsets = [0, 8], sizes = [20, 128], strides = [1, 1]} : vector<20x160xf32> to vector<20x128xf32>
    %261 = vector.extract_strided_slice %260 {offsets = [0, 0], sizes = [16, 128], strides = [1, 1]} : vector<20x128xf32> to vector<16x128xf32>
    %262 = vector.extract_strided_slice %2 {offsets = [1, 0], sizes = [1, 128], strides = [1, 1]} : vector<25x128xf32> to vector<1x128xf32>
    %263 = vector.shape_cast %262 : vector<1x128xf32> to vector<128xf32>
    %264 = vector.shape_cast %263 : vector<128xf32> to vector<1x128xf32>
    %265 = vector.broadcast %264 : vector<1x128xf32> to vector<16x128xf32>
    %266 = arith.mulf %261, %265 : vector<16x128xf32>
    %267 = arith.addf %259, %266 : vector<16x128xf32>
    %268 = vector.extract_strided_slice %260 {offsets = [1, 0], sizes = [16, 128], strides = [1, 1]} : vector<20x128xf32> to vector<16x128xf32>
    %269 = vector.extract_strided_slice %2 {offsets = [6, 0], sizes = [1, 128], strides = [1, 1]} : vector<25x128xf32> to vector<1x128xf32>
    %270 = vector.shape_cast %269 : vector<1x128xf32> to vector<128xf32>
    %271 = vector.shape_cast %270 : vector<128xf32> to vector<1x128xf32>
    %272 = vector.broadcast %271 : vector<1x128xf32> to vector<16x128xf32>
    %273 = arith.mulf %268, %272 : vector<16x128xf32>
    %274 = arith.addf %267, %273 : vector<16x128xf32>
    %275 = vector.extract_strided_slice %260 {offsets = [2, 0], sizes = [16, 128], strides = [1, 1]} : vector<20x128xf32> to vector<16x128xf32>
    %276 = vector.extract_strided_slice %2 {offsets = [11, 0], sizes = [1, 128], strides = [1, 1]} : vector<25x128xf32> to vector<1x128xf32>
    %277 = vector.shape_cast %276 : vector<1x128xf32> to vector<128xf32>
    %278 = vector.shape_cast %277 : vector<128xf32> to vector<1x128xf32>
    %279 = vector.broadcast %278 : vector<1x128xf32> to vector<16x128xf32>
    %280 = arith.mulf %275, %279 : vector<16x128xf32>
    %281 = arith.addf %274, %280 : vector<16x128xf32>
    %282 = vector.extract_strided_slice %260 {offsets = [3, 0], sizes = [16, 128], strides = [1, 1]} : vector<20x128xf32> to vector<16x128xf32>
    %283 = vector.extract_strided_slice %2 {offsets = [16, 0], sizes = [1, 128], strides = [1, 1]} : vector<25x128xf32> to vector<1x128xf32>
    %284 = vector.shape_cast %283 : vector<1x128xf32> to vector<128xf32>
    %285 = vector.shape_cast %284 : vector<128xf32> to vector<1x128xf32>
    %286 = vector.broadcast %285 : vector<1x128xf32> to vector<16x128xf32>
    %287 = arith.mulf %282, %286 : vector<16x128xf32>
    %288 = arith.addf %281, %287 : vector<16x128xf32>
    %289 = vector.extract_strided_slice %260 {offsets = [4, 0], sizes = [16, 128], strides = [1, 1]} : vector<20x128xf32> to vector<16x128xf32>
    %290 = vector.extract_strided_slice %2 {offsets = [21, 0], sizes = [1, 128], strides = [1, 1]} : vector<25x128xf32> to vector<1x128xf32>
    %291 = vector.shape_cast %290 : vector<1x128xf32> to vector<128xf32>
    %292 = vector.shape_cast %291 : vector<128xf32> to vector<1x128xf32>
    %293 = vector.broadcast %292 : vector<1x128xf32> to vector<16x128xf32>
    %294 = arith.mulf %289, %293 : vector<16x128xf32>
    %295 = arith.addf %288, %294 : vector<16x128xf32>
    %296 = vector.extract_strided_slice %222 {offsets = [0, 16], sizes = [20, 128], strides = [1, 1]} : vector<20x160xf32> to vector<20x128xf32>
    %297 = vector.extract_strided_slice %296 {offsets = [0, 0], sizes = [16, 128], strides = [1, 1]} : vector<20x128xf32> to vector<16x128xf32>
    %298 = vector.extract_strided_slice %2 {offsets = [2, 0], sizes = [1, 128], strides = [1, 1]} : vector<25x128xf32> to vector<1x128xf32>
    %299 = vector.shape_cast %298 : vector<1x128xf32> to vector<128xf32>
    %300 = vector.shape_cast %299 : vector<128xf32> to vector<1x128xf32>
    %301 = vector.broadcast %300 : vector<1x128xf32> to vector<16x128xf32>
    %302 = arith.mulf %297, %301 : vector<16x128xf32>
    %303 = arith.addf %295, %302 : vector<16x128xf32>
    %304 = vector.extract_strided_slice %296 {offsets = [1, 0], sizes = [16, 128], strides = [1, 1]} : vector<20x128xf32> to vector<16x128xf32>
    %305 = vector.extract_strided_slice %2 {offsets = [7, 0], sizes = [1, 128], strides = [1, 1]} : vector<25x128xf32> to vector<1x128xf32>
    %306 = vector.shape_cast %305 : vector<1x128xf32> to vector<128xf32>
    %307 = vector.shape_cast %306 : vector<128xf32> to vector<1x128xf32>
    %308 = vector.broadcast %307 : vector<1x128xf32> to vector<16x128xf32>
    %309 = arith.mulf %304, %308 : vector<16x128xf32>
    %310 = arith.addf %303, %309 : vector<16x128xf32>
    %311 = vector.extract_strided_slice %296 {offsets = [2, 0], sizes = [16, 128], strides = [1, 1]} : vector<20x128xf32> to vector<16x128xf32>
    %312 = vector.extract_strided_slice %2 {offsets = [12, 0], sizes = [1, 128], strides = [1, 1]} : vector<25x128xf32> to vector<1x128xf32>
    %313 = vector.shape_cast %312 : vector<1x128xf32> to vector<128xf32>
    %314 = vector.shape_cast %313 : vector<128xf32> to vector<1x128xf32>
    %315 = vector.broadcast %314 : vector<1x128xf32> to vector<16x128xf32>
    %316 = arith.mulf %311, %315 : vector<16x128xf32>
    %317 = arith.addf %310, %316 : vector<16x128xf32>
    %318 = vector.extract_strided_slice %296 {offsets = [3, 0], sizes = [16, 128], strides = [1, 1]} : vector<20x128xf32> to vector<16x128xf32>
    %319 = vector.extract_strided_slice %2 {offsets = [17, 0], sizes = [1, 128], strides = [1, 1]} : vector<25x128xf32> to vector<1x128xf32>
    %320 = vector.shape_cast %319 : vector<1x128xf32> to vector<128xf32>
    %321 = vector.shape_cast %320 : vector<128xf32> to vector<1x128xf32>
    %322 = vector.broadcast %321 : vector<1x128xf32> to vector<16x128xf32>
    %323 = arith.mulf %318, %322 : vector<16x128xf32>
    %324 = arith.addf %317, %323 : vector<16x128xf32>
    %325 = vector.extract_strided_slice %296 {offsets = [4, 0], sizes = [16, 128], strides = [1, 1]} : vector<20x128xf32> to vector<16x128xf32>
    %326 = vector.extract_strided_slice %2 {offsets = [22, 0], sizes = [1, 128], strides = [1, 1]} : vector<25x128xf32> to vector<1x128xf32>
    %327 = vector.shape_cast %326 : vector<1x128xf32> to vector<128xf32>
    %328 = vector.shape_cast %327 : vector<128xf32> to vector<1x128xf32>
    %329 = vector.broadcast %328 : vector<1x128xf32> to vector<16x128xf32>
    %330 = arith.mulf %325, %329 : vector<16x128xf32>
    %331 = arith.addf %324, %330 : vector<16x128xf32>
    %332 = vector.extract_strided_slice %222 {offsets = [0, 24], sizes = [20, 128], strides = [1, 1]} : vector<20x160xf32> to vector<20x128xf32>
    %333 = vector.extract_strided_slice %332 {offsets = [0, 0], sizes = [16, 128], strides = [1, 1]} : vector<20x128xf32> to vector<16x128xf32>
    %334 = vector.extract_strided_slice %2 {offsets = [3, 0], sizes = [1, 128], strides = [1, 1]} : vector<25x128xf32> to vector<1x128xf32>
    %335 = vector.shape_cast %334 : vector<1x128xf32> to vector<128xf32>
    %336 = vector.shape_cast %335 : vector<128xf32> to vector<1x128xf32>
    %337 = vector.broadcast %336 : vector<1x128xf32> to vector<16x128xf32>
    %338 = arith.mulf %333, %337 : vector<16x128xf32>
    %339 = arith.addf %331, %338 : vector<16x128xf32>
    %340 = vector.extract_strided_slice %332 {offsets = [1, 0], sizes = [16, 128], strides = [1, 1]} : vector<20x128xf32> to vector<16x128xf32>
    %341 = vector.extract_strided_slice %2 {offsets = [8, 0], sizes = [1, 128], strides = [1, 1]} : vector<25x128xf32> to vector<1x128xf32>
    %342 = vector.shape_cast %341 : vector<1x128xf32> to vector<128xf32>
    %343 = vector.shape_cast %342 : vector<128xf32> to vector<1x128xf32>
    %344 = vector.broadcast %343 : vector<1x128xf32> to vector<16x128xf32>
    %345 = arith.mulf %340, %344 : vector<16x128xf32>
    %346 = arith.addf %339, %345 : vector<16x128xf32>
    %347 = vector.extract_strided_slice %332 {offsets = [2, 0], sizes = [16, 128], strides = [1, 1]} : vector<20x128xf32> to vector<16x128xf32>
    %348 = vector.extract_strided_slice %2 {offsets = [13, 0], sizes = [1, 128], strides = [1, 1]} : vector<25x128xf32> to vector<1x128xf32>
    %349 = vector.shape_cast %348 : vector<1x128xf32> to vector<128xf32>
    %350 = vector.shape_cast %349 : vector<128xf32> to vector<1x128xf32>
    %351 = vector.broadcast %350 : vector<1x128xf32> to vector<16x128xf32>
    %352 = arith.mulf %347, %351 : vector<16x128xf32>
    %353 = arith.addf %346, %352 : vector<16x128xf32>
    %354 = vector.extract_strided_slice %332 {offsets = [3, 0], sizes = [16, 128], strides = [1, 1]} : vector<20x128xf32> to vector<16x128xf32>
    %355 = vector.extract_strided_slice %2 {offsets = [18, 0], sizes = [1, 128], strides = [1, 1]} : vector<25x128xf32> to vector<1x128xf32>
    %356 = vector.shape_cast %355 : vector<1x128xf32> to vector<128xf32>
    %357 = vector.shape_cast %356 : vector<128xf32> to vector<1x128xf32>
    %358 = vector.broadcast %357 : vector<1x128xf32> to vector<16x128xf32>
    %359 = arith.mulf %354, %358 : vector<16x128xf32>
    %360 = arith.addf %353, %359 : vector<16x128xf32>
    %361 = vector.extract_strided_slice %332 {offsets = [4, 0], sizes = [16, 128], strides = [1, 1]} : vector<20x128xf32> to vector<16x128xf32>
    %362 = vector.extract_strided_slice %2 {offsets = [23, 0], sizes = [1, 128], strides = [1, 1]} : vector<25x128xf32> to vector<1x128xf32>
    %363 = vector.shape_cast %362 : vector<1x128xf32> to vector<128xf32>
    %364 = vector.shape_cast %363 : vector<128xf32> to vector<1x128xf32>
    %365 = vector.broadcast %364 : vector<1x128xf32> to vector<16x128xf32>
    %366 = arith.mulf %361, %365 : vector<16x128xf32>
    %367 = arith.addf %360, %366 : vector<16x128xf32>
    %368 = vector.extract_strided_slice %222 {offsets = [0, 32], sizes = [20, 128], strides = [1, 1]} : vector<20x160xf32> to vector<20x128xf32>
    %369 = vector.extract_strided_slice %368 {offsets = [0, 0], sizes = [16, 128], strides = [1, 1]} : vector<20x128xf32> to vector<16x128xf32>
    %370 = vector.extract_strided_slice %2 {offsets = [4, 0], sizes = [1, 128], strides = [1, 1]} : vector<25x128xf32> to vector<1x128xf32>
    %371 = vector.shape_cast %370 : vector<1x128xf32> to vector<128xf32>
    %372 = vector.shape_cast %371 : vector<128xf32> to vector<1x128xf32>
    %373 = vector.broadcast %372 : vector<1x128xf32> to vector<16x128xf32>
    %374 = arith.mulf %369, %373 : vector<16x128xf32>
    %375 = arith.addf %367, %374 : vector<16x128xf32>
    %376 = vector.extract_strided_slice %368 {offsets = [1, 0], sizes = [16, 128], strides = [1, 1]} : vector<20x128xf32> to vector<16x128xf32>
    %377 = vector.extract_strided_slice %2 {offsets = [9, 0], sizes = [1, 128], strides = [1, 1]} : vector<25x128xf32> to vector<1x128xf32>
    %378 = vector.shape_cast %377 : vector<1x128xf32> to vector<128xf32>
    %379 = vector.shape_cast %378 : vector<128xf32> to vector<1x128xf32>
    %380 = vector.broadcast %379 : vector<1x128xf32> to vector<16x128xf32>
    %381 = arith.mulf %376, %380 : vector<16x128xf32>
    %382 = arith.addf %375, %381 : vector<16x128xf32>
    %383 = vector.extract_strided_slice %368 {offsets = [2, 0], sizes = [16, 128], strides = [1, 1]} : vector<20x128xf32> to vector<16x128xf32>
    %384 = vector.extract_strided_slice %2 {offsets = [14, 0], sizes = [1, 128], strides = [1, 1]} : vector<25x128xf32> to vector<1x128xf32>
    %385 = vector.shape_cast %384 : vector<1x128xf32> to vector<128xf32>
    %386 = vector.shape_cast %385 : vector<128xf32> to vector<1x128xf32>
    %387 = vector.broadcast %386 : vector<1x128xf32> to vector<16x128xf32>
    %388 = arith.mulf %383, %387 : vector<16x128xf32>
    %389 = arith.addf %382, %388 : vector<16x128xf32>
    %390 = vector.extract_strided_slice %368 {offsets = [3, 0], sizes = [16, 128], strides = [1, 1]} : vector<20x128xf32> to vector<16x128xf32>
    %391 = vector.extract_strided_slice %2 {offsets = [19, 0], sizes = [1, 128], strides = [1, 1]} : vector<25x128xf32> to vector<1x128xf32>
    %392 = vector.shape_cast %391 : vector<1x128xf32> to vector<128xf32>
    %393 = vector.shape_cast %392 : vector<128xf32> to vector<1x128xf32>
    %394 = vector.broadcast %393 : vector<1x128xf32> to vector<16x128xf32>
    %395 = arith.mulf %390, %394 : vector<16x128xf32>
    %396 = arith.addf %389, %395 : vector<16x128xf32>
    %397 = vector.extract_strided_slice %368 {offsets = [4, 0], sizes = [16, 128], strides = [1, 1]} : vector<20x128xf32> to vector<16x128xf32>
    %398 = vector.extract_strided_slice %2 {offsets = [24, 0], sizes = [1, 128], strides = [1, 1]} : vector<25x128xf32> to vector<1x128xf32>
    %399 = vector.shape_cast %398 : vector<1x128xf32> to vector<128xf32>
    %400 = vector.shape_cast %399 : vector<128xf32> to vector<1x128xf32>
    %401 = vector.broadcast %400 : vector<1x128xf32> to vector<16x128xf32>
    %402 = arith.mulf %397, %401 : vector<16x128xf32>
    %403 = arith.addf %396, %402 : vector<16x128xf32>
    %404 = vector.extract_strided_slice %4 {offsets = [1, 0], sizes = [1, 128], strides = [1, 1]} : vector<2x128xf32> to vector<1x128xf32>
    %405 = vector.shape_cast %404 : vector<1x128xf32> to vector<128xf32>
    %406 = vector.shape_cast %405 : vector<128xf32> to vector<1x128xf32>
    %407 = vector.broadcast %406 : vector<1x128xf32> to vector<16x128xf32>
    %408 = arith.addf %403, %407 : vector<16x128xf32>
    %cst_24 = arith.constant 0.000000e+00 : f32
    %409 = vector.broadcast %cst_24 : f32 to vector<16x4xf32>
    %410 = vector.extract_strided_slice %408 {offsets = [0, 0], sizes = [16, 124], strides = [1, 1]} : vector<16x128xf32> to vector<16x124xf32>
    %411 = tpu.concatenate %409, %410 in 1 : vector<16x4xf32>, vector<16x124xf32> -> vector<16x128xf32>
    %412 = arith.addf %218, %411 : vector<16x128xf32>
    %413 = vector.extract_strided_slice %0 {offsets = [0, 0, 0], sizes = [1, 16, 128], strides = [1, 1, 1]} : vector<2x16x128xf32> to vector<1x16x128xf32>
    %414 = vector.shape_cast %413 : vector<1x16x128xf32> to vector<16x128xf32>
    %415 = arith.addf %412, %414 : vector<16x128xf32>
    %c0_25 = arith.constant 0 : index
    %c0_26 = arith.constant 0 : index
    %c0_27 = arith.constant 0 : index
    %416 = vector.load %arg8[%c0_25, %c0_26, %c0_27] : memref<2x16x128xf32, #tpu.memory_space<vmem>>, vector<1x16x128xf32>
    %417 = vector.shape_cast %416 : vector<1x16x128xf32> to vector<16x128xf32>
    %418 = vector.shape_cast %415 : vector<16x128xf32> to vector<1x16x128xf32>
    tpu.vector_store %arg8[%c0_25, %c0_26, %c0_27], %418 {strides = array<i32>} : memref<2x16x128xf32, #tpu.memory_space<vmem>>, vector<1x16x128xf32>,
    %419 = vector.extract_strided_slice %15 {offsets = [16, 0], sizes = [16, 64], strides = [1, 1]} : vector<32x64xf32> to vector<16x64xf32>
    %cst_28 = arith.constant 0.000000e+00 : f32
    %420 = vector.broadcast %cst_28 : f32 to vector<16x8xf32>
    %421 = tpu.concatenate %420, %419, %420 in 1 : vector<16x8xf32>, vector<16x64xf32>, vector<16x8xf32> -> vector<16x80xf32>
    %cst_29 = arith.constant 0.000000e+00 : f32
    %422 = vector.broadcast %cst_29 : f32 to vector<2x80xf32>
    %423 = tpu.concatenate %422, %421, %422 in 0 : vector<2x80xf32>, vector<16x80xf32>, vector<2x80xf32> -> vector<20x80xf32>
    %cst_30 = arith.constant 0.000000e+00 : f32
    %424 = vector.broadcast %cst_30 : f32 to vector<16x64xf32>
    %425 = vector.extract_strided_slice %423 {offsets = [0, 0], sizes = [20, 64], strides = [1, 1]} : vector<20x80xf32> to vector<20x64xf32>
    %426 = vector.extract_strided_slice %425 {offsets = [0, 0], sizes = [16, 64], strides = [1, 1]} : vector<20x64xf32> to vector<16x64xf32>
    %427 = vector.extract_strided_slice %1 {offsets = [0, 0], sizes = [1, 64], strides = [1, 1]} : vector<25x64xf32> to vector<1x64xf32>
    %428 = vector.shape_cast %427 : vector<1x64xf32> to vector<64xf32>
    %429 = vector.shape_cast %428 : vector<64xf32> to vector<1x64xf32>
    %430 = vector.broadcast %429 : vector<1x64xf32> to vector<16x64xf32>
    %431 = arith.mulf %426, %430 : vector<16x64xf32>
    %432 = arith.addf %424, %431 : vector<16x64xf32>
    %433 = vector.extract_strided_slice %425 {offsets = [1, 0], sizes = [16, 64], strides = [1, 1]} : vector<20x64xf32> to vector<16x64xf32>
    %434 = vector.extract_strided_slice %1 {offsets = [5, 0], sizes = [1, 64], strides = [1, 1]} : vector<25x64xf32> to vector<1x64xf32>
    %435 = vector.shape_cast %434 : vector<1x64xf32> to vector<64xf32>
    %436 = vector.shape_cast %435 : vector<64xf32> to vector<1x64xf32>
    %437 = vector.broadcast %436 : vector<1x64xf32> to vector<16x64xf32>
    %438 = arith.mulf %433, %437 : vector<16x64xf32>
    %439 = arith.addf %432, %438 : vector<16x64xf32>
    %440 = vector.extract_strided_slice %425 {offsets = [2, 0], sizes = [16, 64], strides = [1, 1]} : vector<20x64xf32> to vector<16x64xf32>
    %441 = vector.extract_strided_slice %1 {offsets = [10, 0], sizes = [1, 64], strides = [1, 1]} : vector<25x64xf32> to vector<1x64xf32>
    %442 = vector.shape_cast %441 : vector<1x64xf32> to vector<64xf32>
    %443 = vector.shape_cast %442 : vector<64xf32> to vector<1x64xf32>
    %444 = vector.broadcast %443 : vector<1x64xf32> to vector<16x64xf32>
    %445 = arith.mulf %440, %444 : vector<16x64xf32>
    %446 = arith.addf %439, %445 : vector<16x64xf32>
    %447 = vector.extract_strided_slice %425 {offsets = [3, 0], sizes = [16, 64], strides = [1, 1]} : vector<20x64xf32> to vector<16x64xf32>
    %448 = vector.extract_strided_slice %1 {offsets = [15, 0], sizes = [1, 64], strides = [1, 1]} : vector<25x64xf32> to vector<1x64xf32>
    %449 = vector.shape_cast %448 : vector<1x64xf32> to vector<64xf32>
    %450 = vector.shape_cast %449 : vector<64xf32> to vector<1x64xf32>
    %451 = vector.broadcast %450 : vector<1x64xf32> to vector<16x64xf32>
    %452 = arith.mulf %447, %451 : vector<16x64xf32>
    %453 = arith.addf %446, %452 : vector<16x64xf32>
    %454 = vector.extract_strided_slice %425 {offsets = [4, 0], sizes = [16, 64], strides = [1, 1]} : vector<20x64xf32> to vector<16x64xf32>
    %455 = vector.extract_strided_slice %1 {offsets = [20, 0], sizes = [1, 64], strides = [1, 1]} : vector<25x64xf32> to vector<1x64xf32>
    %456 = vector.shape_cast %455 : vector<1x64xf32> to vector<64xf32>
    %457 = vector.shape_cast %456 : vector<64xf32> to vector<1x64xf32>
    %458 = vector.broadcast %457 : vector<1x64xf32> to vector<16x64xf32>
    %459 = arith.mulf %454, %458 : vector<16x64xf32>
    %460 = arith.addf %453, %459 : vector<16x64xf32>
    %461 = vector.extract_strided_slice %423 {offsets = [0, 4], sizes = [20, 64], strides = [1, 1]} : vector<20x80xf32> to vector<20x64xf32>
    %462 = vector.extract_strided_slice %461 {offsets = [0, 0], sizes = [16, 64], strides = [1, 1]} : vector<20x64xf32> to vector<16x64xf32>
    %463 = vector.extract_strided_slice %1 {offsets = [1, 0], sizes = [1, 64], strides = [1, 1]} : vector<25x64xf32> to vector<1x64xf32>
    %464 = vector.shape_cast %463 : vector<1x64xf32> to vector<64xf32>
    %465 = vector.shape_cast %464 : vector<64xf32> to vector<1x64xf32>
    %466 = vector.broadcast %465 : vector<1x64xf32> to vector<16x64xf32>
    %467 = arith.mulf %462, %466 : vector<16x64xf32>
    %468 = arith.addf %460, %467 : vector<16x64xf32>
    %469 = vector.extract_strided_slice %461 {offsets = [1, 0], sizes = [16, 64], strides = [1, 1]} : vector<20x64xf32> to vector<16x64xf32>
    %470 = vector.extract_strided_slice %1 {offsets = [6, 0], sizes = [1, 64], strides = [1, 1]} : vector<25x64xf32> to vector<1x64xf32>
    %471 = vector.shape_cast %470 : vector<1x64xf32> to vector<64xf32>
    %472 = vector.shape_cast %471 : vector<64xf32> to vector<1x64xf32>
    %473 = vector.broadcast %472 : vector<1x64xf32> to vector<16x64xf32>
    %474 = arith.mulf %469, %473 : vector<16x64xf32>
    %475 = arith.addf %468, %474 : vector<16x64xf32>
    %476 = vector.extract_strided_slice %461 {offsets = [2, 0], sizes = [16, 64], strides = [1, 1]} : vector<20x64xf32> to vector<16x64xf32>
    %477 = vector.extract_strided_slice %1 {offsets = [11, 0], sizes = [1, 64], strides = [1, 1]} : vector<25x64xf32> to vector<1x64xf32>
    %478 = vector.shape_cast %477 : vector<1x64xf32> to vector<64xf32>
    %479 = vector.shape_cast %478 : vector<64xf32> to vector<1x64xf32>
    %480 = vector.broadcast %479 : vector<1x64xf32> to vector<16x64xf32>
    %481 = arith.mulf %476, %480 : vector<16x64xf32>
    %482 = arith.addf %475, %481 : vector<16x64xf32>
    %483 = vector.extract_strided_slice %461 {offsets = [3, 0], sizes = [16, 64], strides = [1, 1]} : vector<20x64xf32> to vector<16x64xf32>
    %484 = vector.extract_strided_slice %1 {offsets = [16, 0], sizes = [1, 64], strides = [1, 1]} : vector<25x64xf32> to vector<1x64xf32>
    %485 = vector.shape_cast %484 : vector<1x64xf32> to vector<64xf32>
    %486 = vector.shape_cast %485 : vector<64xf32> to vector<1x64xf32>
    %487 = vector.broadcast %486 : vector<1x64xf32> to vector<16x64xf32>
    %488 = arith.mulf %483, %487 : vector<16x64xf32>
    %489 = arith.addf %482, %488 : vector<16x64xf32>
    %490 = vector.extract_strided_slice %461 {offsets = [4, 0], sizes = [16, 64], strides = [1, 1]} : vector<20x64xf32> to vector<16x64xf32>
    %491 = vector.extract_strided_slice %1 {offsets = [21, 0], sizes = [1, 64], strides = [1, 1]} : vector<25x64xf32> to vector<1x64xf32>
    %492 = vector.shape_cast %491 : vector<1x64xf32> to vector<64xf32>
    %493 = vector.shape_cast %492 : vector<64xf32> to vector<1x64xf32>
    %494 = vector.broadcast %493 : vector<1x64xf32> to vector<16x64xf32>
    %495 = arith.mulf %490, %494 : vector<16x64xf32>
    %496 = arith.addf %489, %495 : vector<16x64xf32>
    %497 = vector.extract_strided_slice %423 {offsets = [0, 8], sizes = [20, 64], strides = [1, 1]} : vector<20x80xf32> to vector<20x64xf32>
    %498 = vector.extract_strided_slice %497 {offsets = [0, 0], sizes = [16, 64], strides = [1, 1]} : vector<20x64xf32> to vector<16x64xf32>
    %499 = vector.extract_strided_slice %1 {offsets = [2, 0], sizes = [1, 64], strides = [1, 1]} : vector<25x64xf32> to vector<1x64xf32>
    %500 = vector.shape_cast %499 : vector<1x64xf32> to vector<64xf32>
    %501 = vector.shape_cast %500 : vector<64xf32> to vector<1x64xf32>
    %502 = vector.broadcast %501 : vector<1x64xf32> to vector<16x64xf32>
    %503 = arith.mulf %498, %502 : vector<16x64xf32>
    %504 = arith.addf %496, %503 : vector<16x64xf32>
    %505 = vector.extract_strided_slice %497 {offsets = [1, 0], sizes = [16, 64], strides = [1, 1]} : vector<20x64xf32> to vector<16x64xf32>
    %506 = vector.extract_strided_slice %1 {offsets = [7, 0], sizes = [1, 64], strides = [1, 1]} : vector<25x64xf32> to vector<1x64xf32>
    %507 = vector.shape_cast %506 : vector<1x64xf32> to vector<64xf32>
    %508 = vector.shape_cast %507 : vector<64xf32> to vector<1x64xf32>
    %509 = vector.broadcast %508 : vector<1x64xf32> to vector<16x64xf32>
    %510 = arith.mulf %505, %509 : vector<16x64xf32>
    %511 = arith.addf %504, %510 : vector<16x64xf32>
    %512 = vector.extract_strided_slice %497 {offsets = [2, 0], sizes = [16, 64], strides = [1, 1]} : vector<20x64xf32> to vector<16x64xf32>
    %513 = vector.extract_strided_slice %1 {offsets = [12, 0], sizes = [1, 64], strides = [1, 1]} : vector<25x64xf32> to vector<1x64xf32>
    %514 = vector.shape_cast %513 : vector<1x64xf32> to vector<64xf32>
    %515 = vector.shape_cast %514 : vector<64xf32> to vector<1x64xf32>
    %516 = vector.broadcast %515 : vector<1x64xf32> to vector<16x64xf32>
    %517 = arith.mulf %512, %516 : vector<16x64xf32>
    %518 = arith.addf %511, %517 : vector<16x64xf32>
    %519 = vector.extract_strided_slice %497 {offsets = [3, 0], sizes = [16, 64], strides = [1, 1]} : vector<20x64xf32> to vector<16x64xf32>
    %520 = vector.extract_strided_slice %1 {offsets = [17, 0], sizes = [1, 64], strides = [1, 1]} : vector<25x64xf32> to vector<1x64xf32>
    %521 = vector.shape_cast %520 : vector<1x64xf32> to vector<64xf32>
    %522 = vector.shape_cast %521 : vector<64xf32> to vector<1x64xf32>
    %523 = vector.broadcast %522 : vector<1x64xf32> to vector<16x64xf32>
    %524 = arith.mulf %519, %523 : vector<16x64xf32>
    %525 = arith.addf %518, %524 : vector<16x64xf32>
    %526 = vector.extract_strided_slice %497 {offsets = [4, 0], sizes = [16, 64], strides = [1, 1]} : vector<20x64xf32> to vector<16x64xf32>
    %527 = vector.extract_strided_slice %1 {offsets = [22, 0], sizes = [1, 64], strides = [1, 1]} : vector<25x64xf32> to vector<1x64xf32>
    %528 = vector.shape_cast %527 : vector<1x64xf32> to vector<64xf32>
    %529 = vector.shape_cast %528 : vector<64xf32> to vector<1x64xf32>
    %530 = vector.broadcast %529 : vector<1x64xf32> to vector<16x64xf32>
    %531 = arith.mulf %526, %530 : vector<16x64xf32>
    %532 = arith.addf %525, %531 : vector<16x64xf32>
    %533 = vector.extract_strided_slice %423 {offsets = [0, 12], sizes = [20, 64], strides = [1, 1]} : vector<20x80xf32> to vector<20x64xf32>
    %534 = vector.extract_strided_slice %533 {offsets = [0, 0], sizes = [16, 64], strides = [1, 1]} : vector<20x64xf32> to vector<16x64xf32>
    %535 = vector.extract_strided_slice %1 {offsets = [3, 0], sizes = [1, 64], strides = [1, 1]} : vector<25x64xf32> to vector<1x64xf32>
    %536 = vector.shape_cast %535 : vector<1x64xf32> to vector<64xf32>
    %537 = vector.shape_cast %536 : vector<64xf32> to vector<1x64xf32>
    %538 = vector.broadcast %537 : vector<1x64xf32> to vector<16x64xf32>
    %539 = arith.mulf %534, %538 : vector<16x64xf32>
    %540 = arith.addf %532, %539 : vector<16x64xf32>
    %541 = vector.extract_strided_slice %533 {offsets = [1, 0], sizes = [16, 64], strides = [1, 1]} : vector<20x64xf32> to vector<16x64xf32>
    %542 = vector.extract_strided_slice %1 {offsets = [8, 0], sizes = [1, 64], strides = [1, 1]} : vector<25x64xf32> to vector<1x64xf32>
    %543 = vector.shape_cast %542 : vector<1x64xf32> to vector<64xf32>
    %544 = vector.shape_cast %543 : vector<64xf32> to vector<1x64xf32>
    %545 = vector.broadcast %544 : vector<1x64xf32> to vector<16x64xf32>
    %546 = arith.mulf %541, %545 : vector<16x64xf32>
    %547 = arith.addf %540, %546 : vector<16x64xf32>
    %548 = vector.extract_strided_slice %533 {offsets = [2, 0], sizes = [16, 64], strides = [1, 1]} : vector<20x64xf32> to vector<16x64xf32>
    %549 = vector.extract_strided_slice %1 {offsets = [13, 0], sizes = [1, 64], strides = [1, 1]} : vector<25x64xf32> to vector<1x64xf32>
    %550 = vector.shape_cast %549 : vector<1x64xf32> to vector<64xf32>
    %551 = vector.shape_cast %550 : vector<64xf32> to vector<1x64xf32>
    %552 = vector.broadcast %551 : vector<1x64xf32> to vector<16x64xf32>
    %553 = arith.mulf %548, %552 : vector<16x64xf32>
    %554 = arith.addf %547, %553 : vector<16x64xf32>
    %555 = vector.extract_strided_slice %533 {offsets = [3, 0], sizes = [16, 64], strides = [1, 1]} : vector<20x64xf32> to vector<16x64xf32>
    %556 = vector.extract_strided_slice %1 {offsets = [18, 0], sizes = [1, 64], strides = [1, 1]} : vector<25x64xf32> to vector<1x64xf32>
    %557 = vector.shape_cast %556 : vector<1x64xf32> to vector<64xf32>
    %558 = vector.shape_cast %557 : vector<64xf32> to vector<1x64xf32>
    %559 = vector.broadcast %558 : vector<1x64xf32> to vector<16x64xf32>
    %560 = arith.mulf %555, %559 : vector<16x64xf32>
    %561 = arith.addf %554, %560 : vector<16x64xf32>
    %562 = vector.extract_strided_slice %533 {offsets = [4, 0], sizes = [16, 64], strides = [1, 1]} : vector<20x64xf32> to vector<16x64xf32>
    %563 = vector.extract_strided_slice %1 {offsets = [23, 0], sizes = [1, 64], strides = [1, 1]} : vector<25x64xf32> to vector<1x64xf32>
    %564 = vector.shape_cast %563 : vector<1x64xf32> to vector<64xf32>
    %565 = vector.shape_cast %564 : vector<64xf32> to vector<1x64xf32>
    %566 = vector.broadcast %565 : vector<1x64xf32> to vector<16x64xf32>
    %567 = arith.mulf %562, %566 : vector<16x64xf32>
    %568 = arith.addf %561, %567 : vector<16x64xf32>
    %569 = vector.extract_strided_slice %423 {offsets = [0, 16], sizes = [20, 64], strides = [1, 1]} : vector<20x80xf32> to vector<20x64xf32>
    %570 = vector.extract_strided_slice %569 {offsets = [0, 0], sizes = [16, 64], strides = [1, 1]} : vector<20x64xf32> to vector<16x64xf32>
    %571 = vector.extract_strided_slice %1 {offsets = [4, 0], sizes = [1, 64], strides = [1, 1]} : vector<25x64xf32> to vector<1x64xf32>
    %572 = vector.shape_cast %571 : vector<1x64xf32> to vector<64xf32>
    %573 = vector.shape_cast %572 : vector<64xf32> to vector<1x64xf32>
    %574 = vector.broadcast %573 : vector<1x64xf32> to vector<16x64xf32>
    %575 = arith.mulf %570, %574 : vector<16x64xf32>
    %576 = arith.addf %568, %575 : vector<16x64xf32>
    %577 = vector.extract_strided_slice %569 {offsets = [1, 0], sizes = [16, 64], strides = [1, 1]} : vector<20x64xf32> to vector<16x64xf32>
    %578 = vector.extract_strided_slice %1 {offsets = [9, 0], sizes = [1, 64], strides = [1, 1]} : vector<25x64xf32> to vector<1x64xf32>
    %579 = vector.shape_cast %578 : vector<1x64xf32> to vector<64xf32>
    %580 = vector.shape_cast %579 : vector<64xf32> to vector<1x64xf32>
    %581 = vector.broadcast %580 : vector<1x64xf32> to vector<16x64xf32>
    %582 = arith.mulf %577, %581 : vector<16x64xf32>
    %583 = arith.addf %576, %582 : vector<16x64xf32>
    %584 = vector.extract_strided_slice %569 {offsets = [2, 0], sizes = [16, 64], strides = [1, 1]} : vector<20x64xf32> to vector<16x64xf32>
    %585 = vector.extract_strided_slice %1 {offsets = [14, 0], sizes = [1, 64], strides = [1, 1]} : vector<25x64xf32> to vector<1x64xf32>
    %586 = vector.shape_cast %585 : vector<1x64xf32> to vector<64xf32>
    %587 = vector.shape_cast %586 : vector<64xf32> to vector<1x64xf32>
    %588 = vector.broadcast %587 : vector<1x64xf32> to vector<16x64xf32>
    %589 = arith.mulf %584, %588 : vector<16x64xf32>
    %590 = arith.addf %583, %589 : vector<16x64xf32>
    %591 = vector.extract_strided_slice %569 {offsets = [3, 0], sizes = [16, 64], strides = [1, 1]} : vector<20x64xf32> to vector<16x64xf32>
    %592 = vector.extract_strided_slice %1 {offsets = [19, 0], sizes = [1, 64], strides = [1, 1]} : vector<25x64xf32> to vector<1x64xf32>
    %593 = vector.shape_cast %592 : vector<1x64xf32> to vector<64xf32>
    %594 = vector.shape_cast %593 : vector<64xf32> to vector<1x64xf32>
    %595 = vector.broadcast %594 : vector<1x64xf32> to vector<16x64xf32>
    %596 = arith.mulf %591, %595 : vector<16x64xf32>
    %597 = arith.addf %590, %596 : vector<16x64xf32>
    %598 = vector.extract_strided_slice %569 {offsets = [4, 0], sizes = [16, 64], strides = [1, 1]} : vector<20x64xf32> to vector<16x64xf32>
    %599 = vector.extract_strided_slice %1 {offsets = [24, 0], sizes = [1, 64], strides = [1, 1]} : vector<25x64xf32> to vector<1x64xf32>
    %600 = vector.shape_cast %599 : vector<1x64xf32> to vector<64xf32>
    %601 = vector.shape_cast %600 : vector<64xf32> to vector<1x64xf32>
    %602 = vector.broadcast %601 : vector<1x64xf32> to vector<16x64xf32>
    %603 = arith.mulf %598, %602 : vector<16x64xf32>
    %604 = arith.addf %597, %603 : vector<16x64xf32>
    %605 = vector.extract_strided_slice %3 {offsets = [1, 0], sizes = [1, 64], strides = [1, 1]} : vector<2x64xf32> to vector<1x64xf32>
    %606 = vector.shape_cast %605 : vector<1x64xf32> to vector<64xf32>
    %607 = vector.shape_cast %606 : vector<64xf32> to vector<1x64xf32>
    %608 = vector.broadcast %607 : vector<1x64xf32> to vector<16x64xf32>
    %609 = arith.addf %604, %608 : vector<16x64xf32>
    %cst_31 = arith.constant 0.000000e+00 : f32
    %610 = vector.broadcast %cst_31 : f32 to vector<16x64xf32>
    %611 = arith.maximumf %609, %610 : vector<16x64xf32>
    %cst_32 = arith.constant 0.000000e+00 : f32
    %612 = vector.broadcast %cst_32 : f32 to vector<16x2xf32>
    %613 = vector.extract_strided_slice %611 {offsets = [0, 0], sizes = [16, 62], strides = [1, 1]} : vector<16x64xf32> to vector<16x62xf32>
    %614 = tpu.concatenate %612, %613 in 1 : vector<16x2xf32>, vector<16x62xf32> -> vector<16x64xf32>
    %615 = arith.addf %419, %614 : vector<16x64xf32>
    %cst_33 = arith.constant dense<0.000000e+00> : vector<16x128xf32>
    %616 = tpu.matmul %615, %5, %cst_33 {dimension_numbers = #tpu.dot_dimension_numbers<[1], [0], [0], [1], [0, 0, 1, 1], [], []>} : vector<16x64xf32>, vector<64x128xf32>, vector<16x128xf32> -> vector<16x128xf32>
    %617 = vector.extract_strided_slice %4 {offsets = [0, 0], sizes = [1, 128], strides = [1, 1]} : vector<2x128xf32> to vector<1x128xf32>
    %618 = vector.shape_cast %617 : vector<1x128xf32> to vector<128xf32>
    %619 = vector.shape_cast %618 : vector<128xf32> to vector<1x128xf32>
    %620 = vector.broadcast %619 : vector<1x128xf32> to vector<16x128xf32>
    %621 = arith.addf %616, %620 : vector<16x128xf32>
    %cst_34 = arith.constant 0.000000e+00 : f32
    %622 = vector.broadcast %cst_34 : f32 to vector<16x16xf32>
    %623 = tpu.concatenate %622, %621, %622 in 1 : vector<16x16xf32>, vector<16x128xf32>, vector<16x16xf32> -> vector<16x160xf32>
    %cst_35 = arith.constant 0.000000e+00 : f32
    %624 = vector.broadcast %cst_35 : f32 to vector<2x160xf32>
    %625 = tpu.concatenate %624, %623, %624 in 0 : vector<2x160xf32>, vector<16x160xf32>, vector<2x160xf32> -> vector<20x160xf32>
    %cst_36 = arith.constant 0.000000e+00 : f32
    %626 = vector.broadcast %cst_36 : f32 to vector<16x128xf32>
    %627 = vector.extract_strided_slice %625 {offsets = [0, 0], sizes = [20, 128], strides = [1, 1]} : vector<20x160xf32> to vector<20x128xf32>
    %628 = vector.extract_strided_slice %627 {offsets = [0, 0], sizes = [16, 128], strides = [1, 1]} : vector<20x128xf32> to vector<16x128xf32>
    %629 = vector.extract_strided_slice %2 {offsets = [0, 0], sizes = [1, 128], strides = [1, 1]} : vector<25x128xf32> to vector<1x128xf32>
    %630 = vector.shape_cast %629 : vector<1x128xf32> to vector<128xf32>
    %631 = vector.shape_cast %630 : vector<128xf32> to vector<1x128xf32>
    %632 = vector.broadcast %631 : vector<1x128xf32> to vector<16x128xf32>
    %633 = arith.mulf %628, %632 : vector<16x128xf32>
    %634 = arith.addf %626, %633 : vector<16x128xf32>
    %635 = vector.extract_strided_slice %627 {offsets = [1, 0], sizes = [16, 128], strides = [1, 1]} : vector<20x128xf32> to vector<16x128xf32>
    %636 = vector.extract_strided_slice %2 {offsets = [5, 0], sizes = [1, 128], strides = [1, 1]} : vector<25x128xf32> to vector<1x128xf32>
    %637 = vector.shape_cast %636 : vector<1x128xf32> to vector<128xf32>
    %638 = vector.shape_cast %637 : vector<128xf32> to vector<1x128xf32>
    %639 = vector.broadcast %638 : vector<1x128xf32> to vector<16x128xf32>
    %640 = arith.mulf %635, %639 : vector<16x128xf32>
    %641 = arith.addf %634, %640 : vector<16x128xf32>
    %642 = vector.extract_strided_slice %627 {offsets = [2, 0], sizes = [16, 128], strides = [1, 1]} : vector<20x128xf32> to vector<16x128xf32>
    %643 = vector.extract_strided_slice %2 {offsets = [10, 0], sizes = [1, 128], strides = [1, 1]} : vector<25x128xf32> to vector<1x128xf32>
    %644 = vector.shape_cast %643 : vector<1x128xf32> to vector<128xf32>
    %645 = vector.shape_cast %644 : vector<128xf32> to vector<1x128xf32>
    %646 = vector.broadcast %645 : vector<1x128xf32> to vector<16x128xf32>
    %647 = arith.mulf %642, %646 : vector<16x128xf32>
    %648 = arith.addf %641, %647 : vector<16x128xf32>
    %649 = vector.extract_strided_slice %627 {offsets = [3, 0], sizes = [16, 128], strides = [1, 1]} : vector<20x128xf32> to vector<16x128xf32>
    %650 = vector.extract_strided_slice %2 {offsets = [15, 0], sizes = [1, 128], strides = [1, 1]} : vector<25x128xf32> to vector<1x128xf32>
    %651 = vector.shape_cast %650 : vector<1x128xf32> to vector<128xf32>
    %652 = vector.shape_cast %651 : vector<128xf32> to vector<1x128xf32>
    %653 = vector.broadcast %652 : vector<1x128xf32> to vector<16x128xf32>
    %654 = arith.mulf %649, %653 : vector<16x128xf32>
    %655 = arith.addf %648, %654 : vector<16x128xf32>
    %656 = vector.extract_strided_slice %627 {offsets = [4, 0], sizes = [16, 128], strides = [1, 1]} : vector<20x128xf32> to vector<16x128xf32>
    %657 = vector.extract_strided_slice %2 {offsets = [20, 0], sizes = [1, 128], strides = [1, 1]} : vector<25x128xf32> to vector<1x128xf32>
    %658 = vector.shape_cast %657 : vector<1x128xf32> to vector<128xf32>
    %659 = vector.shape_cast %658 : vector<128xf32> to vector<1x128xf32>
    %660 = vector.broadcast %659 : vector<1x128xf32> to vector<16x128xf32>
    %661 = arith.mulf %656, %660 : vector<16x128xf32>
    %662 = arith.addf %655, %661 : vector<16x128xf32>
    %663 = vector.extract_strided_slice %625 {offsets = [0, 8], sizes = [20, 128], strides = [1, 1]} : vector<20x160xf32> to vector<20x128xf32>
    %664 = vector.extract_strided_slice %663 {offsets = [0, 0], sizes = [16, 128], strides = [1, 1]} : vector<20x128xf32> to vector<16x128xf32>
    %665 = vector.extract_strided_slice %2 {offsets = [1, 0], sizes = [1, 128], strides = [1, 1]} : vector<25x128xf32> to vector<1x128xf32>
    %666 = vector.shape_cast %665 : vector<1x128xf32> to vector<128xf32>
    %667 = vector.shape_cast %666 : vector<128xf32> to vector<1x128xf32>
    %668 = vector.broadcast %667 : vector<1x128xf32> to vector<16x128xf32>
    %669 = arith.mulf %664, %668 : vector<16x128xf32>
    %670 = arith.addf %662, %669 : vector<16x128xf32>
    %671 = vector.extract_strided_slice %663 {offsets = [1, 0], sizes = [16, 128], strides = [1, 1]} : vector<20x128xf32> to vector<16x128xf32>
    %672 = vector.extract_strided_slice %2 {offsets = [6, 0], sizes = [1, 128], strides = [1, 1]} : vector<25x128xf32> to vector<1x128xf32>
    %673 = vector.shape_cast %672 : vector<1x128xf32> to vector<128xf32>
    %674 = vector.shape_cast %673 : vector<128xf32> to vector<1x128xf32>
    %675 = vector.broadcast %674 : vector<1x128xf32> to vector<16x128xf32>
    %676 = arith.mulf %671, %675 : vector<16x128xf32>
    %677 = arith.addf %670, %676 : vector<16x128xf32>
    %678 = vector.extract_strided_slice %663 {offsets = [2, 0], sizes = [16, 128], strides = [1, 1]} : vector<20x128xf32> to vector<16x128xf32>
    %679 = vector.extract_strided_slice %2 {offsets = [11, 0], sizes = [1, 128], strides = [1, 1]} : vector<25x128xf32> to vector<1x128xf32>
    %680 = vector.shape_cast %679 : vector<1x128xf32> to vector<128xf32>
    %681 = vector.shape_cast %680 : vector<128xf32> to vector<1x128xf32>
    %682 = vector.broadcast %681 : vector<1x128xf32> to vector<16x128xf32>
    %683 = arith.mulf %678, %682 : vector<16x128xf32>
    %684 = arith.addf %677, %683 : vector<16x128xf32>
    %685 = vector.extract_strided_slice %663 {offsets = [3, 0], sizes = [16, 128], strides = [1, 1]} : vector<20x128xf32> to vector<16x128xf32>
    %686 = vector.extract_strided_slice %2 {offsets = [16, 0], sizes = [1, 128], strides = [1, 1]} : vector<25x128xf32> to vector<1x128xf32>
    %687 = vector.shape_cast %686 : vector<1x128xf32> to vector<128xf32>
    %688 = vector.shape_cast %687 : vector<128xf32> to vector<1x128xf32>
    %689 = vector.broadcast %688 : vector<1x128xf32> to vector<16x128xf32>
    %690 = arith.mulf %685, %689 : vector<16x128xf32>
    %691 = arith.addf %684, %690 : vector<16x128xf32>
    %692 = vector.extract_strided_slice %663 {offsets = [4, 0], sizes = [16, 128], strides = [1, 1]} : vector<20x128xf32> to vector<16x128xf32>
    %693 = vector.extract_strided_slice %2 {offsets = [21, 0], sizes = [1, 128], strides = [1, 1]} : vector<25x128xf32> to vector<1x128xf32>
    %694 = vector.shape_cast %693 : vector<1x128xf32> to vector<128xf32>
    %695 = vector.shape_cast %694 : vector<128xf32> to vector<1x128xf32>
    %696 = vector.broadcast %695 : vector<1x128xf32> to vector<16x128xf32>
    %697 = arith.mulf %692, %696 : vector<16x128xf32>
    %698 = arith.addf %691, %697 : vector<16x128xf32>
    %699 = vector.extract_strided_slice %625 {offsets = [0, 16], sizes = [20, 128], strides = [1, 1]} : vector<20x160xf32> to vector<20x128xf32>
    %700 = vector.extract_strided_slice %699 {offsets = [0, 0], sizes = [16, 128], strides = [1, 1]} : vector<20x128xf32> to vector<16x128xf32>
    %701 = vector.extract_strided_slice %2 {offsets = [2, 0], sizes = [1, 128], strides = [1, 1]} : vector<25x128xf32> to vector<1x128xf32>
    %702 = vector.shape_cast %701 : vector<1x128xf32> to vector<128xf32>
    %703 = vector.shape_cast %702 : vector<128xf32> to vector<1x128xf32>
    %704 = vector.broadcast %703 : vector<1x128xf32> to vector<16x128xf32>
    %705 = arith.mulf %700, %704 : vector<16x128xf32>
    %706 = arith.addf %698, %705 : vector<16x128xf32>
    %707 = vector.extract_strided_slice %699 {offsets = [1, 0], sizes = [16, 128], strides = [1, 1]} : vector<20x128xf32> to vector<16x128xf32>
    %708 = vector.extract_strided_slice %2 {offsets = [7, 0], sizes = [1, 128], strides = [1, 1]} : vector<25x128xf32> to vector<1x128xf32>
    %709 = vector.shape_cast %708 : vector<1x128xf32> to vector<128xf32>
    %710 = vector.shape_cast %709 : vector<128xf32> to vector<1x128xf32>
    %711 = vector.broadcast %710 : vector<1x128xf32> to vector<16x128xf32>
    %712 = arith.mulf %707, %711 : vector<16x128xf32>
    %713 = arith.addf %706, %712 : vector<16x128xf32>
    %714 = vector.extract_strided_slice %699 {offsets = [2, 0], sizes = [16, 128], strides = [1, 1]} : vector<20x128xf32> to vector<16x128xf32>
    %715 = vector.extract_strided_slice %2 {offsets = [12, 0], sizes = [1, 128], strides = [1, 1]} : vector<25x128xf32> to vector<1x128xf32>
    %716 = vector.shape_cast %715 : vector<1x128xf32> to vector<128xf32>
    %717 = vector.shape_cast %716 : vector<128xf32> to vector<1x128xf32>
    %718 = vector.broadcast %717 : vector<1x128xf32> to vector<16x128xf32>
    %719 = arith.mulf %714, %718 : vector<16x128xf32>
    %720 = arith.addf %713, %719 : vector<16x128xf32>
    %721 = vector.extract_strided_slice %699 {offsets = [3, 0], sizes = [16, 128], strides = [1, 1]} : vector<20x128xf32> to vector<16x128xf32>
    %722 = vector.extract_strided_slice %2 {offsets = [17, 0], sizes = [1, 128], strides = [1, 1]} : vector<25x128xf32> to vector<1x128xf32>
    %723 = vector.shape_cast %722 : vector<1x128xf32> to vector<128xf32>
    %724 = vector.shape_cast %723 : vector<128xf32> to vector<1x128xf32>
    %725 = vector.broadcast %724 : vector<1x128xf32> to vector<16x128xf32>
    %726 = arith.mulf %721, %725 : vector<16x128xf32>
    %727 = arith.addf %720, %726 : vector<16x128xf32>
    %728 = vector.extract_strided_slice %699 {offsets = [4, 0], sizes = [16, 128], strides = [1, 1]} : vector<20x128xf32> to vector<16x128xf32>
    %729 = vector.extract_strided_slice %2 {offsets = [22, 0], sizes = [1, 128], strides = [1, 1]} : vector<25x128xf32> to vector<1x128xf32>
    %730 = vector.shape_cast %729 : vector<1x128xf32> to vector<128xf32>
    %731 = vector.shape_cast %730 : vector<128xf32> to vector<1x128xf32>
    %732 = vector.broadcast %731 : vector<1x128xf32> to vector<16x128xf32>
    %733 = arith.mulf %728, %732 : vector<16x128xf32>
    %734 = arith.addf %727, %733 : vector<16x128xf32>
    %735 = vector.extract_strided_slice %625 {offsets = [0, 24], sizes = [20, 128], strides = [1, 1]} : vector<20x160xf32> to vector<20x128xf32>
    %736 = vector.extract_strided_slice %735 {offsets = [0, 0], sizes = [16, 128], strides = [1, 1]} : vector<20x128xf32> to vector<16x128xf32>
    %737 = vector.extract_strided_slice %2 {offsets = [3, 0], sizes = [1, 128], strides = [1, 1]} : vector<25x128xf32> to vector<1x128xf32>
    %738 = vector.shape_cast %737 : vector<1x128xf32> to vector<128xf32>
    %739 = vector.shape_cast %738 : vector<128xf32> to vector<1x128xf32>
    %740 = vector.broadcast %739 : vector<1x128xf32> to vector<16x128xf32>
    %741 = arith.mulf %736, %740 : vector<16x128xf32>
    %742 = arith.addf %734, %741 : vector<16x128xf32>
    %743 = vector.extract_strided_slice %735 {offsets = [1, 0], sizes = [16, 128], strides = [1, 1]} : vector<20x128xf32> to vector<16x128xf32>
    %744 = vector.extract_strided_slice %2 {offsets = [8, 0], sizes = [1, 128], strides = [1, 1]} : vector<25x128xf32> to vector<1x128xf32>
    %745 = vector.shape_cast %744 : vector<1x128xf32> to vector<128xf32>
    %746 = vector.shape_cast %745 : vector<128xf32> to vector<1x128xf32>
    %747 = vector.broadcast %746 : vector<1x128xf32> to vector<16x128xf32>
    %748 = arith.mulf %743, %747 : vector<16x128xf32>
    %749 = arith.addf %742, %748 : vector<16x128xf32>
    %750 = vector.extract_strided_slice %735 {offsets = [2, 0], sizes = [16, 128], strides = [1, 1]} : vector<20x128xf32> to vector<16x128xf32>
    %751 = vector.extract_strided_slice %2 {offsets = [13, 0], sizes = [1, 128], strides = [1, 1]} : vector<25x128xf32> to vector<1x128xf32>
    %752 = vector.shape_cast %751 : vector<1x128xf32> to vector<128xf32>
    %753 = vector.shape_cast %752 : vector<128xf32> to vector<1x128xf32>
    %754 = vector.broadcast %753 : vector<1x128xf32> to vector<16x128xf32>
    %755 = arith.mulf %750, %754 : vector<16x128xf32>
    %756 = arith.addf %749, %755 : vector<16x128xf32>
    %757 = vector.extract_strided_slice %735 {offsets = [3, 0], sizes = [16, 128], strides = [1, 1]} : vector<20x128xf32> to vector<16x128xf32>
    %758 = vector.extract_strided_slice %2 {offsets = [18, 0], sizes = [1, 128], strides = [1, 1]} : vector<25x128xf32> to vector<1x128xf32>
    %759 = vector.shape_cast %758 : vector<1x128xf32> to vector<128xf32>
    %760 = vector.shape_cast %759 : vector<128xf32> to vector<1x128xf32>
    %761 = vector.broadcast %760 : vector<1x128xf32> to vector<16x128xf32>
    %762 = arith.mulf %757, %761 : vector<16x128xf32>
    %763 = arith.addf %756, %762 : vector<16x128xf32>
    %764 = vector.extract_strided_slice %735 {offsets = [4, 0], sizes = [16, 128], strides = [1, 1]} : vector<20x128xf32> to vector<16x128xf32>
    %765 = vector.extract_strided_slice %2 {offsets = [23, 0], sizes = [1, 128], strides = [1, 1]} : vector<25x128xf32> to vector<1x128xf32>
    %766 = vector.shape_cast %765 : vector<1x128xf32> to vector<128xf32>
    %767 = vector.shape_cast %766 : vector<128xf32> to vector<1x128xf32>
    %768 = vector.broadcast %767 : vector<1x128xf32> to vector<16x128xf32>
    %769 = arith.mulf %764, %768 : vector<16x128xf32>
    %770 = arith.addf %763, %769 : vector<16x128xf32>
    %771 = vector.extract_strided_slice %625 {offsets = [0, 32], sizes = [20, 128], strides = [1, 1]} : vector<20x160xf32> to vector<20x128xf32>
    %772 = vector.extract_strided_slice %771 {offsets = [0, 0], sizes = [16, 128], strides = [1, 1]} : vector<20x128xf32> to vector<16x128xf32>
    %773 = vector.extract_strided_slice %2 {offsets = [4, 0], sizes = [1, 128], strides = [1, 1]} : vector<25x128xf32> to vector<1x128xf32>
    %774 = vector.shape_cast %773 : vector<1x128xf32> to vector<128xf32>
    %775 = vector.shape_cast %774 : vector<128xf32> to vector<1x128xf32>
    %776 = vector.broadcast %775 : vector<1x128xf32> to vector<16x128xf32>
    %777 = arith.mulf %772, %776 : vector<16x128xf32>
    %778 = arith.addf %770, %777 : vector<16x128xf32>
    %779 = vector.extract_strided_slice %771 {offsets = [1, 0], sizes = [16, 128], strides = [1, 1]} : vector<20x128xf32> to vector<16x128xf32>
    %780 = vector.extract_strided_slice %2 {offsets = [9, 0], sizes = [1, 128], strides = [1, 1]} : vector<25x128xf32> to vector<1x128xf32>
    %781 = vector.shape_cast %780 : vector<1x128xf32> to vector<128xf32>
    %782 = vector.shape_cast %781 : vector<128xf32> to vector<1x128xf32>
    %783 = vector.broadcast %782 : vector<1x128xf32> to vector<16x128xf32>
    %784 = arith.mulf %779, %783 : vector<16x128xf32>
    %785 = arith.addf %778, %784 : vector<16x128xf32>
    %786 = vector.extract_strided_slice %771 {offsets = [2, 0], sizes = [16, 128], strides = [1, 1]} : vector<20x128xf32> to vector<16x128xf32>
    %787 = vector.extract_strided_slice %2 {offsets = [14, 0], sizes = [1, 128], strides = [1, 1]} : vector<25x128xf32> to vector<1x128xf32>
    %788 = vector.shape_cast %787 : vector<1x128xf32> to vector<128xf32>
    %789 = vector.shape_cast %788 : vector<128xf32> to vector<1x128xf32>
    %790 = vector.broadcast %789 : vector<1x128xf32> to vector<16x128xf32>
    %791 = arith.mulf %786, %790 : vector<16x128xf32>
    %792 = arith.addf %785, %791 : vector<16x128xf32>
    %793 = vector.extract_strided_slice %771 {offsets = [3, 0], sizes = [16, 128], strides = [1, 1]} : vector<20x128xf32> to vector<16x128xf32>
    %794 = vector.extract_strided_slice %2 {offsets = [19, 0], sizes = [1, 128], strides = [1, 1]} : vector<25x128xf32> to vector<1x128xf32>
    %795 = vector.shape_cast %794 : vector<1x128xf32> to vector<128xf32>
    %796 = vector.shape_cast %795 : vector<128xf32> to vector<1x128xf32>
    %797 = vector.broadcast %796 : vector<1x128xf32> to vector<16x128xf32>
    %798 = arith.mulf %793, %797 : vector<16x128xf32>
    %799 = arith.addf %792, %798 : vector<16x128xf32>
    %800 = vector.extract_strided_slice %771 {offsets = [4, 0], sizes = [16, 128], strides = [1, 1]} : vector<20x128xf32> to vector<16x128xf32>
    %801 = vector.extract_strided_slice %2 {offsets = [24, 0], sizes = [1, 128], strides = [1, 1]} : vector<25x128xf32> to vector<1x128xf32>
    %802 = vector.shape_cast %801 : vector<1x128xf32> to vector<128xf32>
    %803 = vector.shape_cast %802 : vector<128xf32> to vector<1x128xf32>
    %804 = vector.broadcast %803 : vector<1x128xf32> to vector<16x128xf32>
    %805 = arith.mulf %800, %804 : vector<16x128xf32>
    %806 = arith.addf %799, %805 : vector<16x128xf32>
    %807 = vector.extract_strided_slice %4 {offsets = [1, 0], sizes = [1, 128], strides = [1, 1]} : vector<2x128xf32> to vector<1x128xf32>
    %808 = vector.shape_cast %807 : vector<1x128xf32> to vector<128xf32>
    %809 = vector.shape_cast %808 : vector<128xf32> to vector<1x128xf32>
    %810 = vector.broadcast %809 : vector<1x128xf32> to vector<16x128xf32>
    %811 = arith.addf %806, %810 : vector<16x128xf32>
    %cst_37 = arith.constant 0.000000e+00 : f32
    %812 = vector.broadcast %cst_37 : f32 to vector<16x4xf32>
    %813 = vector.extract_strided_slice %811 {offsets = [0, 0], sizes = [16, 124], strides = [1, 1]} : vector<16x128xf32> to vector<16x124xf32>
    %814 = tpu.concatenate %812, %813 in 1 : vector<16x4xf32>, vector<16x124xf32> -> vector<16x128xf32>
    %815 = arith.addf %621, %814 : vector<16x128xf32>
    %816 = vector.extract_strided_slice %0 {offsets = [1, 0, 0], sizes = [1, 16, 128], strides = [1, 1, 1]} : vector<2x16x128xf32> to vector<1x16x128xf32>
    %817 = vector.shape_cast %816 : vector<1x16x128xf32> to vector<16x128xf32>
    %818 = arith.addf %815, %817 : vector<16x128xf32>
    %c1 = arith.constant 1 : index
    %c0_38 = arith.constant 0 : index
    %c0_39 = arith.constant 0 : index
    %819 = vector.load %arg8[%c1, %c0_38, %c0_39] : memref<2x16x128xf32, #tpu.memory_space<vmem>>, vector<1x16x128xf32>
    %820 = vector.shape_cast %819 : vector<1x16x128xf32> to vector<16x128xf32>
    %821 = vector.shape_cast %818 : vector<16x128xf32> to vector<1x16x128xf32>
    tpu.vector_store %arg8[%c1, %c0_38, %c0_39], %821 {strides = array<i32>} : memref<2x16x128xf32, #tpu.memory_space<vmem>>, vector<1x16x128xf32>,
    return
  }
  func.func @transform_0(%arg0: i32) -> (i32, i32, i32) {
    %c0_i32 = arith.constant 0 : i32
    %c0_i32_0 = arith.constant 0 : i32
    %c0_i32_1 = arith.constant 0 : i32
    %c0_i32_2 = arith.constant 0 : i32
    return %c0_i32, %c0_i32_0, %c0_i32_1 : i32, i32, i32
  }
  func.func @transform_1(%arg0: i32) -> (i32, i32) {
    %c0_i32 = arith.constant 0 : i32
    %c0_i32_0 = arith.constant 0 : i32
    %c0_i32_1 = arith.constant 0 : i32
    return %c0_i32, %c0_i32_0 : i32, i32
  }
  func.func @transform_2(%arg0: i32) -> (i32, i32) {
    %c0_i32 = arith.constant 0 : i32
    %c0_i32_0 = arith.constant 0 : i32
    %c0_i32_1 = arith.constant 0 : i32
    return %c0_i32, %c0_i32_0 : i32, i32
  }
  func.func @transform_3(%arg0: i32) -> (i32, i32) {
    %c0_i32 = arith.constant 0 : i32
    %c0_i32_0 = arith.constant 0 : i32
    %c0_i32_1 = arith.constant 0 : i32
    return %c0_i32, %c0_i32_0 : i32, i32
  }
  func.func @transform_4(%arg0: i32) -> (i32, i32) {
    %c0_i32 = arith.constant 0 : i32
    %c0_i32_0 = arith.constant 0 : i32
    %c0_i32_1 = arith.constant 0 : i32
    return %c0_i32, %c0_i32_0 : i32, i32
  }
  func.func @transform_5(%arg0: i32) -> (i32, i32) {
    %c0_i32 = arith.constant 0 : i32
    %c0_i32_0 = arith.constant 0 : i32
    %c0_i32_1 = arith.constant 0 : i32
    return %c0_i32, %c0_i32_0 : i32, i32
  }
  func.func @transform_6(%arg0: i32) -> (i32, i32) {
    %c0_i32 = arith.constant 0 : i32
    %c0_i32_0 = arith.constant 0 : i32
    %c0_i32_1 = arith.constant 0 : i32
    return %c0_i32, %c0_i32_0 : i32, i32
  }
  func.func @transform_7(%arg0: i32) -> (i32, i32, i32) {
    %c0_i32 = arith.constant 0 : i32
    %c0_i32_0 = arith.constant 0 : i32
    %c0_i32_1 = arith.constant 0 : i32
    %c0_i32_2 = arith.constant 0 : i32
    return %c0_i32, %c0_i32_0, %c0_i32_1 : i32, i32, i32
  }
}

</mosaic_0001>

<llo_original>
// kernel: tpu_custom_call.1
$region0: #{tpu_custom_call.1}
  #allocation0 [shape = 'u32[]', space=smem, size = 0x4, offset = 0x4, fixed_abs, tag = 'smem constant byte address 0x4 - core index']
  #allocation1 [shape = 'u32[144,128]{1,0:T(1,128)}', space=vmem, size = 0x12000, scoped, tag = 'internal scratch']
  %s0 = inlined_call_operand.vmem [shape: f32[2,16,128], index: 0, kind: input, shape index: {}]
  %s1 = inlined_call_operand.vmem [shape: f32[128,64], index: 1, kind: input, shape index: {}]
  %s2 = inlined_call_operand.vmem [shape: f32[64,128], index: 2, kind: input, shape index: {}]
  %s3 = inlined_call_operand.vmem [shape: f32[25,64], index: 3, kind: input, shape index: {}]
  %s4 = inlined_call_operand.vmem [shape: f32[25,128], index: 4, kind: input, shape index: {}]
  %s5 = inlined_call_operand.vmem [shape: f32[2,64], index: 5, kind: input, shape index: {}]
  %s6 = inlined_call_operand.vmem [shape: f32[2,128], index: 6, kind: input, shape index: {}]
  %s7 = inlined_call_operand.hbm [shape: f32[2,16,128], index: 7, kind: output, shape index: {}]
  %s8 = sld [smem:[#allocation0]]
  $region38: #{tpu_custom_call.1} parent=0
    _
  %s10 = ssub.s32 1, %s8
  %s11 = scalar_select 0, %s10, %s8
  $region1: #{tpu_custom_call.1} parent=0
    #allocation2 [shape = 'u8[16384]{0}', space=vmem, size = 0x4000, scoped, tag = 'output window, operand 0, single buffered']
    #allocation3 [shape = 's32[1]{0}', space=sflag, size = 0x4, scoped, tag = 'scoped memory for tpu_custom_call.1']
    %12 = vsyncpa [#allocation3], 0
    // Predicated region
    $region2: #{tpu_custom_call.1} parent=1 // pred_check
      _
    $region3: #{tpu_custom_call.1} parent=1 // pred_check_branch
      %14 = sbr.rel (0) target = $region5
    $region4: #{tpu_custom_call.1} parent=1 // pred_region
      _
    $region5: #{tpu_custom_call.1} parent=1 // pred_fallthru
      _
    // Predicated region
    $region6: #{tpu_custom_call.1} parent=1 // pred_check
      _
    $region7: #{tpu_custom_call.1} parent=1 // pred_check_branch
      %16 = sbr.rel (0) target = $region9
    $region8: #{tpu_custom_call.1} parent=1 // pred_region
      _
    $region9: #{tpu_custom_call.1} parent=1 // pred_fallthru
      _
    // Predicated region
    $region10: #{tpu_custom_call.1} parent=1 // pred_check
      _
    $region11: #{tpu_custom_call.1} parent=1 // pred_check_branch
      %18 = sbr.rel (0) target = $region13
    $region12: #{tpu_custom_call.1} parent=1 // pred_region
      _
    $region13: #{tpu_custom_call.1} parent=1 // pred_fallthru
      _
    // Predicated region
    $region14: #{tpu_custom_call.1} parent=1 // pred_check
      _
    $region15: #{tpu_custom_call.1} parent=1 // pred_check_branch
      %20 = sbr.rel (0) target = $region17
    $region16: #{tpu_custom_call.1} parent=1 // pred_region
      _
    $region17: #{tpu_custom_call.1} parent=1 // pred_fallthru
      _
    // Predicated region
    $region18: #{tpu_custom_call.1} parent=1 // pred_check
      _
    $region19: #{tpu_custom_call.1} parent=1 // pred_check_branch
      %22 = sbr.rel (0) target = $region21
    $region20: #{tpu_custom_call.1} parent=1 // pred_region
      _
    $region21: #{tpu_custom_call.1} parent=1 // pred_fallthru
      _
    // Predicated region
    $region22: #{tpu_custom_call.1} parent=1 // pred_check
      _
    $region23: #{tpu_custom_call.1} parent=1 // pred_check_branch
      %24 = sbr.rel (0) target = $region25
    $region24: #{tpu_custom_call.1} parent=1 // pred_region
      _
    $region25: #{tpu_custom_call.1} parent=1 // pred_fallthru
      _
    // Predicated region
    $region26: #{tpu_custom_call.1} parent=1 // pred_check
      _
    $region27: #{tpu_custom_call.1} parent=1 // pred_check_branch
      %26 = sbr.rel (0) target = $region29
    $region28: #{tpu_custom_call.1} parent=1 // pred_region
      _
    $region29: #{tpu_custom_call.1} parent=1 // pred_fallthru
      _
    %v27 = vld [vmem:[%s0] sm:$0xff]
    %v28 = vld [vmem:[%s0 + $0x8] sm:$0xff]
    %v29 = vld [vmem:[%s0 + $0x10] sm:$0xff]
    %v30 = vld [vmem:[%s0 + $0x18] sm:$0xff]
    %v31 = vld [vmem:[%s3] sm:$0xff]
    %v32 = vld [vmem:[%s3 + $0x8] sm:$0xff]
    %v33 = vld [vmem:[%s3 + $0x10] sm:$0xff]
    %v34 = vld [vmem:[%s3 + $0x18] sm:$0x1]
    %v35 = vld [vmem:[%s4] sm:$0xff]
    %v36 = vld [vmem:[%s4 + $0x8] sm:$0xff]
    %v37 = vld [vmem:[%s4 + $0x10] sm:$0xff]
    %v38 = vld [vmem:[%s4 + $0x18] sm:$0x1]
    %v39 = vld [vmem:[%s5] sm:$0x3]
    %v40 = vld [vmem:[%s6] sm:$0x3]
    %v41 = vld [vmem:[%s2] sm:$0xff]
    %v42 = vld [vmem:[%s2 + $0x8] sm:$0xff]
    %v43 = vld [vmem:[%s2 + $0x10] sm:$0xff]
    %v44 = vld [vmem:[%s2 + $0x18] sm:$0xff]
    %v45 = vld [vmem:[%s2 + $0x20] sm:$0xff]
    %v46 = vld [vmem:[%s2 + $0x28] sm:$0xff]
    %v47 = vld [vmem:[%s2 + $0x30] sm:$0xff]
    %v48 = vld [vmem:[%s2 + $0x38] sm:$0xff]
    %v49 = vld [vmem:[%s1] sm:$0xff]
    %v50 = vld [vmem:[%s1 + $0x8] sm:$0xff]
    %v51 = vld [vmem:[%s1 + $0x10] sm:$0xff]
    %v52 = vld [vmem:[%s1 + $0x18] sm:$0xff]
    %v53 = vld [vmem:[%s1 + $0x20] sm:$0xff]
    %v54 = vld [vmem:[%s1 + $0x28] sm:$0xff]
    %v55 = vld [vmem:[%s1 + $0x30] sm:$0xff]
    %v56 = vld [vmem:[%s1 + $0x38] sm:$0xff]
    %v57 = vld [vmem:[%s1 + $0x40] sm:$0xff]
    %v58 = vld [vmem:[%s1 + $0x48] sm:$0xff]
    %v59 = vld [vmem:[%s1 + $0x50] sm:$0xff]
    %v60 = vld [vmem:[%s1 + $0x58] sm:$0xff]
    %v61 = vld [vmem:[%s1 + $0x60] sm:$0xff]
    %v62 = vld [vmem:[%s1 + $0x68] sm:$0xff]
    %v63 = vld [vmem:[%s1 + $0x70] sm:$0xff]
    %v64 = vld [vmem:[%s1 + $0x78] sm:$0xff]
    %v65 = vlaneseq
    %v66 = vshrl.u32 %v65, 7
    %v67 = vsub.s32 0, %v66
    %v68 = vrot.slane %v39, %v67
    %69 = vmatprep.subr.mxu0 0.0
    %70 = vmatpush1.msra.mxu0 %v49
    %71 = vmatprep.subr.mxu0 0.0
    %72 = vmatpush1.msra.mxu0 %v50
    %73 = vmatprep.subr.mxu0 0.0
    %74 = vmatpush1.msra.mxu0 %v51
    %75 = vmatprep.subr.mxu0 0.0
    %76 = vmatpush1.msra.mxu0 %v52
    %77 = vmatprep.subr.mxu0 0.0
    %78 = vmatpush1.msra.mxu0 %v53
    %79 = vmatprep.subr.mxu0 0.0
    %80 = vmatpush1.msra.mxu0 %v54
    %81 = vmatprep.subr.mxu0 0.0
    %82 = vmatpush1.msra.mxu0 %v55
    %83 = vmatprep.subr.mxu0 0.0
    %84 = vmatpush1.msra.mxu0 %v56
    %85 = vmatprep.subr.mxu0 0.0
    %86 = vmatpush1.msra.mxu0 %v57
    %87 = vmatprep.subr.mxu0 0.0
    %88 = vmatpush1.msra.mxu0 %v58
    %89 = vmatprep.subr.mxu0 0.0
    %90 = vmatpush1.msra.mxu0 %v59
    %91 = vmatprep.subr.mxu0 0.0
    %92 = vmatpush1.msra.mxu0 %v60
    %93 = vmatprep.subr.mxu0 0.0
    %94 = vmatpush1.msra.mxu0 %v61
    %95 = vmatprep.subr.mxu0 0.0
    %96 = vmatpush1.msra.mxu0 %v62
    %97 = vmatprep.subr.mxu0 0.0
    %98 = vmatpush1.msra.mxu0 %v63
    %99 = vmatprep.subr.mxu0 0.0
    %100 = vmatpush1.msra.mxu0 %v64
    %101 = vmatprep.subr.mxu0 0.0
    %102 = vmatpush1.msra.mxu0 0.0
    %103 = vmatprep.subr.mxu0 0.0
    %104 = vmatpush1.msra.mxu0 0.0
    %105 = vmatprep.subr.mxu0 0.0
    %106 = vmatpush1.msra.mxu0 0.0
    %107 = vmatprep.subr.mxu0 0.0
    %108 = vmatpush1.msra.mxu0 0.0
    %109 = vmatprep.subr.mxu0 0.0
    %110 = vmatpush1.msra.mxu0 0.0
    %111 = vmatprep.subr.mxu0 0.0
    %112 = vmatpush1.msra.mxu0 0.0
    %113 = vmatprep.subr.mxu0 0.0
    %114 = vmatpush1.msra.mxu0 0.0
    %115 = vmatprep.subr.mxu0 0.0
    %116 = vmatpush1.msra.mxu0 0.0
    %117 = vmatprep.subr.mxu0 0.0
    %118 = vmatpush1.msra.mxu0 0.0
    %119 = vmatprep.subr.mxu0 0.0
    %120 = vmatpush1.msra.mxu0 0.0
    %121 = vmatprep.subr.mxu0 0.0
    %122 = vmatpush1.msra.mxu0 0.0
    %123 = vmatprep.subr.mxu0 0.0
    %124 = vmatpush1.msra.mxu0 0.0
    %125 = vmatprep.subr.mxu0 0.0
    %126 = vmatpush1.msra.mxu0 0.0
    %127 = vmatprep.subr.mxu0 0.0
    %128 = vmatpush1.msra.mxu0 0.0
    %129 = vmatprep.subr.mxu0 0.0
    %130 = vmatpush1.msra.mxu0 0.0
    %131 = vmatprep.subr.mxu0 0.0
    %132 = vmatpush1.msra.mxu0 0.0
    %133 = vmatprep.mubr.f32.mxu0 0.0
    %134 = vmatmul.mubr.f32.gmra.mrb[0].mxu0 %v27
    %v135 = vpop.f32.mrb[0].mxu0
    %v136 = vadd.f32 %v68, %v135
    %v137 = vpop.f32.mrb[0].mxu0
    %138 = vmatprep.mubr.f32.mxu0 0.0
    %139 = vmatmul.mubr.f32.gmra.mrb[0].mxu0 %v28
    %v140 = vpop.f32.mrb[0].mxu0
    %v141 = vadd.f32 %v68, %v140
    %v142 = vpop.f32.mrb[0].mxu0
    %143 = vmatprep.mubr.f32.mxu0 0.0
    %144 = vmatmul.mubr.f32.gmra.mrb[0].mxu0 %v29
    %v145 = vpop.f32.mrb[0].mxu0
    %v146 = vadd.f32 %v68, %v145
    %v147 = vpop.f32.mrb[0].mxu0
    %148 = vmatprep.mubr.f32.mxu0 0.0
    %149 = vmatmul.mubr.f32.gmra.mrb[0].mxu0 %v30
    %v150 = vpop.f32.mrb[0].mxu0
    %v151 = vadd.f32 %v68, %v150
    %v152 = vpop.f32.mrb[0].mxu0
    %153 = vdwg.mxu0
    %v154 = vmax.f32 %v136, 0.0
    %v155 = vmax.f32 %v141, 0.0
    %v156 = vmax.f32 %v146, 0.0
    %v157 = vmax.f32 %v151, 0.0
    %160 = vrot.lane.b32.xlu0 %v154, 8
    %v161 = vpop.permute.xlu0 %160
    %162 = vrot.lane.b32.xlu0 %v155, 8
    %v163 = vpop.permute.xlu0 %162
    %vm166 = vcmask 64512
    %v167 = vsel %vm166, 0.0, %v161
    %v168 = vsel %vm166, 0.0, %v163
    %vm169 = vcmask 588800
    %v170 = vsel %vm169, %v167, 0.0
    %v171 = vsel %vm169, %v168, 0.0
    %vm174 = vcmask 1041408
    %v175 = vrot.slane %v170, 6
    %v176 = vrot.slane %v171, 6
    %v177 = vsel %vm174, %v175, %v176
    %v181 = vsel %vm174, 0.0, %v175
    %v182 = vsel %vm174, %v176, 0.0
    %v183 = vlaneseq
    %v184 = vshrl.u32 %v183, 7
    %v185 = vsub.s32 0, %v184
    %v186 = vrot.slane %v31, %v185
    %v187 = vmul.f32 %v181, %v186
    %v188 = vmul.f32 %v177, %v186
    %v189 = vadd.f32 %v187, 0.0
    %v190 = vadd.f32 %v188, 0.0
    %v191 = vlaneseq
    %v192 = vshrl.u32 %v191, 7
    %v193 = vsub.s32 5, %v192
    %v194 = vrot.slane %v31, %v193
    %v195 = vmul.f32 %v181, %v194
    %v196 = vmul.f32 %v177, %v194
    %v197 = vmul.f32 %v182, %v194
    %vm201 = vcmask 1046528
    %v202 = vrot.slane %v195, 1
    %v203 = vrot.slane %v196, 1
    %v204 = vsel %vm201, %v202, %v203
    %v205 = vrot.slane %v197, 1
    %v206 = vsel %vm201, %v203, %v205
    %v209 = vadd.f32 %v189, %v204
    %v210 = vadd.f32 %v190, %v206
    %v211 = vlaneseq
    %v212 = vshrl.u32 %v211, 7
    %v213 = vsub.s32 2, %v212
    %v214 = vrot.slane %v32, %v213
    %v215 = vmul.f32 %v181, %v214
    %v216 = vmul.f32 %v177, %v214
    %v217 = vmul.f32 %v182, %v214
    %vm221 = vcmask 1045504
    %v222 = vrot.slane %v215, 2
    %v223 = vrot.slane %v216, 2
    %v224 = vsel %vm221, %v222, %v223
    %v225 = vrot.slane %v217, 2
    %v226 = vsel %vm221, %v223, %v225
    %v229 = vadd.f32 %v209, %v224
    %v230 = vadd.f32 %v210, %v226
    %v231 = vlaneseq
    %v232 = vshrl.u32 %v231, 7
    %v233 = vsub.s32 7, %v232
    %v234 = vrot.slane %v32, %v233
    %v235 = vmul.f32 %v181, %v234
    %v236 = vmul.f32 %v177, %v234
    %v237 = vmul.f32 %v182, %v234
    %vm241 = vcmask 1044480
    %v242 = vrot.slane %v235, 3
    %v243 = vrot.slane %v236, 3
    %v244 = vsel %vm241, %v242, %v243
    %v245 = vrot.slane %v237, 3
    %v246 = vsel %vm241, %v243, %v245
    %v249 = vadd.f32 %v229, %v244
    %v250 = vadd.f32 %v230, %v246
    %v251 = vlaneseq
    %v252 = vshrl.u32 %v251, 7
    %v253 = vsub.s32 4, %v252
    %v254 = vrot.slane %v33, %v253
    %v255 = vmul.f32 %v181, %v254
    %v256 = vmul.f32 %v177, %v254
    %v257 = vmul.f32 %v182, %v254
    %vm261 = vcmask 1043456
    %v262 = vrot.slane %v255, 4
    %v263 = vrot.slane %v256, 4
    %v264 = vsel %vm261, %v262, %v263
    %v265 = vrot.slane %v257, 4
    %v266 = vsel %vm261, %v263, %v265
    %v269 = vadd.f32 %v249, %v264
    %v270 = vadd.f32 %v250, %v266
    %v271 = vlaneseq
    %v272 = vshrl.u32 %v271, 7
    %v273 = vsub.s32 1, %v272
    %v274 = vrot.slane %v31, %v273
    %276 = vrot.lane.b32.xlu0 %v274, 4
    %v277 = vpop.permute.xlu0 %276
    %v279 = vmul.f32 %v181, %v277
    %v280 = vmul.f32 %v177, %v277
    %283 = vrot.lane.b32.xlu0 %v279, 124
    %v284 = vpop.permute.xlu0 %283
    %285 = vrot.lane.b32.xlu0 %v280, 124
    %v286 = vpop.permute.xlu0 %285
    %v289 = vadd.f32 %v269, %v284
    %v290 = vadd.f32 %v270, %v286
    %v291 = vlaneseq
    %v292 = vshrl.u32 %v291, 7
    %v293 = vsub.s32 6, %v292
    %v294 = vrot.slane %v31, %v293
    %296 = vrot.lane.b32.xlu0 %v294, 4
    %v297 = vpop.permute.xlu0 %296
    %v299 = vmul.f32 %v181, %v297
    %v300 = vmul.f32 %v177, %v297
    %v301 = vmul.f32 %v182, %v297
    %v305 = vrot.slane %v299, 1
    %v306 = vrot.slane %v300, 1
    %v307 = vsel %vm201, %v305, %v306
    %v308 = vrot.slane %v301, 1
    %v309 = vsel %vm201, %v306, %v308
    %310 = vrot.lane.b32.xlu0 %v307, 124
    %v311 = vpop.permute.xlu0 %310
    %312 = vrot.lane.b32.xlu0 %v309, 124
    %v313 = vpop.permute.xlu0 %312
    %v316 = vadd.f32 %v289, %v311
    %v317 = vadd.f32 %v290, %v313
    %v318 = vlaneseq
    %v319 = vshrl.u32 %v318, 7
    %v320 = vsub.s32 3, %v319
    %v321 = vrot.slane %v32, %v320
    %323 = vrot.lane.b32.xlu0 %v321, 4
    %v324 = vpop.permute.xlu0 %323
    %v326 = vmul.f32 %v181, %v324
    %v327 = vmul.f32 %v177, %v324
    %v328 = vmul.f32 %v182, %v324
    %v332 = vrot.slane %v326, 2
    %v333 = vrot.slane %v327, 2
    %v334 = vsel %vm221, %v332, %v333
    %v335 = vrot.slane %v328, 2
    %v336 = vsel %vm221, %v333, %v335
    %337 = vrot.lane.b32.xlu0 %v334, 124
    %v338 = vpop.permute.xlu0 %337
    %339 = vrot.lane.b32.xlu0 %v336, 124
    %v340 = vpop.permute.xlu0 %339
    %v343 = vadd.f32 %v316, %v338
    %v344 = vadd.f32 %v317, %v340
    %v345 = vlaneseq
    %v346 = vshrl.u32 %v345, 7
    %v347 = vsub.s32 0, %v346
    %v348 = vrot.slane %v33, %v347
    %350 = vrot.lane.b32.xlu0 %v348, 4
    %v351 = vpop.permute.xlu0 %350
    %v353 = vmul.f32 %v181, %v351
    %v354 = vmul.f32 %v177, %v351
    %v355 = vmul.f32 %v182, %v351
    %v359 = vrot.slane %v353, 3
    %v360 = vrot.slane %v354, 3
    %v361 = vsel %vm241, %v359, %v360
    %v362 = vrot.slane %v355, 3
    %v363 = vsel %vm241, %v360, %v362
    %364 = vrot.lane.b32.xlu0 %v361, 124
    %v365 = vpop.permute.xlu0 %364
    %366 = vrot.lane.b32.xlu0 %v363, 124
    %v367 = vpop.permute.xlu0 %366
    %v370 = vadd.f32 %v343, %v365
    %v371 = vadd.f32 %v344, %v367
    %v372 = vlaneseq
    %v373 = vshrl.u32 %v372, 7
    %v374 = vsub.s32 5, %v373
    %v375 = vrot.slane %v33, %v374
    %377 = vrot.lane.b32.xlu0 %v375, 4
    %v378 = vpop.permute.xlu0 %377
    %v380 = vmul.f32 %v181, %v378
    %v381 = vmul.f32 %v177, %v378
    %v382 = vmul.f32 %v182, %v378
    %v386 = vrot.slane %v380, 4
    %v387 = vrot.slane %v381, 4
    %v388 = vsel %vm261, %v386, %v387
    %v389 = vrot.slane %v382, 4
    %v390 = vsel %vm261, %v387, %v389
    %391 = vrot.lane.b32.xlu0 %v388, 124
    %v392 = vpop.permute.xlu0 %391
    %393 = vrot.lane.b32.xlu0 %v390, 124
    %v394 = vpop.permute.xlu0 %393
    %v397 = vadd.f32 %v370, %v392
    %v398 = vadd.f32 %v371, %v394
    %v399 = vlaneseq
    %v400 = vshrl.u32 %v399, 7
    %v401 = vsub.s32 2, %v400
    %v402 = vrot.slane %v31, %v401
    %404 = vrot.lane.b32.xlu0 %v402, 8
    %v405 = vpop.permute.xlu0 %404
    %v407 = vmul.f32 %v181, %v405
    %v408 = vmul.f32 %v177, %v405
    %411 = vrot.lane.b32.xlu0 %v407, 120
    %v412 = vpop.permute.xlu0 %411
    %413 = vrot.lane.b32.xlu0 %v408, 120
    %v414 = vpop.permute.xlu0 %413
    %v417 = vadd.f32 %v397, %v412
    %v418 = vadd.f32 %v398, %v414
    %v419 = vlaneseq
    %v420 = vshrl.u32 %v419, 7
    %v421 = vsub.s32 7, %v420
    %v422 = vrot.slane %v31, %v421
    %424 = vrot.lane.b32.xlu0 %v422, 8
    %v425 = vpop.permute.xlu0 %424
    %v427 = vmul.f32 %v181, %v425
    %v428 = vmul.f32 %v177, %v425
    %v429 = vmul.f32 %v182, %v425
    %v433 = vrot.slane %v427, 1
    %v434 = vrot.slane %v428, 1
    %v435 = vsel %vm201, %v433, %v434
    %v436 = vrot.slane %v429, 1
    %v437 = vsel %vm201, %v434, %v436
    %438 = vrot.lane.b32.xlu0 %v435, 120
    %v439 = vpop.permute.xlu0 %438
    %440 = vrot.lane.b32.xlu0 %v437, 120
    %v441 = vpop.permute.xlu0 %440
    %v444 = vadd.f32 %v417, %v439
    %v445 = vadd.f32 %v418, %v441
    %v446 = vlaneseq
    %v447 = vshrl.u32 %v446, 7
    %v448 = vsub.s32 4, %v447
    %v449 = vrot.slane %v32, %v448
    %451 = vrot.lane.b32.xlu0 %v449, 8
    %v452 = vpop.permute.xlu0 %451
    %v454 = vmul.f32 %v181, %v452
    %v455 = vmul.f32 %v177, %v452
    %v456 = vmul.f32 %v182, %v452
    %v460 = vrot.slane %v454, 2
    %v461 = vrot.slane %v455, 2
    %v462 = vsel %vm221, %v460, %v461
    %v463 = vrot.slane %v456, 2
    %v464 = vsel %vm221, %v461, %v463
    %465 = vrot.lane.b32.xlu0 %v462, 120
    %v466 = vpop.permute.xlu0 %465
    %467 = vrot.lane.b32.xlu0 %v464, 120
    %v468 = vpop.permute.xlu0 %467
    %v471 = vadd.f32 %v444, %v466
    %v472 = vadd.f32 %v445, %v468
    %v473 = vlaneseq
    %v474 = vshrl.u32 %v473, 7
    %v475 = vsub.s32 1, %v474
    %v476 = vrot.slane %v33, %v475
    %478 = vrot.lane.b32.xlu0 %v476, 8
    %v479 = vpop.permute.xlu0 %478
    %v481 = vmul.f32 %v181, %v479
    %v482 = vmul.f32 %v177, %v479
    %v483 = vmul.f32 %v182, %v479
    %v487 = vrot.slane %v481, 3
    %v488 = vrot.slane %v482, 3
    %v489 = vsel %vm241, %v487, %v488
    %v490 = vrot.slane %v483, 3
    %v491 = vsel %vm241, %v488, %v490
    %492 = vrot.lane.b32.xlu0 %v489, 120
    %v493 = vpop.permute.xlu0 %492
    %494 = vrot.lane.b32.xlu0 %v491, 120
    %v495 = vpop.permute.xlu0 %494
    %v498 = vadd.f32 %v471, %v493
    %v499 = vadd.f32 %v472, %v495
    %v500 = vlaneseq
    %v501 = vshrl.u32 %v500, 7
    %v502 = vsub.s32 6, %v501
    %v503 = vrot.slane %v33, %v502
    %505 = vrot.lane.b32.xlu0 %v503, 8
    %v506 = vpop.permute.xlu0 %505
    %v508 = vmul.f32 %v181, %v506
    %v509 = vmul.f32 %v177, %v506
    %v510 = vmul.f32 %v182, %v506
    %v514 = vrot.slane %v508, 4
    %v515 = vrot.slane %v509, 4
    %v516 = vsel %vm261, %v514, %v515
    %v517 = vrot.slane %v510, 4
    %v518 = vsel %vm261, %v515, %v517
    %519 = vrot.lane.b32.xlu0 %v516, 120
    %v520 = vpop.permute.xlu0 %519
    %521 = vrot.lane.b32.xlu0 %v518, 120
    %v522 = vpop.permute.xlu0 %521
    %v525 = vadd.f32 %v498, %v520
    %v526 = vadd.f32 %v499, %v522
    %v527 = vlaneseq
    %v528 = vshrl.u32 %v527, 7
    %v529 = vsub.s32 3, %v528
    %v530 = vrot.slane %v31, %v529
    %532 = vrot.lane.b32.xlu0 %v530, 12
    %v533 = vpop.permute.xlu0 %532
    %v535 = vmul.f32 %v181, %v533
    %v536 = vmul.f32 %v177, %v533
    %539 = vrot.lane.b32.xlu0 %v535, 116
    %v540 = vpop.permute.xlu0 %539
    %541 = vrot.lane.b32.xlu0 %v536, 116
    %v542 = vpop.permute.xlu0 %541
    %v545 = vadd.f32 %v525, %v540
    %v546 = vadd.f32 %v526, %v542
    %v547 = vlaneseq
    %v548 = vshrl.u32 %v547, 7
    %v549 = vsub.s32 0, %v548
    %v550 = vrot.slane %v32, %v549
    %552 = vrot.lane.b32.xlu0 %v550, 12
    %v553 = vpop.permute.xlu0 %552
    %v555 = vmul.f32 %v181, %v553
    %v556 = vmul.f32 %v177, %v553
    %v557 = vmul.f32 %v182, %v553
    %v561 = vrot.slane %v555, 1
    %v562 = vrot.slane %v556, 1
    %v563 = vsel %vm201, %v561, %v562
    %v564 = vrot.slane %v557, 1
    %v565 = vsel %vm201, %v562, %v564
    %566 = vrot.lane.b32.xlu0 %v563, 116
    %v567 = vpop.permute.xlu0 %566
    %568 = vrot.lane.b32.xlu0 %v565, 116
    %v569 = vpop.permute.xlu0 %568
    %v572 = vadd.f32 %v545, %v567
    %v573 = vadd.f32 %v546, %v569
    %v574 = vlaneseq
    %v575 = vshrl.u32 %v574, 7
    %v576 = vsub.s32 5, %v575
    %v577 = vrot.slane %v32, %v576
    %579 = vrot.lane.b32.xlu0 %v577, 12
    %v580 = vpop.permute.xlu0 %579
    %v582 = vmul.f32 %v181, %v580
    %v583 = vmul.f32 %v177, %v580
    %v584 = vmul.f32 %v182, %v580
    %v588 = vrot.slane %v582, 2
    %v589 = vrot.slane %v583, 2
    %v590 = vsel %vm221, %v588, %v589
    %v591 = vrot.slane %v584, 2
    %v592 = vsel %vm221, %v589, %v591
    %593 = vrot.lane.b32.xlu0 %v590, 116
    %v594 = vpop.permute.xlu0 %593
    %595 = vrot.lane.b32.xlu0 %v592, 116
    %v596 = vpop.permute.xlu0 %595
    %v599 = vadd.f32 %v572, %v594
    %v600 = vadd.f32 %v573, %v596
    %v601 = vlaneseq
    %v602 = vshrl.u32 %v601, 7
    %v603 = vsub.s32 2, %v602
    %v604 = vrot.slane %v33, %v603
    %606 = vrot.lane.b32.xlu0 %v604, 12
    %v607 = vpop.permute.xlu0 %606
    %v609 = vmul.f32 %v181, %v607
    %v610 = vmul.f32 %v177, %v607
    %v611 = vmul.f32 %v182, %v607
    %v615 = vrot.slane %v609, 3
    %v616 = vrot.slane %v610, 3
    %v617 = vsel %vm241, %v615, %v616
    %v618 = vrot.slane %v611, 3
    %v619 = vsel %vm241, %v616, %v618
    %620 = vrot.lane.b32.xlu0 %v617, 116
    %v621 = vpop.permute.xlu0 %620
    %622 = vrot.lane.b32.xlu0 %v619, 116
    %v623 = vpop.permute.xlu0 %622
    %v626 = vadd.f32 %v599, %v621
    %v627 = vadd.f32 %v600, %v623
    %v628 = vlaneseq
    %v629 = vshrl.u32 %v628, 7
    %v630 = vsub.s32 7, %v629
    %v631 = vrot.slane %v33, %v630
    %633 = vrot.lane.b32.xlu0 %v631, 12
    %v634 = vpop.permute.xlu0 %633
    %v636 = vmul.f32 %v181, %v634
    %v637 = vmul.f32 %v177, %v634
    %v638 = vmul.f32 %v182, %v634
    %v642 = vrot.slane %v636, 4
    %v643 = vrot.slane %v637, 4
    %v644 = vsel %vm261, %v642, %v643
    %v645 = vrot.slane %v638, 4
    %v646 = vsel %vm261, %v643, %v645
    %647 = vrot.lane.b32.xlu0 %v644, 116
    %v648 = vpop.permute.xlu0 %647
    %649 = vrot.lane.b32.xlu0 %v646, 116
    %v650 = vpop.permute.xlu0 %649
    %v653 = vadd.f32 %v626, %v648
    %v654 = vadd.f32 %v627, %v650
    %v655 = vlaneseq
    %v656 = vshrl.u32 %v655, 7
    %v657 = vsub.s32 4, %v656
    %v658 = vrot.slane %v31, %v657
    %660 = vrot.lane.b32.xlu0 %v658, 16
    %v661 = vpop.permute.xlu0 %660
    %v663 = vmul.f32 %v181, %v661
    %v664 = vmul.f32 %v177, %v661
    %667 = vrot.lane.b32.xlu0 %v663, 112
    %v668 = vpop.permute.xlu0 %667
    %669 = vrot.lane.b32.xlu0 %v664, 112
    %v670 = vpop.permute.xlu0 %669
    %v673 = vadd.f32 %v653, %v668
    %v674 = vadd.f32 %v654, %v670
    %v675 = vlaneseq
    %v676 = vshrl.u32 %v675, 7
    %v677 = vsub.s32 1, %v676
    %v678 = vrot.slane %v32, %v677
    %680 = vrot.lane.b32.xlu0 %v678, 16
    %v681 = vpop.permute.xlu0 %680
    %v683 = vmul.f32 %v181, %v681
    %v684 = vmul.f32 %v177, %v681
    %v685 = vmul.f32 %v182, %v681
    %v689 = vrot.slane %v683, 1
    %v690 = vrot.slane %v684, 1
    %v691 = vsel %vm201, %v689, %v690
    %v692 = vrot.slane %v685, 1
    %v693 = vsel %vm201, %v690, %v692
    %694 = vrot.lane.b32.xlu0 %v691, 112
    %v695 = vpop.permute.xlu0 %694
    %696 = vrot.lane.b32.xlu0 %v693, 112
    %v697 = vpop.permute.xlu0 %696
    %v700 = vadd.f32 %v673, %v695
    %v701 = vadd.f32 %v674, %v697
    %v702 = vlaneseq
    %v703 = vshrl.u32 %v702, 7
    %v704 = vsub.s32 6, %v703
    %v705 = vrot.slane %v32, %v704
    %707 = vrot.lane.b32.xlu0 %v705, 16
    %v708 = vpop.permute.xlu0 %707
    %v710 = vmul.f32 %v181, %v708
    %v711 = vmul.f32 %v177, %v708
    %v712 = vmul.f32 %v182, %v708
    %v716 = vrot.slane %v710, 2
    %v717 = vrot.slane %v711, 2
    %v718 = vsel %vm221, %v716, %v717
    %v719 = vrot.slane %v712, 2
    %v720 = vsel %vm221, %v717, %v719
    %721 = vrot.lane.b32.xlu0 %v718, 112
    %v722 = vpop.permute.xlu0 %721
    %723 = vrot.lane.b32.xlu0 %v720, 112
    %v724 = vpop.permute.xlu0 %723
    %v727 = vadd.f32 %v700, %v722
    %v728 = vadd.f32 %v701, %v724
    %v729 = vlaneseq
    %v730 = vshrl.u32 %v729, 7
    %v731 = vsub.s32 3, %v730
    %v732 = vrot.slane %v33, %v731
    %734 = vrot.lane.b32.xlu0 %v732, 16
    %v735 = vpop.permute.xlu0 %734
    %v737 = vmul.f32 %v181, %v735
    %v738 = vmul.f32 %v177, %v735
    %v739 = vmul.f32 %v182, %v735
    %v743 = vrot.slane %v737, 3
    %v744 = vrot.slane %v738, 3
    %v745 = vsel %vm241, %v743, %v744
    %v746 = vrot.slane %v739, 3
    %v747 = vsel %vm241, %v744, %v746
    %748 = vrot.lane.b32.xlu0 %v745, 112
    %v749 = vpop.permute.xlu0 %748
    %750 = vrot.lane.b32.xlu0 %v747, 112
    %v751 = vpop.permute.xlu0 %750
    %v754 = vadd.f32 %v727, %v749
    %v755 = vadd.f32 %v728, %v751
    %v756 = vlaneseq
    %v757 = vshrl.u32 %v756, 7
    %v758 = vsub.s32 0, %v757
    %v759 = vrot.slane %v34, %v758
    %761 = vrot.lane.b32.xlu0 %v759, 16
    %v762 = vpop.permute.xlu0 %761
    %v764 = vmul.f32 %v181, %v762
    %v765 = vmul.f32 %v177, %v762
    %v766 = vmul.f32 %v182, %v762
    %v770 = vrot.slane %v764, 4
    %v771 = vrot.slane %v765, 4
    %v772 = vsel %vm261, %v770, %v771
    %v773 = vrot.slane %v766, 4
    %v774 = vsel %vm261, %v771, %v773
    %775 = vrot.lane.b32.xlu0 %v772, 112
    %v776 = vpop.permute.xlu0 %775
    %777 = vrot.lane.b32.xlu0 %v774, 112
    %v778 = vpop.permute.xlu0 %777
    %v781 = vadd.f32 %v754, %v776
    %v782 = vadd.f32 %v755, %v778
    %v783 = vlaneseq
    %v784 = vshrl.u32 %v783, 7
    %v785 = vsub.s32 1, %v784
    %v786 = vrot.slane %v39, %v785
    %v787 = vadd.f32 %v781, %v786
    %v788 = vadd.f32 %v782, %v786
    %v789 = vmax.f32 %v787, 0.0
    %v790 = vmax.f32 %v788, 0.0
    %793 = vrot.lane.b32.xlu0 %v789, 2
    %v794 = vpop.permute.xlu0 %793
    %795 = vrot.lane.b32.xlu0 %v790, 2
    %v796 = vpop.permute.xlu0 %795
    %vm799 = vcmask 15360
    %v800 = vsel %vm799, 0.0, %v794
    %v801 = vsel %vm799, 0.0, %v796
    %v802 = vadd.f32 %v154, %v800
    %v803 = vadd.f32 %v155, %v801
    %v804 = vlaneseq
    %v805 = vshrl.u32 %v804, 7
    %v806 = vsub.s32 0, %v805
    %v807 = vrot.slane %v40, %v806
    %vm808 = vcmask 523264
    %v810 = vsel %vm808, %v802, 0
    %v813 = vsel %vm808, %v803, 0
    %815 = vmatprep.subr.mxu0 0.0
    %816 = vmatpush1.msra.mxu0 %v41
    %817 = vmatprep.subr.mxu0 0.0
    %818 = vmatpush1.msra.mxu0 %v42
    %819 = vmatprep.subr.mxu0 0.0
    %820 = vmatpush1.msra.mxu0 %v43
    %821 = vmatprep.subr.mxu0 0.0
    %822 = vmatpush1.msra.mxu0 %v44
    %823 = vmatprep.subr.mxu0 0.0
    %824 = vmatpush1.msra.mxu0 %v45
    %825 = vmatprep.subr.mxu0 0.0
    %826 = vmatpush1.msra.mxu0 %v46
    %827 = vmatprep.subr.mxu0 0.0
    %828 = vmatpush1.msra.mxu0 %v47
    %829 = vmatprep.subr.mxu0 0.0
    %830 = vmatpush1.msra.mxu0 %v48
    %831 = vmatprep.subr.mxu0 0.0
    %832 = vmatpush1.msra.mxu0 0.0
    %833 = vmatprep.subr.mxu0 0.0
    %834 = vmatpush1.msra.mxu0 0.0
    %835 = vmatprep.subr.mxu0 0.0
    %836 = vmatpush1.msra.mxu0 0.0
    %837 = vmatprep.subr.mxu0 0.0
    %838 = vmatpush1.msra.mxu0 0.0
    %839 = vmatprep.subr.mxu0 0.0
    %840 = vmatpush1.msra.mxu0 0.0
    %841 = vmatprep.subr.mxu0 0.0
    %842 = vmatpush1.msra.mxu0 0.0
    %843 = vmatprep.subr.mxu0 0.0
    %844 = vmatpush1.msra.mxu0 0.0
    %845 = vmatprep.subr.mxu0 0.0
    %846 = vmatpush1.msra.mxu0 0.0
    %847 = vmatprep.subr.mxu0 0.0
    %848 = vmatpush1.msra.mxu0 0.0
    %849 = vmatprep.subr.mxu0 0.0
    %850 = vmatpush1.msra.mxu0 0.0
    %851 = vmatprep.subr.mxu0 0.0
    %852 = vmatpush1.msra.mxu0 0.0
    %853 = vmatprep.subr.mxu0 0.0
    %854 = vmatpush1.msra.mxu0 0.0
    %855 = vmatprep.subr.mxu0 0.0
    %856 = vmatpush1.msra.mxu0 0.0
    %857 = vmatprep.subr.mxu0 0.0
    %858 = vmatpush1.msra.mxu0 0.0
    %859 = vmatprep.subr.mxu0 0.0
    %860 = vmatpush1.msra.mxu0 0.0
    %861 = vmatprep.subr.mxu0 0.0
    %862 = vmatpush1.msra.mxu0 0.0
    %863 = vmatprep.subr.mxu0 0.0
    %864 = vmatpush1.msra.mxu0 0.0
    %865 = vmatprep.subr.mxu0 0.0
    %866 = vmatpush1.msra.mxu0 0.0
    %867 = vmatprep.subr.mxu0 0.0
    %868 = vmatpush1.msra.mxu0 0.0
    %869 = vmatprep.subr.mxu0 0.0
    %870 = vmatpush1.msra.mxu0 0.0
    %871 = vmatprep.subr.mxu0 0.0
    %872 = vmatpush1.msra.mxu0 0.0
    %873 = vmatprep.subr.mxu0 0.0
    %874 = vmatpush1.msra.mxu0 0.0
    %875 = vmatprep.subr.mxu0 0.0
    %876 = vmatpush1.msra.mxu0 0.0
    %877 = vmatprep.subr.mxu0 0.0
    %878 = vmatpush1.msra.mxu0 0.0
    %879 = vmatprep.mubr.f32.mxu0 0.0
    %880 = vmatmul.mubr.f32.gmra.mrb[0].mxu0 %v810
    %v881 = vpop.f32.mrb[0].mxu0
    %v882 = vadd.f32 %v807, %v881
    %v883 = vpop.f32.mrb[0].mxu0
    %884 = vmatprep.mubr.f32.mxu0 0.0
    %885 = vmatmul.mubr.f32.gmra.mrb[0].mxu0 %v813
    %v886 = vpop.f32.mrb[0].mxu0
    %v887 = vadd.f32 %v807, %v886
    %v888 = vpop.f32.mrb[0].mxu0
    %889 = vdwg.mxu0
    %892 = vrot.lane.b32.xlu0 %v882, 16
    %v893 = vpop.permute.xlu0 %892
    %894 = vrot.lane.b32.xlu0 %v887, 16
    %v895 = vpop.permute.xlu0 %894
    %vm898 = vcmask 130048
    %v899 = vsel %vm898, 0.0, %v893
    %v900 = vsel %vm898, 0.0, %v895
    %v901 = vsel %vm898, %v893, 0.0
    %v902 = vsel %vm898, %v895, 0.0
    %v907 = vrot.slane %v899, 6
    %v908 = vrot.slane %v901, 6
    %v909 = vrot.slane %v900, 6
    %v910 = vsel %vm174, %v907, %v909
    %v911 = vrot.slane %v902, 6
    %v912 = vsel %vm174, %v908, %v911
    %v919 = vsel %vm174, 0.0, %v907
    %v920 = vsel %vm174, 0.0, %v908
    %v921 = vsel %vm174, %v909, 0.0
    %v922 = vsel %vm174, %v911, 0.0
    %v923 = vlaneseq
    %v924 = vshrl.u32 %v923, 7
    %v925 = vsub.s32 0, %v924
    %v926 = vrot.slane %v35, %v925
    %v927 = vmul.f32 %v919, %v926
    %v928 = vmul.f32 %v910, %v926
    %v929 = vadd.f32 %v927, 0.0
    %v930 = vadd.f32 %v928, 0.0
    %v931 = vlaneseq
    %v932 = vshrl.u32 %v931, 7
    %v933 = vsub.s32 5, %v932
    %v934 = vrot.slane %v35, %v933
    %v935 = vmul.f32 %v919, %v934
    %v936 = vmul.f32 %v910, %v934
    %v937 = vmul.f32 %v921, %v934
    %v941 = vrot.slane %v935, 1
    %v942 = vrot.slane %v936, 1
    %v943 = vsel %vm201, %v941, %v942
    %v944 = vrot.slane %v937, 1
    %v945 = vsel %vm201, %v942, %v944
    %v948 = vadd.f32 %v929, %v943
    %v949 = vadd.f32 %v930, %v945
    %v950 = vlaneseq
    %v951 = vshrl.u32 %v950, 7
    %v952 = vsub.s32 2, %v951
    %v953 = vrot.slane %v36, %v952
    %v954 = vmul.f32 %v919, %v953
    %v955 = vmul.f32 %v910, %v953
    %v956 = vmul.f32 %v921, %v953
    %v960 = vrot.slane %v954, 2
    %v961 = vrot.slane %v955, 2
    %v962 = vsel %vm221, %v960, %v961
    %v963 = vrot.slane %v956, 2
    %v964 = vsel %vm221, %v961, %v963
    %v967 = vadd.f32 %v948, %v962
    %v968 = vadd.f32 %v949, %v964
    %v969 = vlaneseq
    %v970 = vshrl.u32 %v969, 7
    %v971 = vsub.s32 7, %v970
    %v972 = vrot.slane %v36, %v971
    %v973 = vmul.f32 %v919, %v972
    %v974 = vmul.f32 %v910, %v972
    %v975 = vmul.f32 %v921, %v972
    %v979 = vrot.slane %v973, 3
    %v980 = vrot.slane %v974, 3
    %v981 = vsel %vm241, %v979, %v980
    %v982 = vrot.slane %v975, 3
    %v983 = vsel %vm241, %v980, %v982
    %v986 = vadd.f32 %v967, %v981
    %v987 = vadd.f32 %v968, %v983
    %v988 = vlaneseq
    %v989 = vshrl.u32 %v988, 7
    %v990 = vsub.s32 4, %v989
    %v991 = vrot.slane %v37, %v990
    %v992 = vmul.f32 %v919, %v991
    %v993 = vmul.f32 %v910, %v991
    %v994 = vmul.f32 %v921, %v991
    %v998 = vrot.slane %v992, 4
    %v999 = vrot.slane %v993, 4
    %v1000 = vsel %vm261, %v998, %v999
    %v1001 = vrot.slane %v994, 4
    %v1002 = vsel %vm261, %v999, %v1001
    %v1005 = vadd.f32 %v986, %v1000
    %v1006 = vadd.f32 %v987, %v1002
    %v1007 = vlaneseq
    %v1008 = vshrl.u32 %v1007, 7
    %v1009 = vsub.s32 1, %v1008
    %v1010 = vrot.slane %v35, %v1009
    %1012 = vrot.lane.b32.xlu0 %v1010, 8
    %v1013 = vpop.permute.xlu0 %1012
    %v1015 = vmul.f32 %v919, %v1013
    %v1016 = vmul.f32 %v920, %v1013
    %v1017 = vmul.f32 %v910, %v1013
    %v1018 = vmul.f32 %v912, %v1013
    %1023 = vrot.lane.b32.xlu0 %v1015, 120
    %v1024 = vpop.permute.xlu0 %1023
    %1025 = vrot.lane.b32.xlu0 %v1016, 120
    %v1026 = vpop.permute.xlu0 %1025
    %1027 = vrot.lane.b32.xlu0 %v1017, 120
    %v1028 = vpop.permute.xlu0 %1027
    %1029 = vrot.lane.b32.xlu0 %v1018, 120
    %v1030 = vpop.permute.xlu0 %1029
    %vm1031 = vcmask 982016
    %v1032 = vsel %vm1031, %v1024, %v1026
    %v1033 = vsel %vm1031, %v1028, %v1030
    %v1036 = vadd.f32 %v1005, %v1032
    %v1037 = vadd.f32 %v1006, %v1033
    %v1038 = vlaneseq
    %v1039 = vshrl.u32 %v1038, 7
    %v1040 = vsub.s32 6, %v1039
    %v1041 = vrot.slane %v35, %v1040
    %1043 = vrot.lane.b32.xlu0 %v1041, 8
    %v1044 = vpop.permute.xlu0 %1043
    %v1046 = vmul.f32 %v919, %v1044
    %v1047 = vmul.f32 %v920, %v1044
    %v1048 = vmul.f32 %v910, %v1044
    %v1049 = vmul.f32 %v912, %v1044
    %v1050 = vmul.f32 %v921, %v1044
    %v1051 = vmul.f32 %v922, %v1044
    %v1058 = vrot.slane %v1046, 1
    %v1059 = vrot.slane %v1048, 1
    %v1060 = vsel %vm201, %v1058, %v1059
    %v1061 = vrot.slane %v1047, 1
    %v1062 = vrot.slane %v1049, 1
    %v1063 = vsel %vm201, %v1061, %v1062
    %v1064 = vrot.slane %v1050, 1
    %v1065 = vsel %vm201, %v1059, %v1064
    %v1066 = vrot.slane %v1051, 1
    %v1067 = vsel %vm201, %v1062, %v1066
    %1068 = vrot.lane.b32.xlu0 %v1060, 120
    %v1069 = vpop.permute.xlu0 %1068
    %1070 = vrot.lane.b32.xlu0 %v1063, 120
    %v1071 = vpop.permute.xlu0 %1070
    %1072 = vrot.lane.b32.xlu0 %v1065, 120
    %v1073 = vpop.permute.xlu0 %1072
    %1074 = vrot.lane.b32.xlu0 %v1067, 120
    %v1075 = vpop.permute.xlu0 %1074
    %v1076 = vsel %vm1031, %v1069, %v1071
    %v1077 = vsel %vm1031, %v1073, %v1075
    %v1080 = vadd.f32 %v1036, %v1076
    %v1081 = vadd.f32 %v1037, %v1077
    %v1082 = vlaneseq
    %v1083 = vshrl.u32 %v1082, 7
    %v1084 = vsub.s32 3, %v1083
    %v1085 = vrot.slane %v36, %v1084
    %1087 = vrot.lane.b32.xlu0 %v1085, 8
    %v1088 = vpop.permute.xlu0 %1087
    %v1090 = vmul.f32 %v919, %v1088
    %v1091 = vmul.f32 %v920, %v1088
    %v1092 = vmul.f32 %v910, %v1088
    %v1093 = vmul.f32 %v912, %v1088
    %v1094 = vmul.f32 %v921, %v1088
    %v1095 = vmul.f32 %v922, %v1088
    %v1102 = vrot.slane %v1090, 2
    %v1103 = vrot.slane %v1092, 2
    %v1104 = vsel %vm221, %v1102, %v1103
    %v1105 = vrot.slane %v1091, 2
    %v1106 = vrot.slane %v1093, 2
    %v1107 = vsel %vm221, %v1105, %v1106
    %v1108 = vrot.slane %v1094, 2
    %v1109 = vsel %vm221, %v1103, %v1108
    %v1110 = vrot.slane %v1095, 2
    %v1111 = vsel %vm221, %v1106, %v1110
    %1112 = vrot.lane.b32.xlu0 %v1104, 120
    %v1113 = vpop.permute.xlu0 %1112
    %1114 = vrot.lane.b32.xlu0 %v1107, 120
    %v1115 = vpop.permute.xlu0 %1114
    %1116 = vrot.lane.b32.xlu0 %v1109, 120
    %v1117 = vpop.permute.xlu0 %1116
    %1118 = vrot.lane.b32.xlu0 %v1111, 120
    %v1119 = vpop.permute.xlu0 %1118
    %v1120 = vsel %vm1031, %v1113, %v1115
    %v1121 = vsel %vm1031, %v1117, %v1119
    %v1124 = vadd.f32 %v1080, %v1120
    %v1125 = vadd.f32 %v1081, %v1121
    %v1126 = vlaneseq
    %v1127 = vshrl.u32 %v1126, 7
    %v1128 = vsub.s32 0, %v1127
    %v1129 = vrot.slane %v37, %v1128
    %1131 = vrot.lane.b32.xlu0 %v1129, 8
    %v1132 = vpop.permute.xlu0 %1131
    %v1134 = vmul.f32 %v919, %v1132
    %v1135 = vmul.f32 %v920, %v1132
    %v1136 = vmul.f32 %v910, %v1132
    %v1137 = vmul.f32 %v912, %v1132
    %v1138 = vmul.f32 %v921, %v1132
    %v1139 = vmul.f32 %v922, %v1132
    %v1146 = vrot.slane %v1134, 3
    %v1147 = vrot.slane %v1136, 3
    %v1148 = vsel %vm241, %v1146, %v1147
    %v1149 = vrot.slane %v1135, 3
    %v1150 = vrot.slane %v1137, 3
    %v1151 = vsel %vm241, %v1149, %v1150
    %v1152 = vrot.slane %v1138, 3
    %v1153 = vsel %vm241, %v1147, %v1152
    %v1154 = vrot.slane %v1139, 3
    %v1155 = vsel %vm241, %v1150, %v1154
    %1156 = vrot.lane.b32.xlu0 %v1148, 120
    %v1157 = vpop.permute.xlu0 %1156
    %1158 = vrot.lane.b32.xlu0 %v1151, 120
    %v1159 = vpop.permute.xlu0 %1158
    %1160 = vrot.lane.b32.xlu0 %v1153, 120
    %v1161 = vpop.permute.xlu0 %1160
    %1162 = vrot.lane.b32.xlu0 %v1155, 120
    %v1163 = vpop.permute.xlu0 %1162
    %v1164 = vsel %vm1031, %v1157, %v1159
    %v1165 = vsel %vm1031, %v1161, %v1163
    %v1168 = vadd.f32 %v1124, %v1164
    %v1169 = vadd.f32 %v1125, %v1165
    %v1170 = vlaneseq
    %v1171 = vshrl.u32 %v1170, 7
    %v1172 = vsub.s32 5, %v1171
    %v1173 = vrot.slane %v37, %v1172
    %1175 = vrot.lane.b32.xlu0 %v1173, 8
    %v1176 = vpop.permute.xlu0 %1175
    %v1178 = vmul.f32 %v919, %v1176
    %v1179 = vmul.f32 %v920, %v1176
    %v1180 = vmul.f32 %v910, %v1176
    %v1181 = vmul.f32 %v912, %v1176
    %v1182 = vmul.f32 %v921, %v1176
    %v1183 = vmul.f32 %v922, %v1176
    %v1190 = vrot.slane %v1178, 4
    %v1191 = vrot.slane %v1180, 4
    %v1192 = vsel %vm261, %v1190, %v1191
    %v1193 = vrot.slane %v1179, 4
    %v1194 = vrot.slane %v1181, 4
    %v1195 = vsel %vm261, %v1193, %v1194
    %v1196 = vrot.slane %v1182, 4
    %v1197 = vsel %vm261, %v1191, %v1196
    %v1198 = vrot.slane %v1183, 4
    %v1199 = vsel %vm261, %v1194, %v1198
    %1200 = vrot.lane.b32.xlu0 %v1192, 120
    %v1201 = vpop.permute.xlu0 %1200
    %1202 = vrot.lane.b32.xlu0 %v1195, 120
    %v1203 = vpop.permute.xlu0 %1202
    %1204 = vrot.lane.b32.xlu0 %v1197, 120
    %v1205 = vpop.permute.xlu0 %1204
    %1206 = vrot.lane.b32.xlu0 %v1199, 120
    %v1207 = vpop.permute.xlu0 %1206
    %v1208 = vsel %vm1031, %v1201, %v1203
    %v1209 = vsel %vm1031, %v1205, %v1207
    %v1212 = vadd.f32 %v1168, %v1208
    %v1213 = vadd.f32 %v1169, %v1209
    %v1214 = vlaneseq
    %v1215 = vshrl.u32 %v1214, 7
    %v1216 = vsub.s32 2, %v1215
    %v1217 = vrot.slane %v35, %v1216
    %1219 = vrot.lane.b32.xlu0 %v1217, 16
    %v1220 = vpop.permute.xlu0 %1219
    %v1222 = vmul.f32 %v919, %v1220
    %v1223 = vmul.f32 %v920, %v1220
    %v1224 = vmul.f32 %v910, %v1220
    %v1225 = vmul.f32 %v912, %v1220
    %1230 = vrot.lane.b32.xlu0 %v1222, 112
    %v1231 = vpop.permute.xlu0 %1230
    %1232 = vrot.lane.b32.xlu0 %v1223, 112
    %v1233 = vpop.permute.xlu0 %1232
    %1234 = vrot.lane.b32.xlu0 %v1224, 112
    %v1235 = vpop.permute.xlu0 %1234
    %1236 = vrot.lane.b32.xlu0 %v1225, 112
    %v1237 = vpop.permute.xlu0 %1236
    %vm1238 = vcmask 916480
    %v1239 = vsel %vm1238, %v1231, %v1233
    %v1240 = vsel %vm1238, %v1235, %v1237
    %v1243 = vadd.f32 %v1212, %v1239
    %v1244 = vadd.f32 %v1213, %v1240
    %v1245 = vlaneseq
    %v1246 = vshrl.u32 %v1245, 7
    %v1247 = vsub.s32 7, %v1246
    %v1248 = vrot.slane %v35, %v1247
    %1250 = vrot.lane.b32.xlu0 %v1248, 16
    %v1251 = vpop.permute.xlu0 %1250
    %v1253 = vmul.f32 %v919, %v1251
    %v1254 = vmul.f32 %v920, %v1251
    %v1255 = vmul.f32 %v910, %v1251
    %v1256 = vmul.f32 %v912, %v1251
    %v1257 = vmul.f32 %v921, %v1251
    %v1258 = vmul.f32 %v922, %v1251
    %v1265 = vrot.slane %v1253, 1
    %v1266 = vrot.slane %v1255, 1
    %v1267 = vsel %vm201, %v1265, %v1266
    %v1268 = vrot.slane %v1254, 1
    %v1269 = vrot.slane %v1256, 1
    %v1270 = vsel %vm201, %v1268, %v1269
    %v1271 = vrot.slane %v1257, 1
    %v1272 = vsel %vm201, %v1266, %v1271
    %v1273 = vrot.slane %v1258, 1
    %v1274 = vsel %vm201, %v1269, %v1273
    %1275 = vrot.lane.b32.xlu0 %v1267, 112
    %v1276 = vpop.permute.xlu0 %1275
    %1277 = vrot.lane.b32.xlu0 %v1270, 112
    %v1278 = vpop.permute.xlu0 %1277
    %1279 = vrot.lane.b32.xlu0 %v1272, 112
    %v1280 = vpop.permute.xlu0 %1279
    %1281 = vrot.lane.b32.xlu0 %v1274, 112
    %v1282 = vpop.permute.xlu0 %1281
    %v1283 = vsel %vm1238, %v1276, %v1278
    %v1284 = vsel %vm1238, %v1280, %v1282
    %v1287 = vadd.f32 %v1243, %v1283
    %v1288 = vadd.f32 %v1244, %v1284
    %v1289 = vlaneseq
    %v1290 = vshrl.u32 %v1289, 7
    %v1291 = vsub.s32 4, %v1290
    %v1292 = vrot.slane %v36, %v1291
    %1294 = vrot.lane.b32.xlu0 %v1292, 16
    %v1295 = vpop.permute.xlu0 %1294
    %v1297 = vmul.f32 %v919, %v1295
    %v1298 = vmul.f32 %v920, %v1295
    %v1299 = vmul.f32 %v910, %v1295
    %v1300 = vmul.f32 %v912, %v1295
    %v1301 = vmul.f32 %v921, %v1295
    %v1302 = vmul.f32 %v922, %v1295
    %v1309 = vrot.slane %v1297, 2
    %v1310 = vrot.slane %v1299, 2
    %v1311 = vsel %vm221, %v1309, %v1310
    %v1312 = vrot.slane %v1298, 2
    %v1313 = vrot.slane %v1300, 2
    %v1314 = vsel %vm221, %v1312, %v1313
    %v1315 = vrot.slane %v1301, 2
    %v1316 = vsel %vm221, %v1310, %v1315
    %v1317 = vrot.slane %v1302, 2
    %v1318 = vsel %vm221, %v1313, %v1317
    %1319 = vrot.lane.b32.xlu0 %v1311, 112
    %v1320 = vpop.permute.xlu0 %1319
    %1321 = vrot.lane.b32.xlu0 %v1314, 112
    %v1322 = vpop.permute.xlu0 %1321
    %1323 = vrot.lane.b32.xlu0 %v1316, 112
    %v1324 = vpop.permute.xlu0 %1323
    %1325 = vrot.lane.b32.xlu0 %v1318, 112
    %v1326 = vpop.permute.xlu0 %1325
    %v1327 = vsel %vm1238, %v1320, %v1322
    %v1328 = vsel %vm1238, %v1324, %v1326
    %v1331 = vadd.f32 %v1287, %v1327
    %v1332 = vadd.f32 %v1288, %v1328
    %v1333 = vlaneseq
    %v1334 = vshrl.u32 %v1333, 7
    %v1335 = vsub.s32 1, %v1334
    %v1336 = vrot.slane %v37, %v1335
    %1338 = vrot.lane.b32.xlu0 %v1336, 16
    %v1339 = vpop.permute.xlu0 %1338
    %v1341 = vmul.f32 %v919, %v1339
    %v1342 = vmul.f32 %v920, %v1339
    %v1343 = vmul.f32 %v910, %v1339
    %v1344 = vmul.f32 %v912, %v1339
    %v1345 = vmul.f32 %v921, %v1339
    %v1346 = vmul.f32 %v922, %v1339
    %v1353 = vrot.slane %v1341, 3
    %v1354 = vrot.slane %v1343, 3
    %v1355 = vsel %vm241, %v1353, %v1354
    %v1356 = vrot.slane %v1342, 3
    %v1357 = vrot.slane %v1344, 3
    %v1358 = vsel %vm241, %v1356, %v1357
    %v1359 = vrot.slane %v1345, 3
    %v1360 = vsel %vm241, %v1354, %v1359
    %v1361 = vrot.slane %v1346, 3
    %v1362 = vsel %vm241, %v1357, %v1361
    %1363 = vrot.lane.b32.xlu0 %v1355, 112
    %v1364 = vpop.permute.xlu0 %1363
    %1365 = vrot.lane.b32.xlu0 %v1358, 112
    %v1366 = vpop.permute.xlu0 %1365
    %1367 = vrot.lane.b32.xlu0 %v1360, 112
    %v1368 = vpop.permute.xlu0 %1367
    %1369 = vrot.lane.b32.xlu0 %v1362, 112
    %v1370 = vpop.permute.xlu0 %1369
    %v1371 = vsel %vm1238, %v1364, %v1366
    %v1372 = vsel %vm1238, %v1368, %v1370
    %v1375 = vadd.f32 %v1331, %v1371
    %v1376 = vadd.f32 %v1332, %v1372
    %v1377 = vlaneseq
    %v1378 = vshrl.u32 %v1377, 7
    %v1379 = vsub.s32 6, %v1378
    %v1380 = vrot.slane %v37, %v1379
    %1382 = vrot.lane.b32.xlu0 %v1380, 16
    %v1383 = vpop.permute.xlu0 %1382
    %v1385 = vmul.f32 %v919, %v1383
    %v1386 = vmul.f32 %v920, %v1383
    %v1387 = vmul.f32 %v910, %v1383
    %v1388 = vmul.f32 %v912, %v1383
    %v1389 = vmul.f32 %v921, %v1383
    %v1390 = vmul.f32 %v922, %v1383
    %v1397 = vrot.slane %v1385, 4
    %v1398 = vrot.slane %v1387, 4
    %v1399 = vsel %vm261, %v1397, %v1398
    %v1400 = vrot.slane %v1386, 4
    %v1401 = vrot.slane %v1388, 4
    %v1402 = vsel %vm261, %v1400, %v1401
    %v1403 = vrot.slane %v1389, 4
    %v1404 = vsel %vm261, %v1398, %v1403
    %v1405 = vrot.slane %v1390, 4
    %v1406 = vsel %vm261, %v1401, %v1405
    %1407 = vrot.lane.b32.xlu0 %v1399, 112
    %v1408 = vpop.permute.xlu0 %1407
    %1409 = vrot.lane.b32.xlu0 %v1402, 112
    %v1410 = vpop.permute.xlu0 %1409
    %1411 = vrot.lane.b32.xlu0 %v1404, 112
    %v1412 = vpop.permute.xlu0 %1411
    %1413 = vrot.lane.b32.xlu0 %v1406, 112
    %v1414 = vpop.permute.xlu0 %1413
    %v1415 = vsel %vm1238, %v1408, %v1410
    %v1416 = vsel %vm1238, %v1412, %v1414
    %v1419 = vadd.f32 %v1375, %v1415
    %v1420 = vadd.f32 %v1376, %v1416
    %v1421 = vlaneseq
    %v1422 = vshrl.u32 %v1421, 7
    %v1423 = vsub.s32 3, %v1422
    %v1424 = vrot.slane %v35, %v1423
    %1426 = vrot.lane.b32.xlu0 %v1424, 24
    %v1427 = vpop.permute.xlu0 %1426
    %v1429 = vmul.f32 %v919, %v1427
    %v1430 = vmul.f32 %v920, %v1427
    %v1431 = vmul.f32 %v910, %v1427
    %v1432 = vmul.f32 %v912, %v1427
    %1437 = vrot.lane.b32.xlu0 %v1429, 104
    %v1438 = vpop.permute.xlu0 %1437
    %1439 = vrot.lane.b32.xlu0 %v1430, 104
    %v1440 = vpop.permute.xlu0 %1439
    %1441 = vrot.lane.b32.xlu0 %v1431, 104
    %v1442 = vpop.permute.xlu0 %1441
    %1443 = vrot.lane.b32.xlu0 %v1432, 104
    %v1444 = vpop.permute.xlu0 %1443
    %vm1445 = vcmask 850944
    %v1446 = vsel %vm1445, %v1438, %v1440
    %v1447 = vsel %vm1445, %v1442, %v1444
    %v1450 = vadd.f32 %v1419, %v1446
    %v1451 = vadd.f32 %v1420, %v1447
    %v1452 = vlaneseq
    %v1453 = vshrl.u32 %v1452, 7
    %v1454 = vsub.s32 0, %v1453
    %v1455 = vrot.slane %v36, %v1454
    %1457 = vrot.lane.b32.xlu0 %v1455, 24
    %v1458 = vpop.permute.xlu0 %1457
    %v1460 = vmul.f32 %v919, %v1458
    %v1461 = vmul.f32 %v920, %v1458
    %v1462 = vmul.f32 %v910, %v1458
    %v1463 = vmul.f32 %v912, %v1458
    %v1464 = vmul.f32 %v921, %v1458
    %v1465 = vmul.f32 %v922, %v1458
    %v1472 = vrot.slane %v1460, 1
    %v1473 = vrot.slane %v1462, 1
    %v1474 = vsel %vm201, %v1472, %v1473
    %v1475 = vrot.slane %v1461, 1
    %v1476 = vrot.slane %v1463, 1
    %v1477 = vsel %vm201, %v1475, %v1476
    %v1478 = vrot.slane %v1464, 1
    %v1479 = vsel %vm201, %v1473, %v1478
    %v1480 = vrot.slane %v1465, 1
    %v1481 = vsel %vm201, %v1476, %v1480
    %1482 = vrot.lane.b32.xlu0 %v1474, 104
    %v1483 = vpop.permute.xlu0 %1482
    %1484 = vrot.lane.b32.xlu0 %v1477, 104
    %v1485 = vpop.permute.xlu0 %1484
    %1486 = vrot.lane.b32.xlu0 %v1479, 104
    %v1487 = vpop.permute.xlu0 %1486
    %1488 = vrot.lane.b32.xlu0 %v1481, 104
    %v1489 = vpop.permute.xlu0 %1488
    %v1490 = vsel %vm1445, %v1483, %v1485
    %v1491 = vsel %vm1445, %v1487, %v1489
    %v1494 = vadd.f32 %v1450, %v1490
    %v1495 = vadd.f32 %v1451, %v1491
    %v1496 = vlaneseq
    %v1497 = vshrl.u32 %v1496, 7
    %v1498 = vsub.s32 5, %v1497
    %v1499 = vrot.slane %v36, %v1498
    %1501 = vrot.lane.b32.xlu0 %v1499, 24
    %v1502 = vpop.permute.xlu0 %1501
    %v1504 = vmul.f32 %v919, %v1502
    %v1505 = vmul.f32 %v920, %v1502
    %v1506 = vmul.f32 %v910, %v1502
    %v1507 = vmul.f32 %v912, %v1502
    %v1508 = vmul.f32 %v921, %v1502
    %v1509 = vmul.f32 %v922, %v1502
    %v1516 = vrot.slane %v1504, 2
    %v1517 = vrot.slane %v1506, 2
    %v1518 = vsel %vm221, %v1516, %v1517
    %v1519 = vrot.slane %v1505, 2
    %v1520 = vrot.slane %v1507, 2
    %v1521 = vsel %vm221, %v1519, %v1520
    %v1522 = vrot.slane %v1508, 2
    %v1523 = vsel %vm221, %v1517, %v1522
    %v1524 = vrot.slane %v1509, 2
    %v1525 = vsel %vm221, %v1520, %v1524
    %1526 = vrot.lane.b32.xlu0 %v1518, 104
    %v1527 = vpop.permute.xlu0 %1526
    %1528 = vrot.lane.b32.xlu0 %v1521, 104
    %v1529 = vpop.permute.xlu0 %1528
    %1530 = vrot.lane.b32.xlu0 %v1523, 104
    %v1531 = vpop.permute.xlu0 %1530
    %1532 = vrot.lane.b32.xlu0 %v1525, 104
    %v1533 = vpop.permute.xlu0 %1532
    %v1534 = vsel %vm1445, %v1527, %v1529
    %v1535 = vsel %vm1445, %v1531, %v1533
    %v1538 = vadd.f32 %v1494, %v1534
    %v1539 = vadd.f32 %v1495, %v1535
    %v1540 = vlaneseq
    %v1541 = vshrl.u32 %v1540, 7
    %v1542 = vsub.s32 2, %v1541
    %v1543 = vrot.slane %v37, %v1542
    %1545 = vrot.lane.b32.xlu0 %v1543, 24
    %v1546 = vpop.permute.xlu0 %1545
    %v1548 = vmul.f32 %v919, %v1546
    %v1549 = vmul.f32 %v920, %v1546
    %v1550 = vmul.f32 %v910, %v1546
    %v1551 = vmul.f32 %v912, %v1546
    %v1552 = vmul.f32 %v921, %v1546
    %v1553 = vmul.f32 %v922, %v1546
    %v1560 = vrot.slane %v1548, 3
    %v1561 = vrot.slane %v1550, 3
    %v1562 = vsel %vm241, %v1560, %v1561
    %v1563 = vrot.slane %v1549, 3
    %v1564 = vrot.slane %v1551, 3
    %v1565 = vsel %vm241, %v1563, %v1564
    %v1566 = vrot.slane %v1552, 3
    %v1567 = vsel %vm241, %v1561, %v1566
    %v1568 = vrot.slane %v1553, 3
    %v1569 = vsel %vm241, %v1564, %v1568
    %1570 = vrot.lane.b32.xlu0 %v1562, 104
    %v1571 = vpop.permute.xlu0 %1570
    %1572 = vrot.lane.b32.xlu0 %v1565, 104
    %v1573 = vpop.permute.xlu0 %1572
    %1574 = vrot.lane.b32.xlu0 %v1567, 104
    %v1575 = vpop.permute.xlu0 %1574
    %1576 = vrot.lane.b32.xlu0 %v1569, 104
    %v1577 = vpop.permute.xlu0 %1576
    %v1578 = vsel %vm1445, %v1571, %v1573
    %v1579 = vsel %vm1445, %v1575, %v1577
    %v1582 = vadd.f32 %v1538, %v1578
    %v1583 = vadd.f32 %v1539, %v1579
    %v1584 = vlaneseq
    %v1585 = vshrl.u32 %v1584, 7
    %v1586 = vsub.s32 7, %v1585
    %v1587 = vrot.slane %v37, %v1586
    %1589 = vrot.lane.b32.xlu0 %v1587, 24
    %v1590 = vpop.permute.xlu0 %1589
    %v1592 = vmul.f32 %v919, %v1590
    %v1593 = vmul.f32 %v920, %v1590
    %v1594 = vmul.f32 %v910, %v1590
    %v1595 = vmul.f32 %v912, %v1590
    %v1596 = vmul.f32 %v921, %v1590
    %v1597 = vmul.f32 %v922, %v1590
    %v1604 = vrot.slane %v1592, 4
    %v1605 = vrot.slane %v1594, 4
    %v1606 = vsel %vm261, %v1604, %v1605
    %v1607 = vrot.slane %v1593, 4
    %v1608 = vrot.slane %v1595, 4
    %v1609 = vsel %vm261, %v1607, %v1608
    %v1610 = vrot.slane %v1596, 4
    %v1611 = vsel %vm261, %v1605, %v1610
    %v1612 = vrot.slane %v1597, 4
    %v1613 = vsel %vm261, %v1608, %v1612
    %1614 = vrot.lane.b32.xlu0 %v1606, 104
    %v1615 = vpop.permute.xlu0 %1614
    %1616 = vrot.lane.b32.xlu0 %v1609, 104
    %v1617 = vpop.permute.xlu0 %1616
    %1618 = vrot.lane.b32.xlu0 %v1611, 104
    %v1619 = vpop.permute.xlu0 %1618
    %1620 = vrot.lane.b32.xlu0 %v1613, 104
    %v1621 = vpop.permute.xlu0 %1620
    %v1622 = vsel %vm1445, %v1615, %v1617
    %v1623 = vsel %vm1445, %v1619, %v1621
    %v1626 = vadd.f32 %v1582, %v1622
    %v1627 = vadd.f32 %v1583, %v1623
    %v1628 = vlaneseq
    %v1629 = vshrl.u32 %v1628, 7
    %v1630 = vsub.s32 4, %v1629
    %v1631 = vrot.slane %v35, %v1630
    %1633 = vrot.lane.b32.xlu0 %v1631, 32
    %v1634 = vpop.permute.xlu0 %1633
    %v1636 = vmul.f32 %v919, %v1634
    %v1637 = vmul.f32 %v920, %v1634
    %v1638 = vmul.f32 %v910, %v1634
    %v1639 = vmul.f32 %v912, %v1634
    %1644 = vrot.lane.b32.xlu0 %v1636, 96
    %v1645 = vpop.permute.xlu0 %1644
    %1646 = vrot.lane.b32.xlu0 %v1637, 96
    %v1647 = vpop.permute.xlu0 %1646
    %1648 = vrot.lane.b32.xlu0 %v1638, 96
    %v1649 = vpop.permute.xlu0 %1648
    %1650 = vrot.lane.b32.xlu0 %v1639, 96
    %v1651 = vpop.permute.xlu0 %1650
    %vm1652 = vcmask 785408
    %v1653 = vsel %vm1652, %v1645, %v1647
    %v1654 = vsel %vm1652, %v1649, %v1651
    %v1657 = vadd.f32 %v1626, %v1653
    %v1658 = vadd.f32 %v1627, %v1654
    %v1659 = vlaneseq
    %v1660 = vshrl.u32 %v1659, 7
    %v1661 = vsub.s32 1, %v1660
    %v1662 = vrot.slane %v36, %v1661
    %1664 = vrot.lane.b32.xlu0 %v1662, 32
    %v1665 = vpop.permute.xlu0 %1664
    %v1667 = vmul.f32 %v919, %v1665
    %v1668 = vmul.f32 %v920, %v1665
    %v1669 = vmul.f32 %v910, %v1665
    %v1670 = vmul.f32 %v912, %v1665
    %v1671 = vmul.f32 %v921, %v1665
    %v1672 = vmul.f32 %v922, %v1665
    %v1679 = vrot.slane %v1667, 1
    %v1680 = vrot.slane %v1669, 1
    %v1681 = vsel %vm201, %v1679, %v1680
    %v1682 = vrot.slane %v1668, 1
    %v1683 = vrot.slane %v1670, 1
    %v1684 = vsel %vm201, %v1682, %v1683
    %v1685 = vrot.slane %v1671, 1
    %v1686 = vsel %vm201, %v1680, %v1685
    %v1687 = vrot.slane %v1672, 1
    %v1688 = vsel %vm201, %v1683, %v1687
    %1689 = vrot.lane.b32.xlu0 %v1681, 96
    %v1690 = vpop.permute.xlu0 %1689
    %1691 = vrot.lane.b32.xlu0 %v1684, 96
    %v1692 = vpop.permute.xlu0 %1691
    %1693 = vrot.lane.b32.xlu0 %v1686, 96
    %v1694 = vpop.permute.xlu0 %1693
    %1695 = vrot.lane.b32.xlu0 %v1688, 96
    %v1696 = vpop.permute.xlu0 %1695
    %v1697 = vsel %vm1652, %v1690, %v1692
    %v1698 = vsel %vm1652, %v1694, %v1696
    %v1701 = vadd.f32 %v1657, %v1697
    %v1702 = vadd.f32 %v1658, %v1698
    %v1703 = vlaneseq
    %v1704 = vshrl.u32 %v1703, 7
    %v1705 = vsub.s32 6, %v1704
    %v1706 = vrot.slane %v36, %v1705
    %1708 = vrot.lane.b32.xlu0 %v1706, 32
    %v1709 = vpop.permute.xlu0 %1708
    %v1711 = vmul.f32 %v919, %v1709
    %v1712 = vmul.f32 %v920, %v1709
    %v1713 = vmul.f32 %v910, %v1709
    %v1714 = vmul.f32 %v912, %v1709
    %v1715 = vmul.f32 %v921, %v1709
    %v1716 = vmul.f32 %v922, %v1709
    %v1723 = vrot.slane %v1711, 2
    %v1724 = vrot.slane %v1713, 2
    %v1725 = vsel %vm221, %v1723, %v1724
    %v1726 = vrot.slane %v1712, 2
    %v1727 = vrot.slane %v1714, 2
    %v1728 = vsel %vm221, %v1726, %v1727
    %v1729 = vrot.slane %v1715, 2
    %v1730 = vsel %vm221, %v1724, %v1729
    %v1731 = vrot.slane %v1716, 2
    %v1732 = vsel %vm221, %v1727, %v1731
    %1733 = vrot.lane.b32.xlu0 %v1725, 96
    %v1734 = vpop.permute.xlu0 %1733
    %1735 = vrot.lane.b32.xlu0 %v1728, 96
    %v1736 = vpop.permute.xlu0 %1735
    %1737 = vrot.lane.b32.xlu0 %v1730, 96
    %v1738 = vpop.permute.xlu0 %1737
    %1739 = vrot.lane.b32.xlu0 %v1732, 96
    %v1740 = vpop.permute.xlu0 %1739
    %v1741 = vsel %vm1652, %v1734, %v1736
    %v1742 = vsel %vm1652, %v1738, %v1740
    %v1745 = vadd.f32 %v1701, %v1741
    %v1746 = vadd.f32 %v1702, %v1742
    %v1747 = vlaneseq
    %v1748 = vshrl.u32 %v1747, 7
    %v1749 = vsub.s32 3, %v1748
    %v1750 = vrot.slane %v37, %v1749
    %1752 = vrot.lane.b32.xlu0 %v1750, 32
    %v1753 = vpop.permute.xlu0 %1752
    %v1755 = vmul.f32 %v919, %v1753
    %v1756 = vmul.f32 %v920, %v1753
    %v1757 = vmul.f32 %v910, %v1753
    %v1758 = vmul.f32 %v912, %v1753
    %v1759 = vmul.f32 %v921, %v1753
    %v1760 = vmul.f32 %v922, %v1753
    %v1767 = vrot.slane %v1755, 3
    %v1768 = vrot.slane %v1757, 3
    %v1769 = vsel %vm241, %v1767, %v1768
    %v1770 = vrot.slane %v1756, 3
    %v1771 = vrot.slane %v1758, 3
    %v1772 = vsel %vm241, %v1770, %v1771
    %v1773 = vrot.slane %v1759, 3
    %v1774 = vsel %vm241, %v1768, %v1773
    %v1775 = vrot.slane %v1760, 3
    %v1776 = vsel %vm241, %v1771, %v1775
    %1777 = vrot.lane.b32.xlu0 %v1769, 96
    %v1778 = vpop.permute.xlu0 %1777
    %1779 = vrot.lane.b32.xlu0 %v1772, 96
    %v1780 = vpop.permute.xlu0 %1779
    %1781 = vrot.lane.b32.xlu0 %v1774, 96
    %v1782 = vpop.permute.xlu0 %1781
    %1783 = vrot.lane.b32.xlu0 %v1776, 96
    %v1784 = vpop.permute.xlu0 %1783
    %v1785 = vsel %vm1652, %v1778, %v1780
    %v1786 = vsel %vm1652, %v1782, %v1784
    %v1789 = vadd.f32 %v1745, %v1785
    %v1790 = vadd.f32 %v1746, %v1786
    %v1791 = vlaneseq
    %v1792 = vshrl.u32 %v1791, 7
    %v1793 = vsub.s32 0, %v1792
    %v1794 = vrot.slane %v38, %v1793
    %1796 = vrot.lane.b32.xlu0 %v1794, 32
    %v1797 = vpop.permute.xlu0 %1796
    %v1799 = vmul.f32 %v919, %v1797
    %v1800 = vmul.f32 %v920, %v1797
    %v1801 = vmul.f32 %v910, %v1797
    %v1802 = vmul.f32 %v912, %v1797
    %v1803 = vmul.f32 %v921, %v1797
    %v1804 = vmul.f32 %v922, %v1797
    %v1811 = vrot.slane %v1799, 4
    %v1812 = vrot.slane %v1801, 4
    %v1813 = vsel %vm261, %v1811, %v1812
    %v1814 = vrot.slane %v1800, 4
    %v1815 = vrot.slane %v1802, 4
    %v1816 = vsel %vm261, %v1814, %v1815
    %v1817 = vrot.slane %v1803, 4
    %v1818 = vsel %vm261, %v1812, %v1817
    %v1819 = vrot.slane %v1804, 4
    %v1820 = vsel %vm261, %v1815, %v1819
    %1821 = vrot.lane.b32.xlu0 %v1813, 96
    %v1822 = vpop.permute.xlu0 %1821
    %1823 = vrot.lane.b32.xlu0 %v1816, 96
    %v1824 = vpop.permute.xlu0 %1823
    %1825 = vrot.lane.b32.xlu0 %v1818, 96
    %v1826 = vpop.permute.xlu0 %1825
    %1827 = vrot.lane.b32.xlu0 %v1820, 96
    %v1828 = vpop.permute.xlu0 %1827
    %v1829 = vsel %vm1652, %v1822, %v1824
    %v1830 = vsel %vm1652, %v1826, %v1828
    %v1833 = vadd.f32 %v1789, %v1829
    %v1834 = vadd.f32 %v1790, %v1830
    %v1835 = vlaneseq
    %v1836 = vshrl.u32 %v1835, 7
    %v1837 = vsub.s32 1, %v1836
    %v1838 = vrot.slane %v40, %v1837
    %v1839 = vadd.f32 %v1833, %v1838
    %v1840 = vadd.f32 %v1834, %v1838
    %1843 = vrot.lane.b32.xlu0 %v1839, 4
    %v1844 = vpop.permute.xlu0 %1843
    %1845 = vrot.lane.b32.xlu0 %v1840, 4
    %v1846 = vpop.permute.xlu0 %1845
    %vm1849 = vcmask 31744
    %v1850 = vsel %vm1849, 0.0, %v1844
    %v1851 = vsel %vm1849, 0.0, %v1846
    %v1852 = vadd.f32 %v882, %v1850
    %v1853 = vadd.f32 %v887, %v1851
    %v1854 = vadd.f32 %v1852, %v27
    %v1855 = vadd.f32 %v1853, %v28
    %1856 = vst [vmem:[#allocation2] sm:$0xff] %v1854
    %1857 = vst [vmem:[#allocation2 + $0x8] sm:$0xff] %v1855
    %1860 = vrot.lane.b32.xlu0 %v156, 8
    %v1861 = vpop.permute.xlu0 %1860
    %1862 = vrot.lane.b32.xlu0 %v157, 8
    %v1863 = vpop.permute.xlu0 %1862
    %v1866 = vsel %vm166, 0.0, %v1861
    %v1867 = vsel %vm166, 0.0, %v1863
    %v1868 = vsel %vm169, %v1866, 0.0
    %v1869 = vsel %vm169, %v1867, 0.0
    %v1872 = vrot.slane %v1868, 6
    %v1873 = vrot.slane %v1869, 6
    %v1874 = vsel %vm174, %v1872, %v1873
    %v1878 = vsel %vm174, 0.0, %v1872
    %v1879 = vsel %vm174, %v1873, 0.0
    %v1880 = vmul.f32 %v1878, %v186
    %v1881 = vmul.f32 %v1874, %v186
    %v1882 = vadd.f32 %v1880, 0.0
    %v1883 = vadd.f32 %v1881, 0.0
    %v1884 = vmul.f32 %v1878, %v194
    %v1885 = vmul.f32 %v1874, %v194
    %v1886 = vmul.f32 %v1879, %v194
    %v1890 = vrot.slane %v1884, 1
    %v1891 = vrot.slane %v1885, 1
    %v1892 = vsel %vm201, %v1890, %v1891
    %v1893 = vrot.slane %v1886, 1
    %v1894 = vsel %vm201, %v1891, %v1893
    %v1897 = vadd.f32 %v1882, %v1892
    %v1898 = vadd.f32 %v1883, %v1894
    %v1899 = vmul.f32 %v1878, %v214
    %v1900 = vmul.f32 %v1874, %v214
    %v1901 = vmul.f32 %v1879, %v214
    %v1905 = vrot.slane %v1899, 2
    %v1906 = vrot.slane %v1900, 2
    %v1907 = vsel %vm221, %v1905, %v1906
    %v1908 = vrot.slane %v1901, 2
    %v1909 = vsel %vm221, %v1906, %v1908
    %v1912 = vadd.f32 %v1897, %v1907
    %v1913 = vadd.f32 %v1898, %v1909
    %v1914 = vmul.f32 %v1878, %v234
    %v1915 = vmul.f32 %v1874, %v234
    %v1916 = vmul.f32 %v1879, %v234
    %v1920 = vrot.slane %v1914, 3
    %v1921 = vrot.slane %v1915, 3
    %v1922 = vsel %vm241, %v1920, %v1921
    %v1923 = vrot.slane %v1916, 3
    %v1924 = vsel %vm241, %v1921, %v1923
    %v1927 = vadd.f32 %v1912, %v1922
    %v1928 = vadd.f32 %v1913, %v1924
    %v1929 = vmul.f32 %v1878, %v254
    %v1930 = vmul.f32 %v1874, %v254
    %v1931 = vmul.f32 %v1879, %v254
    %v1935 = vrot.slane %v1929, 4
    %v1936 = vrot.slane %v1930, 4
    %v1937 = vsel %vm261, %v1935, %v1936
    %v1938 = vrot.slane %v1931, 4
    %v1939 = vsel %vm261, %v1936, %v1938
    %v1942 = vadd.f32 %v1927, %v1937
    %v1943 = vadd.f32 %v1928, %v1939
    %v1944 = vmul.f32 %v1878, %v277
    %v1945 = vmul.f32 %v1874, %v277
    %1948 = vrot.lane.b32.xlu0 %v1944, 124
    %v1949 = vpop.permute.xlu0 %1948
    %1950 = vrot.lane.b32.xlu0 %v1945, 124
    %v1951 = vpop.permute.xlu0 %1950
    %v1954 = vadd.f32 %v1942, %v1949
    %v1955 = vadd.f32 %v1943, %v1951
    %v1956 = vmul.f32 %v1878, %v297
    %v1957 = vmul.f32 %v1874, %v297
    %v1958 = vmul.f32 %v1879, %v297
    %v1962 = vrot.slane %v1956, 1
    %v1963 = vrot.slane %v1957, 1
    %v1964 = vsel %vm201, %v1962, %v1963
    %v1965 = vrot.slane %v1958, 1
    %v1966 = vsel %vm201, %v1963, %v1965
    %1967 = vrot.lane.b32.xlu0 %v1964, 124
    %v1968 = vpop.permute.xlu0 %1967
    %1969 = vrot.lane.b32.xlu0 %v1966, 124
    %v1970 = vpop.permute.xlu0 %1969
    %v1973 = vadd.f32 %v1954, %v1968
    %v1974 = vadd.f32 %v1955, %v1970
    %v1975 = vmul.f32 %v1878, %v324
    %v1976 = vmul.f32 %v1874, %v324
    %v1977 = vmul.f32 %v1879, %v324
    %v1981 = vrot.slane %v1975, 2
    %v1982 = vrot.slane %v1976, 2
    %v1983 = vsel %vm221, %v1981, %v1982
    %v1984 = vrot.slane %v1977, 2
    %v1985 = vsel %vm221, %v1982, %v1984
    %1986 = vrot.lane.b32.xlu0 %v1983, 124
    %v1987 = vpop.permute.xlu0 %1986
    %1988 = vrot.lane.b32.xlu0 %v1985, 124
    %v1989 = vpop.permute.xlu0 %1988
    %v1992 = vadd.f32 %v1973, %v1987
    %v1993 = vadd.f32 %v1974, %v1989
    %v1994 = vmul.f32 %v1878, %v351
    %v1995 = vmul.f32 %v1874, %v351
    %v1996 = vmul.f32 %v1879, %v351
    %v2000 = vrot.slane %v1994, 3
    %v2001 = vrot.slane %v1995, 3
    %v2002 = vsel %vm241, %v2000, %v2001
    %v2003 = vrot.slane %v1996, 3
    %v2004 = vsel %vm241, %v2001, %v2003
    %2005 = vrot.lane.b32.xlu0 %v2002, 124
    %v2006 = vpop.permute.xlu0 %2005
    %2007 = vrot.lane.b32.xlu0 %v2004, 124
    %v2008 = vpop.permute.xlu0 %2007
    %v2011 = vadd.f32 %v1992, %v2006
    %v2012 = vadd.f32 %v1993, %v2008
    %v2013 = vmul.f32 %v1878, %v378
    %v2014 = vmul.f32 %v1874, %v378
    %v2015 = vmul.f32 %v1879, %v378
    %v2019 = vrot.slane %v2013, 4
    %v2020 = vrot.slane %v2014, 4
    %v2021 = vsel %vm261, %v2019, %v2020
    %v2022 = vrot.slane %v2015, 4
    %v2023 = vsel %vm261, %v2020, %v2022
    %2024 = vrot.lane.b32.xlu0 %v2021, 124
    %v2025 = vpop.permute.xlu0 %2024
    %2026 = vrot.lane.b32.xlu0 %v2023, 124
    %v2027 = vpop.permute.xlu0 %2026
    %v2030 = vadd.f32 %v2011, %v2025
    %v2031 = vadd.f32 %v2012, %v2027
    %v2032 = vmul.f32 %v1878, %v405
    %v2033 = vmul.f32 %v1874, %v405
    %2036 = vrot.lane.b32.xlu0 %v2032, 120
    %v2037 = vpop.permute.xlu0 %2036
    %2038 = vrot.lane.b32.xlu0 %v2033, 120
    %v2039 = vpop.permute.xlu0 %2038
    %v2042 = vadd.f32 %v2030, %v2037
    %v2043 = vadd.f32 %v2031, %v2039
    %v2044 = vmul.f32 %v1878, %v425
    %v2045 = vmul.f32 %v1874, %v425
    %v2046 = vmul.f32 %v1879, %v425
    %v2050 = vrot.slane %v2044, 1
    %v2051 = vrot.slane %v2045, 1
    %v2052 = vsel %vm201, %v2050, %v2051
    %v2053 = vrot.slane %v2046, 1
    %v2054 = vsel %vm201, %v2051, %v2053
    %2055 = vrot.lane.b32.xlu0 %v2052, 120
    %v2056 = vpop.permute.xlu0 %2055
    %2057 = vrot.lane.b32.xlu0 %v2054, 120
    %v2058 = vpop.permute.xlu0 %2057
    %v2061 = vadd.f32 %v2042, %v2056
    %v2062 = vadd.f32 %v2043, %v2058
    %v2063 = vmul.f32 %v1878, %v452
    %v2064 = vmul.f32 %v1874, %v452
    %v2065 = vmul.f32 %v1879, %v452
    %v2069 = vrot.slane %v2063, 2
    %v2070 = vrot.slane %v2064, 2
    %v2071 = vsel %vm221, %v2069, %v2070
    %v2072 = vrot.slane %v2065, 2
    %v2073 = vsel %vm221, %v2070, %v2072
    %2074 = vrot.lane.b32.xlu0 %v2071, 120
    %v2075 = vpop.permute.xlu0 %2074
    %2076 = vrot.lane.b32.xlu0 %v2073, 120
    %v2077 = vpop.permute.xlu0 %2076
    %v2080 = vadd.f32 %v2061, %v2075
    %v2081 = vadd.f32 %v2062, %v2077
    %v2082 = vmul.f32 %v1878, %v479
    %v2083 = vmul.f32 %v1874, %v479
    %v2084 = vmul.f32 %v1879, %v479
    %v2088 = vrot.slane %v2082, 3
    %v2089 = vrot.slane %v2083, 3
    %v2090 = vsel %vm241, %v2088, %v2089
    %v2091 = vrot.slane %v2084, 3
    %v2092 = vsel %vm241, %v2089, %v2091
    %2093 = vrot.lane.b32.xlu0 %v2090, 120
    %v2094 = vpop.permute.xlu0 %2093
    %2095 = vrot.lane.b32.xlu0 %v2092, 120
    %v2096 = vpop.permute.xlu0 %2095
    %v2099 = vadd.f32 %v2080, %v2094
    %v2100 = vadd.f32 %v2081, %v2096
    %v2101 = vmul.f32 %v1878, %v506
    %v2102 = vmul.f32 %v1874, %v506
    %v2103 = vmul.f32 %v1879, %v506
    %v2107 = vrot.slane %v2101, 4
    %v2108 = vrot.slane %v2102, 4
    %v2109 = vsel %vm261, %v2107, %v2108
    %v2110 = vrot.slane %v2103, 4
    %v2111 = vsel %vm261, %v2108, %v2110
    %2112 = vrot.lane.b32.xlu0 %v2109, 120
    %v2113 = vpop.permute.xlu0 %2112
    %2114 = vrot.lane.b32.xlu0 %v2111, 120
    %v2115 = vpop.permute.xlu0 %2114
    %v2118 = vadd.f32 %v2099, %v2113
    %v2119 = vadd.f32 %v2100, %v2115
    %v2120 = vmul.f32 %v1878, %v533
    %v2121 = vmul.f32 %v1874, %v533
    %2124 = vrot.lane.b32.xlu0 %v2120, 116
    %v2125 = vpop.permute.xlu0 %2124
    %2126 = vrot.lane.b32.xlu0 %v2121, 116
    %v2127 = vpop.permute.xlu0 %2126
    %v2130 = vadd.f32 %v2118, %v2125
    %v2131 = vadd.f32 %v2119, %v2127
    %v2132 = vmul.f32 %v1878, %v553
    %v2133 = vmul.f32 %v1874, %v553
    %v2134 = vmul.f32 %v1879, %v553
    %v2138 = vrot.slane %v2132, 1
    %v2139 = vrot.slane %v2133, 1
    %v2140 = vsel %vm201, %v2138, %v2139
    %v2141 = vrot.slane %v2134, 1
    %v2142 = vsel %vm201, %v2139, %v2141
    %2143 = vrot.lane.b32.xlu0 %v2140, 116
    %v2144 = vpop.permute.xlu0 %2143
    %2145 = vrot.lane.b32.xlu0 %v2142, 116
    %v2146 = vpop.permute.xlu0 %2145
    %v2149 = vadd.f32 %v2130, %v2144
    %v2150 = vadd.f32 %v2131, %v2146
    %v2151 = vmul.f32 %v1878, %v580
    %v2152 = vmul.f32 %v1874, %v580
    %v2153 = vmul.f32 %v1879, %v580
    %v2157 = vrot.slane %v2151, 2
    %v2158 = vrot.slane %v2152, 2
    %v2159 = vsel %vm221, %v2157, %v2158
    %v2160 = vrot.slane %v2153, 2
    %v2161 = vsel %vm221, %v2158, %v2160
    %2162 = vrot.lane.b32.xlu0 %v2159, 116
    %v2163 = vpop.permute.xlu0 %2162
    %2164 = vrot.lane.b32.xlu0 %v2161, 116
    %v2165 = vpop.permute.xlu0 %2164
    %v2168 = vadd.f32 %v2149, %v2163
    %v2169 = vadd.f32 %v2150, %v2165
    %v2170 = vmul.f32 %v1878, %v607
    %v2171 = vmul.f32 %v1874, %v607
    %v2172 = vmul.f32 %v1879, %v607
    %v2176 = vrot.slane %v2170, 3
    %v2177 = vrot.slane %v2171, 3
    %v2178 = vsel %vm241, %v2176, %v2177
    %v2179 = vrot.slane %v2172, 3
    %v2180 = vsel %vm241, %v2177, %v2179
    %2181 = vrot.lane.b32.xlu0 %v2178, 116
    %v2182 = vpop.permute.xlu0 %2181
    %2183 = vrot.lane.b32.xlu0 %v2180, 116
    %v2184 = vpop.permute.xlu0 %2183
    %v2187 = vadd.f32 %v2168, %v2182
    %v2188 = vadd.f32 %v2169, %v2184
    %v2189 = vmul.f32 %v1878, %v634
    %v2190 = vmul.f32 %v1874, %v634
    %v2191 = vmul.f32 %v1879, %v634
    %v2195 = vrot.slane %v2189, 4
    %v2196 = vrot.slane %v2190, 4
    %v2197 = vsel %vm261, %v2195, %v2196
    %v2198 = vrot.slane %v2191, 4
    %v2199 = vsel %vm261, %v2196, %v2198
    %2200 = vrot.lane.b32.xlu0 %v2197, 116
    %v2201 = vpop.permute.xlu0 %2200
    %2202 = vrot.lane.b32.xlu0 %v2199, 116
    %v2203 = vpop.permute.xlu0 %2202
    %v2206 = vadd.f32 %v2187, %v2201
    %v2207 = vadd.f32 %v2188, %v2203
    %v2208 = vmul.f32 %v1878, %v661
    %v2209 = vmul.f32 %v1874, %v661
    %2212 = vrot.lane.b32.xlu0 %v2208, 112
    %v2213 = vpop.permute.xlu0 %2212
    %2214 = vrot.lane.b32.xlu0 %v2209, 112
    %v2215 = vpop.permute.xlu0 %2214
    %v2218 = vadd.f32 %v2206, %v2213
    %v2219 = vadd.f32 %v2207, %v2215
    %v2220 = vmul.f32 %v1878, %v681
    %v2221 = vmul.f32 %v1874, %v681
    %v2222 = vmul.f32 %v1879, %v681
    %v2226 = vrot.slane %v2220, 1
    %v2227 = vrot.slane %v2221, 1
    %v2228 = vsel %vm201, %v2226, %v2227
    %v2229 = vrot.slane %v2222, 1
    %v2230 = vsel %vm201, %v2227, %v2229
    %2231 = vrot.lane.b32.xlu0 %v2228, 112
    %v2232 = vpop.permute.xlu0 %2231
    %2233 = vrot.lane.b32.xlu0 %v2230, 112
    %v2234 = vpop.permute.xlu0 %2233
    %v2237 = vadd.f32 %v2218, %v2232
    %v2238 = vadd.f32 %v2219, %v2234
    %v2239 = vmul.f32 %v1878, %v708
    %v2240 = vmul.f32 %v1874, %v708
    %v2241 = vmul.f32 %v1879, %v708
    %v2245 = vrot.slane %v2239, 2
    %v2246 = vrot.slane %v2240, 2
    %v2247 = vsel %vm221, %v2245, %v2246
    %v2248 = vrot.slane %v2241, 2
    %v2249 = vsel %vm221, %v2246, %v2248
    %2250 = vrot.lane.b32.xlu0 %v2247, 112
    %v2251 = vpop.permute.xlu0 %2250
    %2252 = vrot.lane.b32.xlu0 %v2249, 112
    %v2253 = vpop.permute.xlu0 %2252
    %v2256 = vadd.f32 %v2237, %v2251
    %v2257 = vadd.f32 %v2238, %v2253
    %v2258 = vmul.f32 %v1878, %v735
    %v2259 = vmul.f32 %v1874, %v735
    %v2260 = vmul.f32 %v1879, %v735
    %v2264 = vrot.slane %v2258, 3
    %v2265 = vrot.slane %v2259, 3
    %v2266 = vsel %vm241, %v2264, %v2265
    %v2267 = vrot.slane %v2260, 3
    %v2268 = vsel %vm241, %v2265, %v2267
    %2269 = vrot.lane.b32.xlu0 %v2266, 112
    %v2270 = vpop.permute.xlu0 %2269
    %2271 = vrot.lane.b32.xlu0 %v2268, 112
    %v2272 = vpop.permute.xlu0 %2271
    %v2275 = vadd.f32 %v2256, %v2270
    %v2276 = vadd.f32 %v2257, %v2272
    %v2277 = vmul.f32 %v1878, %v762
    %v2278 = vmul.f32 %v1874, %v762
    %v2279 = vmul.f32 %v1879, %v762
    %v2283 = vrot.slane %v2277, 4
    %v2284 = vrot.slane %v2278, 4
    %v2285 = vsel %vm261, %v2283, %v2284
    %v2286 = vrot.slane %v2279, 4
    %v2287 = vsel %vm261, %v2284, %v2286
    %2288 = vrot.lane.b32.xlu0 %v2285, 112
    %v2289 = vpop.permute.xlu0 %2288
    %2290 = vrot.lane.b32.xlu0 %v2287, 112
    %v2291 = vpop.permute.xlu0 %2290
    %v2294 = vadd.f32 %v2275, %v2289
    %v2295 = vadd.f32 %v2276, %v2291
    %v2296 = vadd.f32 %v2294, %v786
    %v2297 = vadd.f32 %v2295, %v786
    %v2298 = vmax.f32 %v2296, 0.0
    %v2299 = vmax.f32 %v2297, 0.0
    %2302 = vrot.lane.b32.xlu0 %v2298, 2
    %v2303 = vpop.permute.xlu0 %2302
    %2304 = vrot.lane.b32.xlu0 %v2299, 2
    %v2305 = vpop.permute.xlu0 %2304
    %v2308 = vsel %vm799, 0.0, %v2303
    %v2309 = vsel %vm799, 0.0, %v2305
    %v2310 = vadd.f32 %v156, %v2308
    %v2311 = vadd.f32 %v157, %v2309
    %v2313 = vsel %vm808, %v2310, 0
    %v2316 = vsel %vm808, %v2311, 0
    %2318 = vmatprep.subr.mxu0 0.0
    %2319 = vmatpush1.msra.mxu0 %v41
    %2320 = vmatprep.subr.mxu0 0.0
    %2321 = vmatpush1.msra.mxu0 %v42
    %2322 = vmatprep.subr.mxu0 0.0
    %2323 = vmatpush1.msra.mxu0 %v43
    %2324 = vmatprep.subr.mxu0 0.0
    %2325 = vmatpush1.msra.mxu0 %v44
    %2326 = vmatprep.subr.mxu0 0.0
    %2327 = vmatpush1.msra.mxu0 %v45
    %2328 = vmatprep.subr.mxu0 0.0
    %2329 = vmatpush1.msra.mxu0 %v46
    %2330 = vmatprep.subr.mxu0 0.0
    %2331 = vmatpush1.msra.mxu0 %v47
    %2332 = vmatprep.subr.mxu0 0.0
    %2333 = vmatpush1.msra.mxu0 %v48
    %2334 = vmatprep.subr.mxu0 0.0
    %2335 = vmatpush1.msra.mxu0 0.0
    %2336 = vmatprep.subr.mxu0 0.0
    %2337 = vmatpush1.msra.mxu0 0.0
    %2338 = vmatprep.subr.mxu0 0.0
    %2339 = vmatpush1.msra.mxu0 0.0
    %2340 = vmatprep.subr.mxu0 0.0
    %2341 = vmatpush1.msra.mxu0 0.0
    %2342 = vmatprep.subr.mxu0 0.0
    %2343 = vmatpush1.msra.mxu0 0.0
    %2344 = vmatprep.subr.mxu0 0.0
    %2345 = vmatpush1.msra.mxu0 0.0
    %2346 = vmatprep.subr.mxu0 0.0
    %2347 = vmatpush1.msra.mxu0 0.0
    %2348 = vmatprep.subr.mxu0 0.0
    %2349 = vmatpush1.msra.mxu0 0.0
    %2350 = vmatprep.subr.mxu0 0.0
    %2351 = vmatpush1.msra.mxu0 0.0
    %2352 = vmatprep.subr.mxu0 0.0
    %2353 = vmatpush1.msra.mxu0 0.0
    %2354 = vmatprep.subr.mxu0 0.0
    %2355 = vmatpush1.msra.mxu0 0.0
    %2356 = vmatprep.subr.mxu0 0.0
    %2357 = vmatpush1.msra.mxu0 0.0
    %2358 = vmatprep.subr.mxu0 0.0
    %2359 = vmatpush1.msra.mxu0 0.0
    %2360 = vmatprep.subr.mxu0 0.0
    %2361 = vmatpush1.msra.mxu0 0.0
    %2362 = vmatprep.subr.mxu0 0.0
    %2363 = vmatpush1.msra.mxu0 0.0
    %2364 = vmatprep.subr.mxu0 0.0
    %2365 = vmatpush1.msra.mxu0 0.0
    %2366 = vmatprep.subr.mxu0 0.0
    %2367 = vmatpush1.msra.mxu0 0.0
    %2368 = vmatprep.subr.mxu0 0.0
    %2369 = vmatpush1.msra.mxu0 0.0
    %2370 = vmatprep.subr.mxu0 0.0
    %2371 = vmatpush1.msra.mxu0 0.0
    %2372 = vmatprep.subr.mxu0 0.0
    %2373 = vmatpush1.msra.mxu0 0.0
    %2374 = vmatprep.subr.mxu0 0.0
    %2375 = vmatpush1.msra.mxu0 0.0
    %2376 = vmatprep.subr.mxu0 0.0
    %2377 = vmatpush1.msra.mxu0 0.0
    %2378 = vmatprep.subr.mxu0 0.0
    %2379 = vmatpush1.msra.mxu0 0.0
    %2380 = vmatprep.subr.mxu0 0.0
    %2381 = vmatpush1.msra.mxu0 0.0
    %2382 = vmatprep.mubr.f32.mxu0 0.0
    %2383 = vmatmul.mubr.f32.gmra.mrb[0].mxu0 %v2313
    %v2384 = vpop.f32.mrb[0].mxu0
    %v2385 = vadd.f32 %v807, %v2384
    %v2386 = vpop.f32.mrb[0].mxu0
    %2387 = vmatprep.mubr.f32.mxu0 0.0
    %2388 = vmatmul.mubr.f32.gmra.mrb[0].mxu0 %v2316
    %v2389 = vpop.f32.mrb[0].mxu0
    %v2390 = vadd.f32 %v807, %v2389
    %v2391 = vpop.f32.mrb[0].mxu0
    %2392 = vdwg.mxu0
    %2395 = vrot.lane.b32.xlu0 %v2385, 16
    %v2396 = vpop.permute.xlu0 %2395
    %2397 = vrot.lane.b32.xlu0 %v2390, 16
    %v2398 = vpop.permute.xlu0 %2397
    %v2401 = vsel %vm898, 0.0, %v2396
    %v2402 = vsel %vm898, 0.0, %v2398
    %v2403 = vsel %vm898, %v2396, 0.0
    %v2404 = vsel %vm898, %v2398, 0.0
    %v2409 = vrot.slane %v2401, 6
    %v2410 = vrot.slane %v2403, 6
    %v2411 = vrot.slane %v2402, 6
    %v2412 = vsel %vm174, %v2409, %v2411
    %v2413 = vrot.slane %v2404, 6
    %v2414 = vsel %vm174, %v2410, %v2413
    %v2421 = vsel %vm174, 0.0, %v2409
    %v2422 = vsel %vm174, 0.0, %v2410
    %v2423 = vsel %vm174, %v2411, 0.0
    %v2424 = vsel %vm174, %v2413, 0.0
    %v2425 = vmul.f32 %v2421, %v926
    %v2426 = vmul.f32 %v2412, %v926
    %v2427 = vadd.f32 %v2425, 0.0
    %v2428 = vadd.f32 %v2426, 0.0
    %v2429 = vmul.f32 %v2421, %v934
    %v2430 = vmul.f32 %v2412, %v934
    %v2431 = vmul.f32 %v2423, %v934
    %v2435 = vrot.slane %v2429, 1
    %v2436 = vrot.slane %v2430, 1
    %v2437 = vsel %vm201, %v2435, %v2436
    %v2438 = vrot.slane %v2431, 1
    %v2439 = vsel %vm201, %v2436, %v2438
    %v2442 = vadd.f32 %v2427, %v2437
    %v2443 = vadd.f32 %v2428, %v2439
    %v2444 = vmul.f32 %v2421, %v953
    %v2445 = vmul.f32 %v2412, %v953
    %v2446 = vmul.f32 %v2423, %v953
    %v2450 = vrot.slane %v2444, 2
    %v2451 = vrot.slane %v2445, 2
    %v2452 = vsel %vm221, %v2450, %v2451
    %v2453 = vrot.slane %v2446, 2
    %v2454 = vsel %vm221, %v2451, %v2453
    %v2457 = vadd.f32 %v2442, %v2452
    %v2458 = vadd.f32 %v2443, %v2454
    %v2459 = vmul.f32 %v2421, %v972
    %v2460 = vmul.f32 %v2412, %v972
    %v2461 = vmul.f32 %v2423, %v972
    %v2465 = vrot.slane %v2459, 3
    %v2466 = vrot.slane %v2460, 3
    %v2467 = vsel %vm241, %v2465, %v2466
    %v2468 = vrot.slane %v2461, 3
    %v2469 = vsel %vm241, %v2466, %v2468
    %v2472 = vadd.f32 %v2457, %v2467
    %v2473 = vadd.f32 %v2458, %v2469
    %v2474 = vmul.f32 %v2421, %v991
    %v2475 = vmul.f32 %v2412, %v991
    %v2476 = vmul.f32 %v2423, %v991
    %v2480 = vrot.slane %v2474, 4
    %v2481 = vrot.slane %v2475, 4
    %v2482 = vsel %vm261, %v2480, %v2481
    %v2483 = vrot.slane %v2476, 4
    %v2484 = vsel %vm261, %v2481, %v2483
    %v2487 = vadd.f32 %v2472, %v2482
    %v2488 = vadd.f32 %v2473, %v2484
    %v2489 = vmul.f32 %v2421, %v1013
    %v2490 = vmul.f32 %v2422, %v1013
    %v2491 = vmul.f32 %v2412, %v1013
    %v2492 = vmul.f32 %v2414, %v1013
    %2497 = vrot.lane.b32.xlu0 %v2489, 120
    %v2498 = vpop.permute.xlu0 %2497
    %2499 = vrot.lane.b32.xlu0 %v2490, 120
    %v2500 = vpop.permute.xlu0 %2499
    %2501 = vrot.lane.b32.xlu0 %v2491, 120
    %v2502 = vpop.permute.xlu0 %2501
    %2503 = vrot.lane.b32.xlu0 %v2492, 120
    %v2504 = vpop.permute.xlu0 %2503
    %v2505 = vsel %vm1031, %v2498, %v2500
    %v2506 = vsel %vm1031, %v2502, %v2504
    %v2509 = vadd.f32 %v2487, %v2505
    %v2510 = vadd.f32 %v2488, %v2506
    %v2511 = vmul.f32 %v2421, %v1044
    %v2512 = vmul.f32 %v2422, %v1044
    %v2513 = vmul.f32 %v2412, %v1044
    %v2514 = vmul.f32 %v2414, %v1044
    %v2515 = vmul.f32 %v2423, %v1044
    %v2516 = vmul.f32 %v2424, %v1044
    %v2523 = vrot.slane %v2511, 1
    %v2524 = vrot.slane %v2513, 1
    %v2525 = vsel %vm201, %v2523, %v2524
    %v2526 = vrot.slane %v2512, 1
    %v2527 = vrot.slane %v2514, 1
    %v2528 = vsel %vm201, %v2526, %v2527
    %v2529 = vrot.slane %v2515, 1
    %v2530 = vsel %vm201, %v2524, %v2529
    %v2531 = vrot.slane %v2516, 1
    %v2532 = vsel %vm201, %v2527, %v2531
    %2533 = vrot.lane.b32.xlu0 %v2525, 120
    %v2534 = vpop.permute.xlu0 %2533
    %2535 = vrot.lane.b32.xlu0 %v2528, 120
    %v2536 = vpop.permute.xlu0 %2535
    %2537 = vrot.lane.b32.xlu0 %v2530, 120
    %v2538 = vpop.permute.xlu0 %2537
    %2539 = vrot.lane.b32.xlu0 %v2532, 120
    %v2540 = vpop.permute.xlu0 %2539
    %v2541 = vsel %vm1031, %v2534, %v2536
    %v2542 = vsel %vm1031, %v2538, %v2540
    %v2545 = vadd.f32 %v2509, %v2541
    %v2546 = vadd.f32 %v2510, %v2542
    %v2547 = vmul.f32 %v2421, %v1088
    %v2548 = vmul.f32 %v2422, %v1088
    %v2549 = vmul.f32 %v2412, %v1088
    %v2550 = vmul.f32 %v2414, %v1088
    %v2551 = vmul.f32 %v2423, %v1088
    %v2552 = vmul.f32 %v2424, %v1088
    %v2559 = vrot.slane %v2547, 2
    %v2560 = vrot.slane %v2549, 2
    %v2561 = vsel %vm221, %v2559, %v2560
    %v2562 = vrot.slane %v2548, 2
    %v2563 = vrot.slane %v2550, 2
    %v2564 = vsel %vm221, %v2562, %v2563
    %v2565 = vrot.slane %v2551, 2
    %v2566 = vsel %vm221, %v2560, %v2565
    %v2567 = vrot.slane %v2552, 2
    %v2568 = vsel %vm221, %v2563, %v2567
    %2569 = vrot.lane.b32.xlu0 %v2561, 120
    %v2570 = vpop.permute.xlu0 %2569
    %2571 = vrot.lane.b32.xlu0 %v2564, 120
    %v2572 = vpop.permute.xlu0 %2571
    %2573 = vrot.lane.b32.xlu0 %v2566, 120
    %v2574 = vpop.permute.xlu0 %2573
    %2575 = vrot.lane.b32.xlu0 %v2568, 120
    %v2576 = vpop.permute.xlu0 %2575
    %v2577 = vsel %vm1031, %v2570, %v2572
    %v2578 = vsel %vm1031, %v2574, %v2576
    %v2581 = vadd.f32 %v2545, %v2577
    %v2582 = vadd.f32 %v2546, %v2578
    %v2583 = vmul.f32 %v2421, %v1132
    %v2584 = vmul.f32 %v2422, %v1132
    %v2585 = vmul.f32 %v2412, %v1132
    %v2586 = vmul.f32 %v2414, %v1132
    %v2587 = vmul.f32 %v2423, %v1132
    %v2588 = vmul.f32 %v2424, %v1132
    %v2595 = vrot.slane %v2583, 3
    %v2596 = vrot.slane %v2585, 3
    %v2597 = vsel %vm241, %v2595, %v2596
    %v2598 = vrot.slane %v2584, 3
    %v2599 = vrot.slane %v2586, 3
    %v2600 = vsel %vm241, %v2598, %v2599
    %v2601 = vrot.slane %v2587, 3
    %v2602 = vsel %vm241, %v2596, %v2601
    %v2603 = vrot.slane %v2588, 3
    %v2604 = vsel %vm241, %v2599, %v2603
    %2605 = vrot.lane.b32.xlu0 %v2597, 120
    %v2606 = vpop.permute.xlu0 %2605
    %2607 = vrot.lane.b32.xlu0 %v2600, 120
    %v2608 = vpop.permute.xlu0 %2607
    %2609 = vrot.lane.b32.xlu0 %v2602, 120
    %v2610 = vpop.permute.xlu0 %2609
    %2611 = vrot.lane.b32.xlu0 %v2604, 120
    %v2612 = vpop.permute.xlu0 %2611
    %v2613 = vsel %vm1031, %v2606, %v2608
    %v2614 = vsel %vm1031, %v2610, %v2612
    %v2617 = vadd.f32 %v2581, %v2613
    %v2618 = vadd.f32 %v2582, %v2614
    %v2619 = vmul.f32 %v2421, %v1176
    %v2620 = vmul.f32 %v2422, %v1176
    %v2621 = vmul.f32 %v2412, %v1176
    %v2622 = vmul.f32 %v2414, %v1176
    %v2623 = vmul.f32 %v2423, %v1176
    %v2624 = vmul.f32 %v2424, %v1176
    %v2631 = vrot.slane %v2619, 4
    %v2632 = vrot.slane %v2621, 4
    %v2633 = vsel %vm261, %v2631, %v2632
    %v2634 = vrot.slane %v2620, 4
    %v2635 = vrot.slane %v2622, 4
    %v2636 = vsel %vm261, %v2634, %v2635
    %v2637 = vrot.slane %v2623, 4
    %v2638 = vsel %vm261, %v2632, %v2637
    %v2639 = vrot.slane %v2624, 4
    %v2640 = vsel %vm261, %v2635, %v2639
    %2641 = vrot.lane.b32.xlu0 %v2633, 120
    %v2642 = vpop.permute.xlu0 %2641
    %2643 = vrot.lane.b32.xlu0 %v2636, 120
    %v2644 = vpop.permute.xlu0 %2643
    %2645 = vrot.lane.b32.xlu0 %v2638, 120
    %v2646 = vpop.permute.xlu0 %2645
    %2647 = vrot.lane.b32.xlu0 %v2640, 120
    %v2648 = vpop.permute.xlu0 %2647
    %v2649 = vsel %vm1031, %v2642, %v2644
    %v2650 = vsel %vm1031, %v2646, %v2648
    %v2653 = vadd.f32 %v2617, %v2649
    %v2654 = vadd.f32 %v2618, %v2650
    %v2655 = vmul.f32 %v2421, %v1220
    %v2656 = vmul.f32 %v2422, %v1220
    %v2657 = vmul.f32 %v2412, %v1220
    %v2658 = vmul.f32 %v2414, %v1220
    %2663 = vrot.lane.b32.xlu0 %v2655, 112
    %v2664 = vpop.permute.xlu0 %2663
    %2665 = vrot.lane.b32.xlu0 %v2656, 112
    %v2666 = vpop.permute.xlu0 %2665
    %2667 = vrot.lane.b32.xlu0 %v2657, 112
    %v2668 = vpop.permute.xlu0 %2667
    %2669 = vrot.lane.b32.xlu0 %v2658, 112
    %v2670 = vpop.permute.xlu0 %2669
    %v2671 = vsel %vm1238, %v2664, %v2666
    %v2672 = vsel %vm1238, %v2668, %v2670
    %v2675 = vadd.f32 %v2653, %v2671
    %v2676 = vadd.f32 %v2654, %v2672
    %v2677 = vmul.f32 %v2421, %v1251
    %v2678 = vmul.f32 %v2422, %v1251
    %v2679 = vmul.f32 %v2412, %v1251
    %v2680 = vmul.f32 %v2414, %v1251
    %v2681 = vmul.f32 %v2423, %v1251
    %v2682 = vmul.f32 %v2424, %v1251
    %v2689 = vrot.slane %v2677, 1
    %v2690 = vrot.slane %v2679, 1
    %v2691 = vsel %vm201, %v2689, %v2690
    %v2692 = vrot.slane %v2678, 1
    %v2693 = vrot.slane %v2680, 1
    %v2694 = vsel %vm201, %v2692, %v2693
    %v2695 = vrot.slane %v2681, 1
    %v2696 = vsel %vm201, %v2690, %v2695
    %v2697 = vrot.slane %v2682, 1
    %v2698 = vsel %vm201, %v2693, %v2697
    %2699 = vrot.lane.b32.xlu0 %v2691, 112
    %v2700 = vpop.permute.xlu0 %2699
    %2701 = vrot.lane.b32.xlu0 %v2694, 112
    %v2702 = vpop.permute.xlu0 %2701
    %2703 = vrot.lane.b32.xlu0 %v2696, 112
    %v2704 = vpop.permute.xlu0 %2703
    %2705 = vrot.lane.b32.xlu0 %v2698, 112
    %v2706 = vpop.permute.xlu0 %2705
    %v2707 = vsel %vm1238, %v2700, %v2702
    %v2708 = vsel %vm1238, %v2704, %v2706
    %v2711 = vadd.f32 %v2675, %v2707
    %v2712 = vadd.f32 %v2676, %v2708
    %v2713 = vmul.f32 %v2421, %v1295
    %v2714 = vmul.f32 %v2422, %v1295
    %v2715 = vmul.f32 %v2412, %v1295
    %v2716 = vmul.f32 %v2414, %v1295
    %v2717 = vmul.f32 %v2423, %v1295
    %v2718 = vmul.f32 %v2424, %v1295
    %v2725 = vrot.slane %v2713, 2
    %v2726 = vrot.slane %v2715, 2
    %v2727 = vsel %vm221, %v2725, %v2726
    %v2728 = vrot.slane %v2714, 2
    %v2729 = vrot.slane %v2716, 2
    %v2730 = vsel %vm221, %v2728, %v2729
    %v2731 = vrot.slane %v2717, 2
    %v2732 = vsel %vm221, %v2726, %v2731
    %v2733 = vrot.slane %v2718, 2
    %v2734 = vsel %vm221, %v2729, %v2733
    %2735 = vrot.lane.b32.xlu0 %v2727, 112
    %v2736 = vpop.permute.xlu0 %2735
    %2737 = vrot.lane.b32.xlu0 %v2730, 112
    %v2738 = vpop.permute.xlu0 %2737
    %2739 = vrot.lane.b32.xlu0 %v2732, 112
    %v2740 = vpop.permute.xlu0 %2739
    %2741 = vrot.lane.b32.xlu0 %v2734, 112
    %v2742 = vpop.permute.xlu0 %2741
    %v2743 = vsel %vm1238, %v2736, %v2738
    %v2744 = vsel %vm1238, %v2740, %v2742
    %v2747 = vadd.f32 %v2711, %v2743
    %v2748 = vadd.f32 %v2712, %v2744
    %v2749 = vmul.f32 %v2421, %v1339
    %v2750 = vmul.f32 %v2422, %v1339
    %v2751 = vmul.f32 %v2412, %v1339
    %v2752 = vmul.f32 %v2414, %v1339
    %v2753 = vmul.f32 %v2423, %v1339
    %v2754 = vmul.f32 %v2424, %v1339
    %v2761 = vrot.slane %v2749, 3
    %v2762 = vrot.slane %v2751, 3
    %v2763 = vsel %vm241, %v2761, %v2762
    %v2764 = vrot.slane %v2750, 3
    %v2765 = vrot.slane %v2752, 3
    %v2766 = vsel %vm241, %v2764, %v2765
    %v2767 = vrot.slane %v2753, 3
    %v2768 = vsel %vm241, %v2762, %v2767
    %v2769 = vrot.slane %v2754, 3
    %v2770 = vsel %vm241, %v2765, %v2769
    %2771 = vrot.lane.b32.xlu0 %v2763, 112
    %v2772 = vpop.permute.xlu0 %2771
    %2773 = vrot.lane.b32.xlu0 %v2766, 112
    %v2774 = vpop.permute.xlu0 %2773
    %2775 = vrot.lane.b32.xlu0 %v2768, 112
    %v2776 = vpop.permute.xlu0 %2775
    %2777 = vrot.lane.b32.xlu0 %v2770, 112
    %v2778 = vpop.permute.xlu0 %2777
    %v2779 = vsel %vm1238, %v2772, %v2774
    %v2780 = vsel %vm1238, %v2776, %v2778
    %v2783 = vadd.f32 %v2747, %v2779
    %v2784 = vadd.f32 %v2748, %v2780
    %v2785 = vmul.f32 %v2421, %v1383
    %v2786 = vmul.f32 %v2422, %v1383
    %v2787 = vmul.f32 %v2412, %v1383
    %v2788 = vmul.f32 %v2414, %v1383
    %v2789 = vmul.f32 %v2423, %v1383
    %v2790 = vmul.f32 %v2424, %v1383
    %v2797 = vrot.slane %v2785, 4
    %v2798 = vrot.slane %v2787, 4
    %v2799 = vsel %vm261, %v2797, %v2798
    %v2800 = vrot.slane %v2786, 4
    %v2801 = vrot.slane %v2788, 4
    %v2802 = vsel %vm261, %v2800, %v2801
    %v2803 = vrot.slane %v2789, 4
    %v2804 = vsel %vm261, %v2798, %v2803
    %v2805 = vrot.slane %v2790, 4
    %v2806 = vsel %vm261, %v2801, %v2805
    %2807 = vrot.lane.b32.xlu0 %v2799, 112
    %v2808 = vpop.permute.xlu0 %2807
    %2809 = vrot.lane.b32.xlu0 %v2802, 112
    %v2810 = vpop.permute.xlu0 %2809
    %2811 = vrot.lane.b32.xlu0 %v2804, 112
    %v2812 = vpop.permute.xlu0 %2811
    %2813 = vrot.lane.b32.xlu0 %v2806, 112
    %v2814 = vpop.permute.xlu0 %2813
    %v2815 = vsel %vm1238, %v2808, %v2810
    %v2816 = vsel %vm1238, %v2812, %v2814
    %v2819 = vadd.f32 %v2783, %v2815
    %v2820 = vadd.f32 %v2784, %v2816
    %v2821 = vmul.f32 %v2421, %v1427
    %v2822 = vmul.f32 %v2422, %v1427
    %v2823 = vmul.f32 %v2412, %v1427
    %v2824 = vmul.f32 %v2414, %v1427
    %2829 = vrot.lane.b32.xlu0 %v2821, 104
    %v2830 = vpop.permute.xlu0 %2829
    %2831 = vrot.lane.b32.xlu0 %v2822, 104
    %v2832 = vpop.permute.xlu0 %2831
    %2833 = vrot.lane.b32.xlu0 %v2823, 104
    %v2834 = vpop.permute.xlu0 %2833
    %2835 = vrot.lane.b32.xlu0 %v2824, 104
    %v2836 = vpop.permute.xlu0 %2835
    %v2837 = vsel %vm1445, %v2830, %v2832
    %v2838 = vsel %vm1445, %v2834, %v2836
    %v2841 = vadd.f32 %v2819, %v2837
    %v2842 = vadd.f32 %v2820, %v2838
    %v2843 = vmul.f32 %v2421, %v1458
    %v2844 = vmul.f32 %v2422, %v1458
    %v2845 = vmul.f32 %v2412, %v1458
    %v2846 = vmul.f32 %v2414, %v1458
    %v2847 = vmul.f32 %v2423, %v1458
    %v2848 = vmul.f32 %v2424, %v1458
    %v2855 = vrot.slane %v2843, 1
    %v2856 = vrot.slane %v2845, 1
    %v2857 = vsel %vm201, %v2855, %v2856
    %v2858 = vrot.slane %v2844, 1
    %v2859 = vrot.slane %v2846, 1
    %v2860 = vsel %vm201, %v2858, %v2859
    %v2861 = vrot.slane %v2847, 1
    %v2862 = vsel %vm201, %v2856, %v2861
    %v2863 = vrot.slane %v2848, 1
    %v2864 = vsel %vm201, %v2859, %v2863
    %2865 = vrot.lane.b32.xlu0 %v2857, 104
    %v2866 = vpop.permute.xlu0 %2865
    %2867 = vrot.lane.b32.xlu0 %v2860, 104
    %v2868 = vpop.permute.xlu0 %2867
    %2869 = vrot.lane.b32.xlu0 %v2862, 104
    %v2870 = vpop.permute.xlu0 %2869
    %2871 = vrot.lane.b32.xlu0 %v2864, 104
    %v2872 = vpop.permute.xlu0 %2871
    %v2873 = vsel %vm1445, %v2866, %v2868
    %v2874 = vsel %vm1445, %v2870, %v2872
    %v2877 = vadd.f32 %v2841, %v2873
    %v2878 = vadd.f32 %v2842, %v2874
    %v2879 = vmul.f32 %v2421, %v1502
    %v2880 = vmul.f32 %v2422, %v1502
    %v2881 = vmul.f32 %v2412, %v1502
    %v2882 = vmul.f32 %v2414, %v1502
    %v2883 = vmul.f32 %v2423, %v1502
    %v2884 = vmul.f32 %v2424, %v1502
    %v2891 = vrot.slane %v2879, 2
    %v2892 = vrot.slane %v2881, 2
    %v2893 = vsel %vm221, %v2891, %v2892
    %v2894 = vrot.slane %v2880, 2
    %v2895 = vrot.slane %v2882, 2
    %v2896 = vsel %vm221, %v2894, %v2895
    %v2897 = vrot.slane %v2883, 2
    %v2898 = vsel %vm221, %v2892, %v2897
    %v2899 = vrot.slane %v2884, 2
    %v2900 = vsel %vm221, %v2895, %v2899
    %2901 = vrot.lane.b32.xlu0 %v2893, 104
    %v2902 = vpop.permute.xlu0 %2901
    %2903 = vrot.lane.b32.xlu0 %v2896, 104
    %v2904 = vpop.permute.xlu0 %2903
    %2905 = vrot.lane.b32.xlu0 %v2898, 104
    %v2906 = vpop.permute.xlu0 %2905
    %2907 = vrot.lane.b32.xlu0 %v2900, 104
    %v2908 = vpop.permute.xlu0 %2907
    %v2909 = vsel %vm1445, %v2902, %v2904
    %v2910 = vsel %vm1445, %v2906, %v2908
    %v2913 = vadd.f32 %v2877, %v2909
    %v2914 = vadd.f32 %v2878, %v2910
    %v2915 = vmul.f32 %v2421, %v1546
    %v2916 = vmul.f32 %v2422, %v1546
    %v2917 = vmul.f32 %v2412, %v1546
    %v2918 = vmul.f32 %v2414, %v1546
    %v2919 = vmul.f32 %v2423, %v1546
    %v2920 = vmul.f32 %v2424, %v1546
    %v2927 = vrot.slane %v2915, 3
    %v2928 = vrot.slane %v2917, 3
    %v2929 = vsel %vm241, %v2927, %v2928
    %v2930 = vrot.slane %v2916, 3
    %v2931 = vrot.slane %v2918, 3
    %v2932 = vsel %vm241, %v2930, %v2931
    %v2933 = vrot.slane %v2919, 3
    %v2934 = vsel %vm241, %v2928, %v2933
    %v2935 = vrot.slane %v2920, 3
    %v2936 = vsel %vm241, %v2931, %v2935
    %2937 = vrot.lane.b32.xlu0 %v2929, 104
    %v2938 = vpop.permute.xlu0 %2937
    %2939 = vrot.lane.b32.xlu0 %v2932, 104
    %v2940 = vpop.permute.xlu0 %2939
    %2941 = vrot.lane.b32.xlu0 %v2934, 104
    %v2942 = vpop.permute.xlu0 %2941
    %2943 = vrot.lane.b32.xlu0 %v2936, 104
    %v2944 = vpop.permute.xlu0 %2943
    %v2945 = vsel %vm1445, %v2938, %v2940
    %v2946 = vsel %vm1445, %v2942, %v2944
    %v2949 = vadd.f32 %v2913, %v2945
    %v2950 = vadd.f32 %v2914, %v2946
    %v2951 = vmul.f32 %v2421, %v1590
    %v2952 = vmul.f32 %v2422, %v1590
    %v2953 = vmul.f32 %v2412, %v1590
    %v2954 = vmul.f32 %v2414, %v1590
    %v2955 = vmul.f32 %v2423, %v1590
    %v2956 = vmul.f32 %v2424, %v1590
    %v2963 = vrot.slane %v2951, 4
    %v2964 = vrot.slane %v2953, 4
    %v2965 = vsel %vm261, %v2963, %v2964
    %v2966 = vrot.slane %v2952, 4
    %v2967 = vrot.slane %v2954, 4
    %v2968 = vsel %vm261, %v2966, %v2967
    %v2969 = vrot.slane %v2955, 4
    %v2970 = vsel %vm261, %v2964, %v2969
    %v2971 = vrot.slane %v2956, 4
    %v2972 = vsel %vm261, %v2967, %v2971
    %2973 = vrot.lane.b32.xlu0 %v2965, 104
    %v2974 = vpop.permute.xlu0 %2973
    %2975 = vrot.lane.b32.xlu0 %v2968, 104
    %v2976 = vpop.permute.xlu0 %2975
    %2977 = vrot.lane.b32.xlu0 %v2970, 104
    %v2978 = vpop.permute.xlu0 %2977
    %2979 = vrot.lane.b32.xlu0 %v2972, 104
    %v2980 = vpop.permute.xlu0 %2979
    %v2981 = vsel %vm1445, %v2974, %v2976
    %v2982 = vsel %vm1445, %v2978, %v2980
    %v2985 = vadd.f32 %v2949, %v2981
    %v2986 = vadd.f32 %v2950, %v2982
    %v2987 = vmul.f32 %v2421, %v1634
    %v2988 = vmul.f32 %v2422, %v1634
    %v2989 = vmul.f32 %v2412, %v1634
    %v2990 = vmul.f32 %v2414, %v1634
    %2995 = vrot.lane.b32.xlu0 %v2987, 96
    %v2996 = vpop.permute.xlu0 %2995
    %2997 = vrot.lane.b32.xlu0 %v2988, 96
    %v2998 = vpop.permute.xlu0 %2997
    %2999 = vrot.lane.b32.xlu0 %v2989, 96
    %v3000 = vpop.permute.xlu0 %2999
    %3001 = vrot.lane.b32.xlu0 %v2990, 96
    %v3002 = vpop.permute.xlu0 %3001
    %v3003 = vsel %vm1652, %v2996, %v2998
    %v3004 = vsel %vm1652, %v3000, %v3002
    %v3007 = vadd.f32 %v2985, %v3003
    %v3008 = vadd.f32 %v2986, %v3004
    %v3009 = vmul.f32 %v2421, %v1665
    %v3010 = vmul.f32 %v2422, %v1665
    %v3011 = vmul.f32 %v2412, %v1665
    %v3012 = vmul.f32 %v2414, %v1665
    %v3013 = vmul.f32 %v2423, %v1665
    %v3014 = vmul.f32 %v2424, %v1665
    %v3021 = vrot.slane %v3009, 1
    %v3022 = vrot.slane %v3011, 1
    %v3023 = vsel %vm201, %v3021, %v3022
    %v3024 = vrot.slane %v3010, 1
    %v3025 = vrot.slane %v3012, 1
    %v3026 = vsel %vm201, %v3024, %v3025
    %v3027 = vrot.slane %v3013, 1
    %v3028 = vsel %vm201, %v3022, %v3027
    %v3029 = vrot.slane %v3014, 1
    %v3030 = vsel %vm201, %v3025, %v3029
    %3031 = vrot.lane.b32.xlu0 %v3023, 96
    %v3032 = vpop.permute.xlu0 %3031
    %3033 = vrot.lane.b32.xlu0 %v3026, 96
    %v3034 = vpop.permute.xlu0 %3033
    %3035 = vrot.lane.b32.xlu0 %v3028, 96
    %v3036 = vpop.permute.xlu0 %3035
    %3037 = vrot.lane.b32.xlu0 %v3030, 96
    %v3038 = vpop.permute.xlu0 %3037
    %v3039 = vsel %vm1652, %v3032, %v3034
    %v3040 = vsel %vm1652, %v3036, %v3038
    %v3043 = vadd.f32 %v3007, %v3039
    %v3044 = vadd.f32 %v3008, %v3040
    %v3045 = vmul.f32 %v2421, %v1709
    %v3046 = vmul.f32 %v2422, %v1709
    %v3047 = vmul.f32 %v2412, %v1709
    %v3048 = vmul.f32 %v2414, %v1709
    %v3049 = vmul.f32 %v2423, %v1709
    %v3050 = vmul.f32 %v2424, %v1709
    %v3057 = vrot.slane %v3045, 2
    %v3058 = vrot.slane %v3047, 2
    %v3059 = vsel %vm221, %v3057, %v3058
    %v3060 = vrot.slane %v3046, 2
    %v3061 = vrot.slane %v3048, 2
    %v3062 = vsel %vm221, %v3060, %v3061
    %v3063 = vrot.slane %v3049, 2
    %v3064 = vsel %vm221, %v3058, %v3063
    %v3065 = vrot.slane %v3050, 2
    %v3066 = vsel %vm221, %v3061, %v3065
    %3067 = vrot.lane.b32.xlu0 %v3059, 96
    %v3068 = vpop.permute.xlu0 %3067
    %3069 = vrot.lane.b32.xlu0 %v3062, 96
    %v3070 = vpop.permute.xlu0 %3069
    %3071 = vrot.lane.b32.xlu0 %v3064, 96
    %v3072 = vpop.permute.xlu0 %3071
    %3073 = vrot.lane.b32.xlu0 %v3066, 96
    %v3074 = vpop.permute.xlu0 %3073
    %v3075 = vsel %vm1652, %v3068, %v3070
    %v3076 = vsel %vm1652, %v3072, %v3074
    %v3079 = vadd.f32 %v3043, %v3075
    %v3080 = vadd.f32 %v3044, %v3076
    %v3081 = vmul.f32 %v2421, %v1753
    %v3082 = vmul.f32 %v2422, %v1753
    %v3083 = vmul.f32 %v2412, %v1753
    %v3084 = vmul.f32 %v2414, %v1753
    %v3085 = vmul.f32 %v2423, %v1753
    %v3086 = vmul.f32 %v2424, %v1753
    %v3093 = vrot.slane %v3081, 3
    %v3094 = vrot.slane %v3083, 3
    %v3095 = vsel %vm241, %v3093, %v3094
    %v3096 = vrot.slane %v3082, 3
    %v3097 = vrot.slane %v3084, 3
    %v3098 = vsel %vm241, %v3096, %v3097
    %v3099 = vrot.slane %v3085, 3
    %v3100 = vsel %vm241, %v3094, %v3099
    %v3101 = vrot.slane %v3086, 3
    %v3102 = vsel %vm241, %v3097, %v3101
    %3103 = vrot.lane.b32.xlu0 %v3095, 96
    %v3104 = vpop.permute.xlu0 %3103
    %3105 = vrot.lane.b32.xlu0 %v3098, 96
    %v3106 = vpop.permute.xlu0 %3105
    %3107 = vrot.lane.b32.xlu0 %v3100, 96
    %v3108 = vpop.permute.xlu0 %3107
    %3109 = vrot.lane.b32.xlu0 %v3102, 96
    %v3110 = vpop.permute.xlu0 %3109
    %v3111 = vsel %vm1652, %v3104, %v3106
    %v3112 = vsel %vm1652, %v3108, %v3110
    %v3115 = vadd.f32 %v3079, %v3111
    %v3116 = vadd.f32 %v3080, %v3112
    %v3117 = vmul.f32 %v2421, %v1797
    %v3118 = vmul.f32 %v2422, %v1797
    %v3119 = vmul.f32 %v2412, %v1797
    %v3120 = vmul.f32 %v2414, %v1797
    %v3121 = vmul.f32 %v2423, %v1797
    %v3122 = vmul.f32 %v2424, %v1797
    %v3129 = vrot.slane %v3117, 4
    %v3130 = vrot.slane %v3119, 4
    %v3131 = vsel %vm261, %v3129, %v3130
    %v3132 = vrot.slane %v3118, 4
    %v3133 = vrot.slane %v3120, 4
    %v3134 = vsel %vm261, %v3132, %v3133
    %v3135 = vrot.slane %v3121, 4
    %v3136 = vsel %vm261, %v3130, %v3135
    %v3137 = vrot.slane %v3122, 4
    %v3138 = vsel %vm261, %v3133, %v3137
    %3139 = vrot.lane.b32.xlu0 %v3131, 96
    %v3140 = vpop.permute.xlu0 %3139
    %3141 = vrot.lane.b32.xlu0 %v3134, 96
    %v3142 = vpop.permute.xlu0 %3141
    %3143 = vrot.lane.b32.xlu0 %v3136, 96
    %v3144 = vpop.permute.xlu0 %3143
    %3145 = vrot.lane.b32.xlu0 %v3138, 96
    %v3146 = vpop.permute.xlu0 %3145
    %v3147 = vsel %vm1652, %v3140, %v3142
    %v3148 = vsel %vm1652, %v3144, %v3146
    %v3151 = vadd.f32 %v3115, %v3147
    %v3152 = vadd.f32 %v3116, %v3148
    %v3153 = vadd.f32 %v3151, %v1838
    %v3154 = vadd.f32 %v3152, %v1838
    %3157 = vrot.lane.b32.xlu0 %v3153, 4
    %v3158 = vpop.permute.xlu0 %3157
    %3159 = vrot.lane.b32.xlu0 %v3154, 4
    %v3160 = vpop.permute.xlu0 %3159
    %v3163 = vsel %vm1849, 0.0, %v3158
    %v3164 = vsel %vm1849, 0.0, %v3160
    %v3165 = vadd.f32 %v2385, %v3163
    %v3166 = vadd.f32 %v2390, %v3164
    %v3167 = vadd.f32 %v3165, %v29
    %v3168 = vadd.f32 %v3166, %v30
    %s3169 = scalar_lea.vmem [#allocation2], 16
    %3170 = vst [vmem:[%s3169] sm:$0xff] %v3167
    %3171 = vst [vmem:[%s3169 + $0x8] sm:$0xff] %v3168
    // Predicated region
    $region30: #{tpu_custom_call.1} parent=1 // pred_check
      _
    $region31: #{tpu_custom_call.1} parent=1 // pred_check_branch
      %3173 = sbr.rel (0) target = $region33
    $region32: #{tpu_custom_call.1} parent=1 // pred_region
      %s3175 = ssub.s32 512, 512
      %3176 = vsyncadd [#allocation3], %s3175
      %s3177 = sshll.u32 [#allocation2], 4
      %s3178 = int_to_ptr.vmem [resolvable:$true] %s3177
      %3183 = dma.vmem_to_hbm [thread:$0]  %s3178, 512, %s7, [#allocation3], 128, 128, 8
    $region33: #{tpu_custom_call.1} parent=1 // pred_fallthru
      _
    // Predicated region
    $region34: #{tpu_custom_call.1} parent=1 // pred_check
      _
    $region35: #{tpu_custom_call.1} parent=1 // pred_check_branch
      %3185 = sbr.rel (0) target = $region37
    $region36: #{tpu_custom_call.1} parent=1 // pred_region
      %3186 = dma.done [#allocation3], 512
    $region37: #{tpu_custom_call.1} parent=1 // pred_fallthru
      _
    %3187 = vsyncpa [#allocation3], 1

</llo_original>
